<compile_context>
chip_gen: v5e
topology: v5e:2x2
jax: 0.10.0
libtpu: 0.0.40
codegen_flags: <defaults>
</compile_context>

<pallas_src>
import math
from functools import partial

import jax
import jax.numpy as jnp
from jax.experimental import pallas as pl
from jax.experimental.pallas import tpu as pltpu


_LN_EPS = 1e-4  # GlowTTS LayerNorm epsilon


# --------------------------------------------------------------------------
# In-kernel helpers (pure functions of values; data stays in vregs)
# --------------------------------------------------------------------------
def _mm_dot(a, w):
    """MXU matmul: activation cast to the (possibly bf16) weight dtype, f32 acc."""
    return jnp.dot(a.astype(w.dtype), w, preferred_element_type=jnp.float32)


def _make_shift_masks(t_len, kernel_sizes):
    """Validity masks ([T,1] bool) for every time shift used by 'same' convs."""
    masks = {}
    t_idx = jax.lax.broadcasted_iota(jnp.int32, (t_len, 1), 0)
    for k_size in kernel_sizes:
        pad = k_size // 2
        for k in range(k_size):
            d = k - pad
            if d == 0 or d in masks:
                continue
            masks[d] = (t_idx < t_len - d) if d > 0 else (t_idx >= -d)
    return masks


def _same_conv(x, w_cat, k_size, shift_masks):
    """1-D 'same' conv along time as ONE matmul + K shifted partial sums.

    x:     [T, Cin]
    w_cat: [Cin, K*Cout]; w_cat[:, k*Cout:(k+1)*Cout] is the tap at offset
           k - K//2 (i.e. the PyTorch conv weight[:, :, k] transposed).
    """
    t_len = x.shape[0]
    c_out = w_cat.shape[1] // k_size
    z = _mm_dot(x, w_cat)                                     # [T, K*Cout] f32
    pad = k_size // 2
    acc = None
    for k in range(k_size):                                   # static, tiny
        zk = z[:, k * c_out:(k + 1) * c_out]
        d = k - pad
        if d != 0:
            zk = jnp.where(shift_masks[d],
                           pltpu.roll(zk, shift=(-d) % t_len, axis=0),  # XLU
                           0.0)
        acc = zk if acc is None else acc + zk
    return acc


def _channel_layernorm(y, g, b):
    mean = jnp.mean(y, axis=-1, keepdims=True)
    var = jnp.mean(jnp.square(y - mean), axis=-1, keepdims=True)
    return (y - mean) * jax.lax.rsqrt(var + _LN_EPS) * g + b


def _mhsa(x, amask, w_qkv, b_qkv, w_o, b_o, num_heads):
    """GlowTTS multi-head self-attention (window_size=None path).

    1/sqrt(d_head) is pre-folded into the q block of w_qkv / b_qkv at pack time.
    """
    channels = x.shape[1]
    d_head = channels // num_heads
    mm_dt = w_qkv.dtype
    qkv = _mm_dot(x, w_qkv) + b_qkv                           # [T, 3C] f32
    heads = []
    for h in range(num_heads):                                # static tiny loop
        qh = qkv[:, h * d_head:(h + 1) * d_head]
        kh = qkv[:, channels + h * d_head:channels + (h + 1) * d_head]
        vh = qkv[:, 2 * channels + h * d_head:2 * channels + (h + 1) * d_head]
        s = jnp.einsum('td,sd->ts', qh.astype(mm_dt), kh.astype(mm_dt),
                       preferred_element_type=jnp.float32)
        s = jnp.where(amask, s, -1e4)                         # GlowTTS masked_fill
        s = s - jnp.max(s, axis=-1, keepdims=True)
        p = jnp.exp(s)
        # EUP approximate reciprocal; use approx=False for bit-level parity.
        p = p * pl.reciprocal(jnp.sum(p, axis=-1, keepdims=True), approx=True)
        heads.append(jnp.dot(p.astype(mm_dt), vh.astype(mm_dt),
                             preferred_element_type=jnp.float32))
    o = jnp.concatenate(heads, axis=-1)                       # [T, C]
    return _mm_dot(o, w_o) + b_o                              # ONE K=C output dot


def _dual_conv_ffn(h, m, w1_cat, b1, w2_cat, b2, k_size, shift_masks):
    """DualConv: conv1 -> relu -> mask -> conv2 -> mask (dropout identity)."""
    z = _same_conv(h * m, w1_cat, k_size, shift_masks) + b1
    z = jnp.maximum(z, 0.0) * m                               # activation=None -> relu
    y = _same_conv(z, w2_cat, k_size, shift_masks) + b2
    return y * m


# --------------------------------------------------------------------------
# Fused encoder kernel: one grid step == seqs_per_step batch elements
# --------------------------------------------------------------------------
def _encoder_kernel(lens_ref,                    # SMEM [B] int32 (scalar prefetch)
                    lbl_ref,                     # [S, T, 1] int32
                    emb_ref,                     # [V, E] f32 (pre-scaled by sqrt(E))
                    pn_mats_ref,                 # [Lp, Cin, Kp*H]
                    pn_vecs_ref,                 # [Lp, 3, H] f32 (bias, gamma, beta)
                    proj_w_ref,                  # [H, D]
                    proj_b_ref,                  # [1, D] f32
                    tr_mats_ref,                 # [L, D, 3D + D + Kc*F]
                    tr_w2_ref,                   # [L, F, Kc*D]
                    tr_vecs_ref,                 # [L, 8, max(3D, F)] f32
                    h_out_ref,                   # [S, D, T]
                    mask_out_ref,                # [S, 1, T]
                    *, num_heads, prenet_k, conv_k, seqs_per_step):
    n_t = lbl_ref.shape[1]
    d_model = h_out_ref.shape[1]
    f_dim = tr_w2_ref.shape[1]
    three_d = 3 * d_model
    vocab = emb_ref.shape[0]

    # ---- hoisted, length-independent constants (shared by all sequences) ----
    shift_masks = _make_shift_masks(n_t, (prenet_k, conv_k))
    t_col = jax.lax.broadcasted_iota(jnp.int32, (n_t, 1), 0)        # [T, 1]
    k_row = jax.lax.broadcasted_iota(jnp.int32, (1, n_t), 1)        # [1, T]
    v_iota = jax.lax.broadcasted_iota(jnp.int32, (n_t, vocab), 1)   # [T, V]
    emb = emb_ref[...]

    g = pl.program_id(0)

    for s in range(seqs_per_step):               # static per-step sequence loop
        length = lens_ref[g * seqs_per_step + s]                    # SMEM scalar

        # ---- masks (built in-kernel from the sequence length) ----
        q_valid = t_col < length                                    # [T, 1]
        k_valid = k_row < length                                    # [1, T]
        m = q_valid.astype(jnp.float32)                             # [T, 1]
        amask = jnp.logical_and(q_valid, k_valid)                   # [T, T]

        # ---- embedding gather as one-hot matmul (sqrt(E) pre-folded) ----
        ids = lbl_ref[s]                                            # [T, 1] int32
        onehot = (v_iota == ids).astype(jnp.float32)                # [T, V]
        x = jnp.dot(onehot, emb, preferred_element_type=jnp.float32)  # [T, E]

        # ---- PreNet (ConvReluNorm): conv -> chan-LN -> ReLU, 1x1-proj residual
        x_org = x
        for l in range(pn_mats_ref.shape[0]):
            vec = pn_vecs_ref[l]
            y = _same_conv(x * m, pn_mats_ref[l], prenet_k, shift_masks) + vec[0:1, :]
            y = _channel_layernorm(y, vec[1:2, :], vec[2:3, :])
            x = jnp.maximum(y, 0.0)                                 # ReLU (+dropout id)
        x = x_org + _mm_dot(x, proj_w_ref[...]) + proj_b_ref[...]
        h = x * m

        # ---- Transformer layers: mask -> MHSA -> add+LN -> DualConv -> add+LN
        for l in range(tr_mats_ref.shape[0]):
            mats = tr_mats_ref[l]
            w_qkv = mats[:, :three_d]
            w_o = mats[:, three_d:three_d + d_model]
            ffn_w1 = mats[:, three_d + d_model:]
            vec = tr_vecs_ref[l]
            b_qkv = vec[0:1, :three_d]
            b_o = vec[1:2, :d_model]
            ln1_g = vec[2:3, :d_model]
            ln1_b = vec[3:4, :d_model]
            ffn_b1 = vec[4:5, :f_dim]
            ffn_b2 = vec[5:6, :d_model]
            ln2_g = vec[6:7, :d_model]
            ln2_b = vec[7:8, :d_model]

            h = h * m
            att = _mhsa(h, amask, w_qkv, b_qkv, w_o, b_o, num_heads)
            h = _channel_layernorm(h + att, ln1_g, ln1_b)
            ff = _dual_conv_ffn(h, m, ffn_w1, ffn_b1, tr_w2_ref[l], ffn_b2,
                                conv_k, shift_masks)
            h = _channel_layernorm(h + ff, ln2_g, ln2_b)

        h = h * m
        # Emit the PyTorch [D, T] layout directly (in-kernel XLU transpose).
        h_out_ref[s] = jnp.transpose(h).astype(h_out_ref.dtype)
        mask_out_ref[s] = k_valid.astype(mask_out_ref.dtype)


# --------------------------------------------------------------------------
# Parameter init (deterministic, synthetic) and kernel-layout packing
# --------------------------------------------------------------------------
def init_params(key, cfg):
    D = cfg['basic_dim']
    E = cfg['input_embedding_size']
    H = cfg['prenet_hidden']
    Kp = cfg['prenet_kernel_size']
    Kc = cfg['conv_kernel_size']
    F = cfg['conv_dim']
    assert E == D, "prenet residual requires input_embedding_size == basic_dim"
    assert E == H, "stacked prenet weights require input_embedding_size == prenet_hidden"

    keys = iter(jax.random.split(key, 256))

    def nrm(shape, scale):
        return jax.random.normal(next(keys), shape, jnp.float32) * scale

    params = {}
    # nn.init.normal_(emb.weight, 0.0, basic_dim ** -0.5)
    params['emb'] = nrm((cfg['vocab_size'], E), D ** -0.5)

    prenet_layers = []
    cin = E
    for _ in range(cfg['prenet_num_layers']):
        prenet_layers.append(dict(
            w=nrm((Kp, cin, H), (cin * Kp) ** -0.5),
            b=jnp.zeros((1, H), jnp.float32),
            g=jnp.ones((1, H), jnp.float32),
            beta=jnp.zeros((1, H), jnp.float32),
        ))
        cin = H
    params['prenet_layers'] = prenet_layers
    # GlowTTS zero-initialises the prenet 1x1 projection (residual passthrough)
    params['prenet_proj_w'] = jnp.zeros((H, D), jnp.float32)
    params['prenet_proj_b'] = jnp.zeros((1, D), jnp.float32)

    layers = []
    for _ in range(cfg['num_layers']):
        layers.append(dict(
            wq=nrm((D, D), D ** -0.5), bq=jnp.zeros((1, D), jnp.float32),
            wk=nrm((D, D), D ** -0.5), bk=jnp.zeros((1, D), jnp.float32),
            wv=nrm((D, D), D ** -0.5), bv=jnp.zeros((1, D), jnp.float32),
            wo=nrm((D, D), D ** -0.5), bo=jnp.zeros((1, D), jnp.float32),
            ln1_g=jnp.ones((1, D), jnp.float32), ln1_b=jnp.zeros((1, D), jnp.float32),
            ffn_w1=nrm((Kc, D, F), (D * Kc) ** -0.5),
            ffn_b1=jnp.zeros((1, F), jnp.float32),
            ffn_w2=nrm((Kc, F, D), (F * Kc) ** -0.5),
            ffn_b2=jnp.zeros((1, D), jnp.float32),
            ln2_g=jnp.ones((1, D), jnp.float32), ln2_b=jnp.zeros((1, D), jnp.float32),
        ))
    params['layers'] = layers
    return params


def pack_params(params, cfg, matmul_dtype=jnp.bfloat16):
    """Fold static scales into weights and pack per-layer params into a small
    number of lane-dense, layer-stacked arrays (fewer / larger DMA streams).
    matmul_dtype controls the MXU feed dtype (pass jnp.float32 for f32 parity)."""
    D = cfg['basic_dim']
    E = cfg['input_embedding_size']
    F = cfg['conv_dim']
    d_head = D // cfg['num_heads']

    def conv_cat(w):                       # [K, Cin, Cout] -> [Cin, K*Cout]
        k, cin, cout = w.shape
        return jnp.transpose(w, (1, 0, 2)).reshape(cin, k * cout)

    def pad_lanes(v, width):
        return jnp.pad(v, ((0, 0), (0, width - v.shape[1])))

    mm = lambda a: a.astype(matmul_dtype)

    pls = params['prenet_layers']
    lws = params['layers']
    q_scale = d_head ** -0.5
    vec_w = max(3 * D, F)

    tr_mats, tr_w2, tr_vecs = [], [], []
    for lw in lws:
        w_qkv = jnp.concatenate([lw['wq'] * q_scale, lw['wk'], lw['wv']], axis=1)
        tr_mats.append(jnp.concatenate([w_qkv, lw['wo'], conv_cat(lw['ffn_w1'])],
                                       axis=1))                  # [D, 3D+D+Kc*F]
        tr_w2.append(conv_cat(lw['ffn_w2']))                     # [F, Kc*D]
        b_qkv = jnp.concatenate([lw['bq'] * q_scale, lw['bk'], lw['bv']], axis=1)
        rows = [b_qkv, lw['bo'], lw['ln1_g'], lw['ln1_b'],
                lw['ffn_b1'], lw['ffn_b2'], lw['ln2_g'], lw['ln2_b']]
        tr_vecs.append(jnp.concatenate([pad_lanes(r, vec_w) for r in rows], axis=0))

    return dict(
        emb=params['emb'] * math.sqrt(E),                        # sqrt(E) pre-folded
        pn_mats=mm(jnp.stack([conv_cat(lp['w']) for lp in pls])),  # [Lp,Cin,Kp*H]
        pn_vecs=jnp.stack([jnp.concatenate([lp['b'], lp['g'], lp['beta']], axis=0)
                           for lp in pls]),                      # [Lp, 3, H]
        proj_w=mm(params['prenet_proj_w']),                      # [H, D]
        proj_b=params['prenet_proj_b'],                          # [1, D]
        tr_mats=mm(jnp.stack(tr_mats)),                          # [L, D, 3D+D+Kc*F]
        tr_w2=mm(jnp.stack(tr_w2)),                              # [L, F, Kc*D]
        tr_vecs=jnp.stack(tr_vecs),                              # [L, 8, max(3D,F)]
    )


# --------------------------------------------------------------------------
# Forward (one pallas_call)
# --------------------------------------------------------------------------
def tts_transformer_text_encoder_forward(packed, phon_labels, labels_lengths, cfg,
                                          num_grid_steps=None):
    """phon_labels: [B, N] int, labels_lengths: [B] int.
       Returns (h [B, basic_dim, N], h_mask [B, 1, N]) like the PyTorch module."""
    B, N = phon_labels.shape
    D = cfg['basic_dim']

    if num_grid_steps is None:
        # v7x: 2 TensorCores -> default 2-way "parallel" split.  On single-TC
        # v5e/v6e pass num_grid_steps=1 to fold the batch into one grid step.
        num_grid_steps = min(B, 2)
    assert B % num_grid_steps == 0
    seqs_per_step = B // num_grid_steps

    # Only remaining wrapper op: trivial int32 [B,N] -> [B,N,1] reshape.
    labels_col = phon_labels.astype(jnp.int32).reshape(B, N, 1)
    lengths = labels_lengths.astype(jnp.int32)

    w_names = ('emb', 'pn_mats', 'pn_vecs', 'proj_w', 'proj_b',
               'tr_mats', 'tr_w2', 'tr_vecs')
    w_args = [packed[name] for name in w_names]

    def whole(a):        # grid-invariant, VMEM-resident weight block
        return pl.BlockSpec(a.shape, lambda g, lens, nd=a.ndim: (0,) * nd)

    in_specs = ([pl.BlockSpec((seqs_per_step, N, 1), lambda g, lens: (g, 0, 0))]
                + [whole(a) for a in w_args])
    out_specs = (pl.BlockSpec((seqs_per_step, D, N), lambda g, lens: (g, 0, 0)),
                 pl.BlockSpec((seqs_per_step, 1, N), lambda g, lens: (g, 0, 0)))
    out_shape = (jax.ShapeDtypeStruct((B, D, N), jnp.float32),
                 jax.ShapeDtypeStruct((B, 1, N), jnp.float32))

    h, h_mask = pl.pallas_call(
        partial(_encoder_kernel,
                num_heads=cfg['num_heads'],
                prenet_k=cfg['prenet_kernel_size'],
                conv_k=cfg['conv_kernel_size'],
                seqs_per_step=seqs_per_step),
        out_shape=out_shape,
        grid_spec=pltpu.PrefetchScalarGridSpec(
            num_scalar_prefetch=1,
            grid=(num_grid_steps,),
            in_specs=in_specs,
            out_specs=out_specs,
        ),
        compiler_params=pltpu.CompilerParams(
            dimension_semantics=("parallel",)),
    )(lengths, labels_col, *w_args)
    return h, h_mask


# --------------------------------------------------------------------------
if __name__ == "__main__":
    cfg = dict(
        num_layers=2,
        vocab_size=50,
        basic_dim=32,
        conv_dim=64,
        conv_kernel_size=3,
        num_heads=2,
        input_embedding_size=32,
        prenet_hidden=32,
        prenet_kernel_size=3,
        prenet_num_layers=3,
    )
    B, N = 2, 16

    root = jax.random.PRNGKey(0)
    k_params, k_labels = jax.random.split(root)
    params = init_params(k_params, cfg)
    packed = pack_params(params, cfg)        # bf16 MXU feeds, f32 elementwise math

    phon_labels = jax.random.randint(k_labels, (B, N), 0, cfg['vocab_size'],
                                     dtype=jnp.int32)
    labels_lengths = jnp.array([N, N - 6], dtype=jnp.int32)

    fwd = jax.jit(partial(tts_transformer_text_encoder_forward, packed, cfg=cfg))
    h, h_mask = fwd(phon_labels, labels_lengths)
    jax.block_until_ready((h, h_mask))

    assert h.shape == (B, cfg['basic_dim'], N)
    assert h_mask.shape == (B, 1, N)
    print("KERNEL_OK")
</pallas_src>

<mosaic_0001>
module attributes {stable_mosaic.version = 11 : i64} {
  func.func @_encoder_kernel(%arg0: i32, %arg1: memref<2xi32, #tpu.memory_space<smem>>, %arg2: memref<1x16x1xi32, #tpu.memory_space<vmem>>, %arg3: memref<50x32xf32, #tpu.memory_space<vmem>>, %arg4: memref<3x32x96xbf16, #tpu.memory_space<vmem>>, %arg5: memref<3x3x32xf32, #tpu.memory_space<vmem>>, %arg6: memref<32x32xbf16, #tpu.memory_space<vmem>>, %arg7: memref<1x32xf32, #tpu.memory_space<vmem>>, %arg8: memref<2x32x320xbf16, #tpu.memory_space<vmem>>, %arg9: memref<2x64x96xbf16, #tpu.memory_space<vmem>>, %arg10: memref<2x8x96xf32, #tpu.memory_space<vmem>>, %arg11: memref<1x32x16xf32, #tpu.memory_space<vmem>>, %arg12: memref<1x1x16xf32, #tpu.memory_space<vmem>>) attributes {dimension_semantics = [#tpu.dimension_semantics<parallel>], iteration_bounds = array<i64: 2>, scalar_prefetch = 1 : i64, scratch_operands = 0 : i64, tpu.core_type = #tpu.core_type<tc>, window_params = [{transform_indices = @transform_0, window_bounds = array<i64: 1, 16, 1>}, {pipeline_mode = #tpu.pipeline_mode<synchronous>, transform_indices = @transform_1, window_bounds = array<i64: 50, 32>}, {pipeline_mode = #tpu.pipeline_mode<synchronous>, transform_indices = @transform_2, window_bounds = array<i64: 3, 32, 96>}, {pipeline_mode = #tpu.pipeline_mode<synchronous>, transform_indices = @transform_3, window_bounds = array<i64: 3, 3, 32>}, {pipeline_mode = #tpu.pipeline_mode<synchronous>, transform_indices = @transform_4, window_bounds = array<i64: 32, 32>}, {pipeline_mode = #tpu.pipeline_mode<synchronous>, transform_indices = @transform_5, window_bounds = array<i64: 1, 32>}, {pipeline_mode = #tpu.pipeline_mode<synchronous>, transform_indices = @transform_6, window_bounds = array<i64: 2, 32, 320>}, {pipeline_mode = #tpu.pipeline_mode<synchronous>, transform_indices = @transform_7, window_bounds = array<i64: 2, 64, 96>}, {pipeline_mode = #tpu.pipeline_mode<synchronous>, transform_indices = @transform_8, window_bounds = array<i64: 2, 8, 96>}, {transform_indices = @transform_9, window_bounds = array<i64: 1, 32, 16>}, {transform_indices = @transform_10, window_bounds = array<i64: 1, 1, 16>}]} {
    %0 = tpu.iota {dimensions = array<i32: 0>} : vector<16x1xi32>
    %c1_i32 = arith.constant 1 : i32
    %1 = vector.broadcast %c1_i32 : i32 to vector<16x1xi32>
    %2 = arith.cmpi sge, %0, %1 : vector<16x1xi32>
    %c15_i32 = arith.constant 15 : i32
    %3 = vector.broadcast %c15_i32 : i32 to vector<16x1xi32>
    %4 = arith.cmpi slt, %0, %3 : vector<16x1xi32>
    %5 = tpu.iota {dimensions = array<i32: 0>} : vector<16x1xi32>
    %6 = tpu.iota {dimensions = array<i32: 1>} : vector<1x16xi32>
    %7 = tpu.iota {dimensions = array<i32: 1>} : vector<16x50xi32>
    %c0 = arith.constant 0 : index
    %c0_0 = arith.constant 0 : index
    %8 = vector.load %arg3[%c0, %c0_0] : memref<50x32xf32, #tpu.memory_space<vmem>>, vector<50x32xf32>
    %c1_i32_1 = arith.constant 1 : i32
    %9 = arith.muli %arg0, %c1_i32_1 : i32
    %c0_i32 = arith.constant 0 : i32
    %10 = arith.addi %9, %c0_i32 : i32
    %11 = arith.index_cast %10 : i32 to index
    %12 = memref.load %arg1[%11] : memref<2xi32, #tpu.memory_space<smem>>
    %13 = vector.broadcast %12 : i32 to vector<16x1xi32>
    %14 = arith.cmpi slt, %5, %13 : vector<16x1xi32>
    %15 = vector.broadcast %12 : i32 to vector<1x16xi32>
    %16 = arith.cmpi slt, %6, %15 : vector<1x16xi32>
    %17 = arith.extui %14 : vector<16x1xi1> to vector<16x1xi32>
    %18 = arith.sitofp %17 : vector<16x1xi32> to vector<16x1xf32>
    %19 = vector.broadcast %14 : vector<16x1xi1> to vector<16x16xi1>
    %20 = vector.broadcast %16 : vector<1x16xi1> to vector<16x16xi1>
    %21 = arith.andi %19, %20 : vector<16x16xi1>
    %c0_2 = arith.constant 0 : index
    %c0_3 = arith.constant 0 : index
    %c0_4 = arith.constant 0 : index
    %22 = vector.load %arg2[%c0_2, %c0_3, %c0_4] : memref<1x16x1xi32, #tpu.memory_space<vmem>>, vector<1x16x1xi32>
    %23 = vector.shape_cast %22 : vector<1x16x1xi32> to vector<16x1xi32>
    %24 = vector.broadcast %23 : vector<16x1xi32> to vector<16x50xi32>
    %25 = arith.cmpi eq, %7, %24 : vector<16x50xi32>
    %26 = arith.extui %25 : vector<16x50xi1> to vector<16x50xi32>
    %27 = arith.sitofp %26 : vector<16x50xi32> to vector<16x50xf32>
    %cst = arith.constant dense<0.000000e+00> : vector<16x32xf32>
    %28 = tpu.matmul %27, %8, %cst {dimension_numbers = #tpu.dot_dimension_numbers<[1], [0], [0], [1], [0, 0, 1, 1], [], []>} : vector<16x50xf32>, vector<50x32xf32>, vector<16x32xf32> -> vector<16x32xf32>
    %c0_5 = arith.constant 0 : index
    %c0_6 = arith.constant 0 : index
    %c0_7 = arith.constant 0 : index
    %29 = vector.load %arg5[%c0_5, %c0_6, %c0_7] : memref<3x3x32xf32, #tpu.memory_space<vmem>>, vector<1x3x32xf32>
    %30 = vector.shape_cast %29 : vector<1x3x32xf32> to vector<3x32xf32>
    %31 = vector.broadcast %18 : vector<16x1xf32> to vector<16x32xf32>
    %32 = arith.mulf %28, %31 : vector<16x32xf32>
    %c0_8 = arith.constant 0 : index
    %c0_9 = arith.constant 0 : index
    %c0_10 = arith.constant 0 : index
    %33 = vector.load %arg4[%c0_8, %c0_9, %c0_10] : memref<3x32x96xbf16, #tpu.memory_space<vmem>>, vector<1x32x96xbf16>
    %34 = vector.shape_cast %33 : vector<1x32x96xbf16> to vector<32x96xbf16>
    %35 = arith.truncf %32 : vector<16x32xf32> to vector<16x32xbf16>
    %cst_11 = arith.constant dense<0.000000e+00> : vector<16x96xf32>
    %36 = tpu.matmul %35, %34, %cst_11 {dimension_numbers = #tpu.dot_dimension_numbers<[1], [0], [0], [1], [0, 0, 1, 1], [], []>} : vector<16x32xbf16>, vector<32x96xbf16>, vector<16x96xf32> -> vector<16x96xf32>
    %37 = vector.extract_strided_slice %36 {offsets = [0, 0], sizes = [16, 32], strides = [1, 1]} : vector<16x96xf32> to vector<16x32xf32>
    %c1_i32_12 = arith.constant 1 : i32
    %38 = tpu.dynamic_rotate %37 by %c1_i32_12 dim 0 : vector<16x32xf32>, i32 -> vector<16x32xf32>
    %cst_13 = arith.constant 0.000000e+00 : f32
    %39 = vector.shape_cast %2 : vector<16x1xi1> to vector<16x1xi1>
    %40 = vector.broadcast %39 : vector<16x1xi1> to vector<16x32xi1>
    %41 = vector.broadcast %cst_13 : f32 to vector<16x32xf32>
    %42 = arith.select %40, %38, %41 : vector<16x32xi1>, vector<16x32xf32>
    %43 = vector.extract_strided_slice %36 {offsets = [0, 32], sizes = [16, 32], strides = [1, 1]} : vector<16x96xf32> to vector<16x32xf32>
    %44 = arith.addf %42, %43 : vector<16x32xf32>
    %45 = vector.extract_strided_slice %36 {offsets = [0, 64], sizes = [16, 32], strides = [1, 1]} : vector<16x96xf32> to vector<16x32xf32>
    %c15_i32_14 = arith.constant 15 : i32
    %46 = tpu.dynamic_rotate %45 by %c15_i32_14 dim 0 : vector<16x32xf32>, i32 -> vector<16x32xf32>
    %cst_15 = arith.constant 0.000000e+00 : f32
    %47 = vector.shape_cast %4 : vector<16x1xi1> to vector<16x1xi1>
    %48 = vector.broadcast %47 : vector<16x1xi1> to vector<16x32xi1>
    %49 = vector.broadcast %cst_15 : f32 to vector<16x32xf32>
    %50 = arith.select %48, %46, %49 : vector<16x32xi1>, vector<16x32xf32>
    %51 = arith.addf %44, %50 : vector<16x32xf32>
    %52 = vector.extract_strided_slice %30 {offsets = [0, 0], sizes = [1, 32], strides = [1, 1]} : vector<3x32xf32> to vector<1x32xf32>
    %53 = vector.broadcast %52 : vector<1x32xf32> to vector<16x32xf32>
    %54 = arith.addf %51, %53 : vector<16x32xf32>
    %55 = vector.extract_strided_slice %30 {offsets = [1, 0], sizes = [1, 32], strides = [1, 1]} : vector<3x32xf32> to vector<1x32xf32>
    %56 = vector.extract_strided_slice %30 {offsets = [2, 0], sizes = [1, 32], strides = [1, 1]} : vector<3x32xf32> to vector<1x32xf32>
    %cst_16 = arith.constant dense<0.000000e+00> : vector<16xf32>
    %57 = vector.multi_reduction <add>, %54, %cst_16 [1] : vector<16x32xf32> to vector<16xf32>
    %58 = vector.shape_cast %57 : vector<16xf32> to vector<16x1xf32>
    %cst_17 = arith.constant 3.200000e+01 : f32
    %59 = vector.broadcast %cst_17 : f32 to vector<16x1xf32>
    %60 = arith.divf %58, %59 : vector<16x1xf32>
    %61 = vector.broadcast %60 : vector<16x1xf32> to vector<16x32xf32>
    %62 = arith.subf %54, %61 : vector<16x32xf32>
    %63 = arith.mulf %62, %62 : vector<16x32xf32>
    %cst_18 = arith.constant dense<0.000000e+00> : vector<16xf32>
    %64 = vector.multi_reduction <add>, %63, %cst_18 [1] : vector<16x32xf32> to vector<16xf32>
    %65 = vector.shape_cast %64 : vector<16xf32> to vector<16x1xf32>
    %cst_19 = arith.constant 3.200000e+01 : f32
    %66 = vector.broadcast %cst_19 : f32 to vector<16x1xf32>
    %67 = arith.divf %65, %66 : vector<16x1xf32>
    %68 = vector.broadcast %60 : vector<16x1xf32> to vector<16x32xf32>
    %69 = arith.subf %54, %68 : vector<16x32xf32>
    %cst_20 = arith.constant 9.99999974E-5 : f32
    %70 = vector.broadcast %cst_20 : f32 to vector<16x1xf32>
    %71 = arith.addf %67, %70 : vector<16x1xf32>
    %72 = math.rsqrt %71 : vector<16x1xf32>
    %73 = vector.broadcast %72 : vector<16x1xf32> to vector<16x32xf32>
    %74 = arith.mulf %69, %73 : vector<16x32xf32>
    %75 = vector.broadcast %55 : vector<1x32xf32> to vector<16x32xf32>
    %76 = arith.mulf %74, %75 : vector<16x32xf32>
    %77 = vector.broadcast %56 : vector<1x32xf32> to vector<16x32xf32>
    %78 = arith.addf %76, %77 : vector<16x32xf32>
    %cst_21 = arith.constant 0.000000e+00 : f32
    %79 = vector.broadcast %cst_21 : f32 to vector<16x32xf32>
    %80 = arith.maximumf %78, %79 : vector<16x32xf32>
    %c1 = arith.constant 1 : index
    %c0_22 = arith.constant 0 : index
    %c0_23 = arith.constant 0 : index
    %81 = vector.load %arg5[%c1, %c0_22, %c0_23] : memref<3x3x32xf32, #tpu.memory_space<vmem>>, vector<1x3x32xf32>
    %82 = vector.shape_cast %81 : vector<1x3x32xf32> to vector<3x32xf32>
    %83 = vector.broadcast %18 : vector<16x1xf32> to vector<16x32xf32>
    %84 = arith.mulf %80, %83 : vector<16x32xf32>
    %c1_24 = arith.constant 1 : index
    %c0_25 = arith.constant 0 : index
    %c0_26 = arith.constant 0 : index
    %85 = vector.load %arg4[%c1_24, %c0_25, %c0_26] : memref<3x32x96xbf16, #tpu.memory_space<vmem>>, vector<1x32x96xbf16>
    %86 = vector.shape_cast %85 : vector<1x32x96xbf16> to vector<32x96xbf16>
    %87 = arith.truncf %84 : vector<16x32xf32> to vector<16x32xbf16>
    %cst_27 = arith.constant dense<0.000000e+00> : vector<16x96xf32>
    %88 = tpu.matmul %87, %86, %cst_27 {dimension_numbers = #tpu.dot_dimension_numbers<[1], [0], [0], [1], [0, 0, 1, 1], [], []>} : vector<16x32xbf16>, vector<32x96xbf16>, vector<16x96xf32> -> vector<16x96xf32>
    %89 = vector.extract_strided_slice %88 {offsets = [0, 0], sizes = [16, 32], strides = [1, 1]} : vector<16x96xf32> to vector<16x32xf32>
    %c1_i32_28 = arith.constant 1 : i32
    %90 = tpu.dynamic_rotate %89 by %c1_i32_28 dim 0 : vector<16x32xf32>, i32 -> vector<16x32xf32>
    %cst_29 = arith.constant 0.000000e+00 : f32
    %91 = vector.shape_cast %2 : vector<16x1xi1> to vector<16x1xi1>
    %92 = vector.broadcast %91 : vector<16x1xi1> to vector<16x32xi1>
    %93 = vector.broadcast %cst_29 : f32 to vector<16x32xf32>
    %94 = arith.select %92, %90, %93 : vector<16x32xi1>, vector<16x32xf32>
    %95 = vector.extract_strided_slice %88 {offsets = [0, 32], sizes = [16, 32], strides = [1, 1]} : vector<16x96xf32> to vector<16x32xf32>
    %96 = arith.addf %94, %95 : vector<16x32xf32>
    %97 = vector.extract_strided_slice %88 {offsets = [0, 64], sizes = [16, 32], strides = [1, 1]} : vector<16x96xf32> to vector<16x32xf32>
    %c15_i32_30 = arith.constant 15 : i32
    %98 = tpu.dynamic_rotate %97 by %c15_i32_30 dim 0 : vector<16x32xf32>, i32 -> vector<16x32xf32>
    %cst_31 = arith.constant 0.000000e+00 : f32
    %99 = vector.shape_cast %4 : vector<16x1xi1> to vector<16x1xi1>
    %100 = vector.broadcast %99 : vector<16x1xi1> to vector<16x32xi1>
    %101 = vector.broadcast %cst_31 : f32 to vector<16x32xf32>
    %102 = arith.select %100, %98, %101 : vector<16x32xi1>, vector<16x32xf32>
    %103 = arith.addf %96, %102 : vector<16x32xf32>
    %104 = vector.extract_strided_slice %82 {offsets = [0, 0], sizes = [1, 32], strides = [1, 1]} : vector<3x32xf32> to vector<1x32xf32>
    %105 = vector.broadcast %104 : vector<1x32xf32> to vector<16x32xf32>
    %106 = arith.addf %103, %105 : vector<16x32xf32>
    %107 = vector.extract_strided_slice %82 {offsets = [1, 0], sizes = [1, 32], strides = [1, 1]} : vector<3x32xf32> to vector<1x32xf32>
    %108 = vector.extract_strided_slice %82 {offsets = [2, 0], sizes = [1, 32], strides = [1, 1]} : vector<3x32xf32> to vector<1x32xf32>
    %cst_32 = arith.constant dense<0.000000e+00> : vector<16xf32>
    %109 = vector.multi_reduction <add>, %106, %cst_32 [1] : vector<16x32xf32> to vector<16xf32>
    %110 = vector.shape_cast %109 : vector<16xf32> to vector<16x1xf32>
    %cst_33 = arith.constant 3.200000e+01 : f32
    %111 = vector.broadcast %cst_33 : f32 to vector<16x1xf32>
    %112 = arith.divf %110, %111 : vector<16x1xf32>
    %113 = vector.broadcast %112 : vector<16x1xf32> to vector<16x32xf32>
    %114 = arith.subf %106, %113 : vector<16x32xf32>
    %115 = arith.mulf %114, %114 : vector<16x32xf32>
    %cst_34 = arith.constant dense<0.000000e+00> : vector<16xf32>
    %116 = vector.multi_reduction <add>, %115, %cst_34 [1] : vector<16x32xf32> to vector<16xf32>
    %117 = vector.shape_cast %116 : vector<16xf32> to vector<16x1xf32>
    %cst_35 = arith.constant 3.200000e+01 : f32
    %118 = vector.broadcast %cst_35 : f32 to vector<16x1xf32>
    %119 = arith.divf %117, %118 : vector<16x1xf32>
    %120 = vector.broadcast %112 : vector<16x1xf32> to vector<16x32xf32>
    %121 = arith.subf %106, %120 : vector<16x32xf32>
    %cst_36 = arith.constant 9.99999974E-5 : f32
    %122 = vector.broadcast %cst_36 : f32 to vector<16x1xf32>
    %123 = arith.addf %119, %122 : vector<16x1xf32>
    %124 = math.rsqrt %123 : vector<16x1xf32>
    %125 = vector.broadcast %124 : vector<16x1xf32> to vector<16x32xf32>
    %126 = arith.mulf %121, %125 : vector<16x32xf32>
    %127 = vector.broadcast %107 : vector<1x32xf32> to vector<16x32xf32>
    %128 = arith.mulf %126, %127 : vector<16x32xf32>
    %129 = vector.broadcast %108 : vector<1x32xf32> to vector<16x32xf32>
    %130 = arith.addf %128, %129 : vector<16x32xf32>
    %cst_37 = arith.constant 0.000000e+00 : f32
    %131 = vector.broadcast %cst_37 : f32 to vector<16x32xf32>
    %132 = arith.maximumf %130, %131 : vector<16x32xf32>
    %c2 = arith.constant 2 : index
    %c0_38 = arith.constant 0 : index
    %c0_39 = arith.constant 0 : index
    %133 = vector.load %arg5[%c2, %c0_38, %c0_39] : memref<3x3x32xf32, #tpu.memory_space<vmem>>, vector<1x3x32xf32>
    %134 = vector.shape_cast %133 : vector<1x3x32xf32> to vector<3x32xf32>
    %135 = vector.broadcast %18 : vector<16x1xf32> to vector<16x32xf32>
    %136 = arith.mulf %132, %135 : vector<16x32xf32>
    %c2_40 = arith.constant 2 : index
    %c0_41 = arith.constant 0 : index
    %c0_42 = arith.constant 0 : index
    %137 = vector.load %arg4[%c2_40, %c0_41, %c0_42] : memref<3x32x96xbf16, #tpu.memory_space<vmem>>, vector<1x32x96xbf16>
    %138 = vector.shape_cast %137 : vector<1x32x96xbf16> to vector<32x96xbf16>
    %139 = arith.truncf %136 : vector<16x32xf32> to vector<16x32xbf16>
    %cst_43 = arith.constant dense<0.000000e+00> : vector<16x96xf32>
    %140 = tpu.matmul %139, %138, %cst_43 {dimension_numbers = #tpu.dot_dimension_numbers<[1], [0], [0], [1], [0, 0, 1, 1], [], []>} : vector<16x32xbf16>, vector<32x96xbf16>, vector<16x96xf32> -> vector<16x96xf32>
    %141 = vector.extract_strided_slice %140 {offsets = [0, 0], sizes = [16, 32], strides = [1, 1]} : vector<16x96xf32> to vector<16x32xf32>
    %c1_i32_44 = arith.constant 1 : i32
    %142 = tpu.dynamic_rotate %141 by %c1_i32_44 dim 0 : vector<16x32xf32>, i32 -> vector<16x32xf32>
    %cst_45 = arith.constant 0.000000e+00 : f32
    %143 = vector.shape_cast %2 : vector<16x1xi1> to vector<16x1xi1>
    %144 = vector.broadcast %143 : vector<16x1xi1> to vector<16x32xi1>
    %145 = vector.broadcast %cst_45 : f32 to vector<16x32xf32>
    %146 = arith.select %144, %142, %145 : vector<16x32xi1>, vector<16x32xf32>
    %147 = vector.extract_strided_slice %140 {offsets = [0, 32], sizes = [16, 32], strides = [1, 1]} : vector<16x96xf32> to vector<16x32xf32>
    %148 = arith.addf %146, %147 : vector<16x32xf32>
    %149 = vector.extract_strided_slice %140 {offsets = [0, 64], sizes = [16, 32], strides = [1, 1]} : vector<16x96xf32> to vector<16x32xf32>
    %c15_i32_46 = arith.constant 15 : i32
    %150 = tpu.dynamic_rotate %149 by %c15_i32_46 dim 0 : vector<16x32xf32>, i32 -> vector<16x32xf32>
    %cst_47 = arith.constant 0.000000e+00 : f32
    %151 = vector.shape_cast %4 : vector<16x1xi1> to vector<16x1xi1>
    %152 = vector.broadcast %151 : vector<16x1xi1> to vector<16x32xi1>
    %153 = vector.broadcast %cst_47 : f32 to vector<16x32xf32>
    %154 = arith.select %152, %150, %153 : vector<16x32xi1>, vector<16x32xf32>
    %155 = arith.addf %148, %154 : vector<16x32xf32>
    %156 = vector.extract_strided_slice %134 {offsets = [0, 0], sizes = [1, 32], strides = [1, 1]} : vector<3x32xf32> to vector<1x32xf32>
    %157 = vector.broadcast %156 : vector<1x32xf32> to vector<16x32xf32>
    %158 = arith.addf %155, %157 : vector<16x32xf32>
    %159 = vector.extract_strided_slice %134 {offsets = [1, 0], sizes = [1, 32], strides = [1, 1]} : vector<3x32xf32> to vector<1x32xf32>
    %160 = vector.extract_strided_slice %134 {offsets = [2, 0], sizes = [1, 32], strides = [1, 1]} : vector<3x32xf32> to vector<1x32xf32>
    %cst_48 = arith.constant dense<0.000000e+00> : vector<16xf32>
    %161 = vector.multi_reduction <add>, %158, %cst_48 [1] : vector<16x32xf32> to vector<16xf32>
    %162 = vector.shape_cast %161 : vector<16xf32> to vector<16x1xf32>
    %cst_49 = arith.constant 3.200000e+01 : f32
    %163 = vector.broadcast %cst_49 : f32 to vector<16x1xf32>
    %164 = arith.divf %162, %163 : vector<16x1xf32>
    %165 = vector.broadcast %164 : vector<16x1xf32> to vector<16x32xf32>
    %166 = arith.subf %158, %165 : vector<16x32xf32>
    %167 = arith.mulf %166, %166 : vector<16x32xf32>
    %cst_50 = arith.constant dense<0.000000e+00> : vector<16xf32>
    %168 = vector.multi_reduction <add>, %167, %cst_50 [1] : vector<16x32xf32> to vector<16xf32>
    %169 = vector.shape_cast %168 : vector<16xf32> to vector<16x1xf32>
    %cst_51 = arith.constant 3.200000e+01 : f32
    %170 = vector.broadcast %cst_51 : f32 to vector<16x1xf32>
    %171 = arith.divf %169, %170 : vector<16x1xf32>
    %172 = vector.broadcast %164 : vector<16x1xf32> to vector<16x32xf32>
    %173 = arith.subf %158, %172 : vector<16x32xf32>
    %cst_52 = arith.constant 9.99999974E-5 : f32
    %174 = vector.broadcast %cst_52 : f32 to vector<16x1xf32>
    %175 = arith.addf %171, %174 : vector<16x1xf32>
    %176 = math.rsqrt %175 : vector<16x1xf32>
    %177 = vector.broadcast %176 : vector<16x1xf32> to vector<16x32xf32>
    %178 = arith.mulf %173, %177 : vector<16x32xf32>
    %179 = vector.broadcast %159 : vector<1x32xf32> to vector<16x32xf32>
    %180 = arith.mulf %178, %179 : vector<16x32xf32>
    %181 = vector.broadcast %160 : vector<1x32xf32> to vector<16x32xf32>
    %182 = arith.addf %180, %181 : vector<16x32xf32>
    %cst_53 = arith.constant 0.000000e+00 : f32
    %183 = vector.broadcast %cst_53 : f32 to vector<16x32xf32>
    %184 = arith.maximumf %182, %183 : vector<16x32xf32>
    %c0_54 = arith.constant 0 : index
    %c0_55 = arith.constant 0 : index
    %185 = vector.load %arg6[%c0_54, %c0_55] : memref<32x32xbf16, #tpu.memory_space<vmem>>, vector<32x32xbf16>
    %186 = arith.truncf %184 : vector<16x32xf32> to vector<16x32xbf16>
    %cst_56 = arith.constant dense<0.000000e+00> : vector<16x32xf32>
    %187 = tpu.matmul %186, %185, %cst_56 {dimension_numbers = #tpu.dot_dimension_numbers<[1], [0], [0], [1], [0, 0, 1, 1], [], []>} : vector<16x32xbf16>, vector<32x32xbf16>, vector<16x32xf32> -> vector<16x32xf32>
    %188 = arith.addf %28, %187 : vector<16x32xf32>
    %c0_57 = arith.constant 0 : index
    %c0_58 = arith.constant 0 : index
    %189 = vector.load %arg7[%c0_57, %c0_58] : memref<1x32xf32, #tpu.memory_space<vmem>>, vector<1x32xf32>
    %190 = vector.broadcast %189 : vector<1x32xf32> to vector<16x32xf32>
    %191 = arith.addf %188, %190 : vector<16x32xf32>
    %192 = vector.broadcast %18 : vector<16x1xf32> to vector<16x32xf32>
    %193 = arith.mulf %191, %192 : vector<16x32xf32>
    %c0_59 = arith.constant 0 : index
    %c0_60 = arith.constant 0 : index
    %c0_61 = arith.constant 0 : index
    %194 = vector.load %arg8[%c0_59, %c0_60, %c0_61] : memref<2x32x320xbf16, #tpu.memory_space<vmem>>, vector<1x32x320xbf16>
    %195 = vector.shape_cast %194 : vector<1x32x320xbf16> to vector<32x320xbf16>
    %196 = vector.extract_strided_slice %195 {offsets = [0, 0], sizes = [32, 96], strides = [1, 1]} : vector<32x320xbf16> to vector<32x96xbf16>
    %197 = vector.extract_strided_slice %195 {offsets = [0, 96], sizes = [32, 32], strides = [1, 1]} : vector<32x320xbf16> to vector<32x32xbf16>
    %198 = vector.extract_strided_slice %195 {offsets = [0, 128], sizes = [32, 192], strides = [1, 1]} : vector<32x320xbf16> to vector<32x192xbf16>
    %c0_62 = arith.constant 0 : index
    %c0_63 = arith.constant 0 : index
    %c0_64 = arith.constant 0 : index
    %199 = vector.load %arg10[%c0_62, %c0_63, %c0_64] : memref<2x8x96xf32, #tpu.memory_space<vmem>>, vector<1x8x96xf32>
    %200 = vector.shape_cast %199 : vector<1x8x96xf32> to vector<8x96xf32>
    %201 = vector.extract_strided_slice %200 {offsets = [0, 0], sizes = [1, 96], strides = [1, 1]} : vector<8x96xf32> to vector<1x96xf32>
    %202 = vector.extract_strided_slice %200 {offsets = [1, 0], sizes = [1, 32], strides = [1, 1]} : vector<8x96xf32> to vector<1x32xf32>
    %203 = vector.extract_strided_slice %200 {offsets = [2, 0], sizes = [1, 32], strides = [1, 1]} : vector<8x96xf32> to vector<1x32xf32>
    %204 = vector.extract_strided_slice %200 {offsets = [3, 0], sizes = [1, 32], strides = [1, 1]} : vector<8x96xf32> to vector<1x32xf32>
    %205 = vector.extract_strided_slice %200 {offsets = [4, 0], sizes = [1, 64], strides = [1, 1]} : vector<8x96xf32> to vector<1x64xf32>
    %206 = vector.extract_strided_slice %200 {offsets = [5, 0], sizes = [1, 32], strides = [1, 1]} : vector<8x96xf32> to vector<1x32xf32>
    %207 = vector.extract_strided_slice %200 {offsets = [6, 0], sizes = [1, 32], strides = [1, 1]} : vector<8x96xf32> to vector<1x32xf32>
    %208 = vector.extract_strided_slice %200 {offsets = [7, 0], sizes = [1, 32], strides = [1, 1]} : vector<8x96xf32> to vector<1x32xf32>
    %209 = vector.broadcast %18 : vector<16x1xf32> to vector<16x32xf32>
    %210 = arith.mulf %193, %209 : vector<16x32xf32>
    %211 = arith.truncf %210 : vector<16x32xf32> to vector<16x32xbf16>
    %cst_65 = arith.constant dense<0.000000e+00> : vector<16x96xf32>
    %212 = tpu.matmul %211, %196, %cst_65 {dimension_numbers = #tpu.dot_dimension_numbers<[1], [0], [0], [1], [0, 0, 1, 1], [], []>} : vector<16x32xbf16>, vector<32x96xbf16>, vector<16x96xf32> -> vector<16x96xf32>
    %213 = vector.broadcast %201 : vector<1x96xf32> to vector<16x96xf32>
    %214 = arith.addf %212, %213 : vector<16x96xf32>
    %215 = vector.extract_strided_slice %214 {offsets = [0, 0], sizes = [16, 16], strides = [1, 1]} : vector<16x96xf32> to vector<16x16xf32>
    %216 = vector.extract_strided_slice %214 {offsets = [0, 32], sizes = [16, 16], strides = [1, 1]} : vector<16x96xf32> to vector<16x16xf32>
    %217 = vector.extract_strided_slice %214 {offsets = [0, 64], sizes = [16, 16], strides = [1, 1]} : vector<16x96xf32> to vector<16x16xf32>
    %218 = arith.truncf %215 : vector<16x16xf32> to vector<16x16xbf16>
    %219 = arith.truncf %216 : vector<16x16xf32> to vector<16x16xbf16>
    "tpu.trace_start"() <{level = 10 : i32, message = "td,sd->ts"}> : () -> ()
    %cst_66 = arith.constant dense<0.000000e+00> : vector<16x16xf32>
    %220 = tpu.matmul %218, %219, %cst_66 {dimension_numbers = #tpu.dot_dimension_numbers<[1], [1], [0], [0], [0, 0, 1, 0], [], []>} : vector<16x16xbf16>, vector<16x16xbf16>, vector<16x16xf32> -> vector<16x16xf32>
    %cst_67 = arith.constant -1.000000e+04 : f32
    "tpu.trace_stop"() : () -> ()
    %221 = vector.broadcast %cst_67 : f32 to vector<16x16xf32>
    %222 = arith.select %21, %220, %221 : vector<16x16xi1>, vector<16x16xf32>
    %cst_68 = arith.constant dense<0xFF800000> : vector<16xf32>
    %223 = vector.multi_reduction <maximumf>, %222, %cst_68 [1] : vector<16x16xf32> to vector<16xf32>
    %224 = vector.shape_cast %223 : vector<16xf32> to vector<16x1xf32>
    %225 = vector.broadcast %224 : vector<16x1xf32> to vector<16x16xf32>
    %226 = arith.subf %222, %225 : vector<16x16xf32>
    %227 = math.exp %226 : vector<16x16xf32>
    %cst_69 = arith.constant dense<0.000000e+00> : vector<16xf32>
    %228 = vector.multi_reduction <add>, %227, %cst_69 [1] : vector<16x16xf32> to vector<16xf32>
    %229 = vector.shape_cast %228 : vector<16xf32> to vector<16x1xf32>
    %230 = tpu.reciprocal %229 {approx = true} : vector<16x1xf32> -> vector<16x1xf32>
    %231 = vector.broadcast %230 : vector<16x1xf32> to vector<16x16xf32>
    %232 = arith.mulf %227, %231 : vector<16x16xf32>
    %233 = arith.truncf %232 : vector<16x16xf32> to vector<16x16xbf16>
    %234 = arith.truncf %217 : vector<16x16xf32> to vector<16x16xbf16>
    %cst_70 = arith.constant dense<0.000000e+00> : vector<16x16xf32>
    %235 = tpu.matmul %233, %234, %cst_70 {dimension_numbers = #tpu.dot_dimension_numbers<[1], [0], [0], [1], [0, 0, 1, 1], [], []>} : vector<16x16xbf16>, vector<16x16xbf16>, vector<16x16xf32> -> vector<16x16xf32>
    %236 = vector.extract_strided_slice %214 {offsets = [0, 16], sizes = [16, 16], strides = [1, 1]} : vector<16x96xf32> to vector<16x16xf32>
    %237 = vector.extract_strided_slice %214 {offsets = [0, 48], sizes = [16, 16], strides = [1, 1]} : vector<16x96xf32> to vector<16x16xf32>
    %238 = vector.extract_strided_slice %214 {offsets = [0, 80], sizes = [16, 16], strides = [1, 1]} : vector<16x96xf32> to vector<16x16xf32>
    %239 = arith.truncf %236 : vector<16x16xf32> to vector<16x16xbf16>
    %240 = arith.truncf %237 : vector<16x16xf32> to vector<16x16xbf16>
    "tpu.trace_start"() <{level = 10 : i32, message = "td,sd->ts"}> : () -> ()
    %cst_71 = arith.constant dense<0.000000e+00> : vector<16x16xf32>
    %241 = tpu.matmul %239, %240, %cst_71 {dimension_numbers = #tpu.dot_dimension_numbers<[1], [1], [0], [0], [0, 0, 1, 0], [], []>} : vector<16x16xbf16>, vector<16x16xbf16>, vector<16x16xf32> -> vector<16x16xf32>
    %cst_72 = arith.constant -1.000000e+04 : f32
    "tpu.trace_stop"() : () -> ()
    %242 = vector.broadcast %cst_72 : f32 to vector<16x16xf32>
    %243 = arith.select %21, %241, %242 : vector<16x16xi1>, vector<16x16xf32>
    %cst_73 = arith.constant dense<0xFF800000> : vector<16xf32>
    %244 = vector.multi_reduction <maximumf>, %243, %cst_73 [1] : vector<16x16xf32> to vector<16xf32>
    %245 = vector.shape_cast %244 : vector<16xf32> to vector<16x1xf32>
    %246 = vector.broadcast %245 : vector<16x1xf32> to vector<16x16xf32>
    %247 = arith.subf %243, %246 : vector<16x16xf32>
    %248 = math.exp %247 : vector<16x16xf32>
    %cst_74 = arith.constant dense<0.000000e+00> : vector<16xf32>
    %249 = vector.multi_reduction <add>, %248, %cst_74 [1] : vector<16x16xf32> to vector<16xf32>
    %250 = vector.shape_cast %249 : vector<16xf32> to vector<16x1xf32>
    %251 = tpu.reciprocal %250 {approx = true} : vector<16x1xf32> -> vector<16x1xf32>
    %252 = vector.broadcast %251 : vector<16x1xf32> to vector<16x16xf32>
    %253 = arith.mulf %248, %252 : vector<16x16xf32>
    %254 = arith.truncf %253 : vector<16x16xf32> to vector<16x16xbf16>
    %255 = arith.truncf %238 : vector<16x16xf32> to vector<16x16xbf16>
    %cst_75 = arith.constant dense<0.000000e+00> : vector<16x16xf32>
    %256 = tpu.matmul %254, %255, %cst_75 {dimension_numbers = #tpu.dot_dimension_numbers<[1], [0], [0], [1], [0, 0, 1, 1], [], []>} : vector<16x16xbf16>, vector<16x16xbf16>, vector<16x16xf32> -> vector<16x16xf32>
    %257 = tpu.concatenate %235, %256 in 1 : vector<16x16xf32>, vector<16x16xf32> -> vector<16x32xf32>
    %258 = arith.truncf %257 : vector<16x32xf32> to vector<16x32xbf16>
    %cst_76 = arith.constant dense<0.000000e+00> : vector<16x32xf32>
    %259 = tpu.matmul %258, %197, %cst_76 {dimension_numbers = #tpu.dot_dimension_numbers<[1], [0], [0], [1], [0, 0, 1, 1], [], []>} : vector<16x32xbf16>, vector<32x32xbf16>, vector<16x32xf32> -> vector<16x32xf32>
    %260 = vector.broadcast %202 : vector<1x32xf32> to vector<16x32xf32>
    %261 = arith.addf %259, %260 : vector<16x32xf32>
    %262 = arith.addf %210, %261 : vector<16x32xf32>
    %cst_77 = arith.constant dense<0.000000e+00> : vector<16xf32>
    %263 = vector.multi_reduction <add>, %262, %cst_77 [1] : vector<16x32xf32> to vector<16xf32>
    %264 = vector.shape_cast %263 : vector<16xf32> to vector<16x1xf32>
    %cst_78 = arith.constant 3.200000e+01 : f32
    %265 = vector.broadcast %cst_78 : f32 to vector<16x1xf32>
    %266 = arith.divf %264, %265 : vector<16x1xf32>
    %267 = vector.broadcast %266 : vector<16x1xf32> to vector<16x32xf32>
    %268 = arith.subf %262, %267 : vector<16x32xf32>
    %269 = arith.mulf %268, %268 : vector<16x32xf32>
    %cst_79 = arith.constant dense<0.000000e+00> : vector<16xf32>
    %270 = vector.multi_reduction <add>, %269, %cst_79 [1] : vector<16x32xf32> to vector<16xf32>
    %271 = vector.shape_cast %270 : vector<16xf32> to vector<16x1xf32>
    %cst_80 = arith.constant 3.200000e+01 : f32
    %272 = vector.broadcast %cst_80 : f32 to vector<16x1xf32>
    %273 = arith.divf %271, %272 : vector<16x1xf32>
    %274 = vector.broadcast %266 : vector<16x1xf32> to vector<16x32xf32>
    %275 = arith.subf %262, %274 : vector<16x32xf32>
    %cst_81 = arith.constant 9.99999974E-5 : f32
    %276 = vector.broadcast %cst_81 : f32 to vector<16x1xf32>
    %277 = arith.addf %273, %276 : vector<16x1xf32>
    %278 = math.rsqrt %277 : vector<16x1xf32>
    %279 = vector.broadcast %278 : vector<16x1xf32> to vector<16x32xf32>
    %280 = arith.mulf %275, %279 : vector<16x32xf32>
    %281 = vector.broadcast %203 : vector<1x32xf32> to vector<16x32xf32>
    %282 = arith.mulf %280, %281 : vector<16x32xf32>
    %283 = vector.broadcast %204 : vector<1x32xf32> to vector<16x32xf32>
    %284 = arith.addf %282, %283 : vector<16x32xf32>
    %c0_82 = arith.constant 0 : index
    %c0_83 = arith.constant 0 : index
    %c0_84 = arith.constant 0 : index
    %285 = vector.load %arg9[%c0_82, %c0_83, %c0_84] : memref<2x64x96xbf16, #tpu.memory_space<vmem>>, vector<1x64x96xbf16>
    %286 = vector.shape_cast %285 : vector<1x64x96xbf16> to vector<64x96xbf16>
    %287 = vector.broadcast %18 : vector<16x1xf32> to vector<16x32xf32>
    %288 = arith.mulf %284, %287 : vector<16x32xf32>
    %289 = arith.truncf %288 : vector<16x32xf32> to vector<16x32xbf16>
    %cst_85 = arith.constant dense<0.000000e+00> : vector<16x192xf32>
    %290 = tpu.matmul %289, %198, %cst_85 {dimension_numbers = #tpu.dot_dimension_numbers<[1], [0], [0], [1], [0, 0, 1, 1], [], []>} : vector<16x32xbf16>, vector<32x192xbf16>, vector<16x192xf32> -> vector<16x192xf32>
    %291 = vector.extract_strided_slice %290 {offsets = [0, 0], sizes = [16, 64], strides = [1, 1]} : vector<16x192xf32> to vector<16x64xf32>
    %c1_i32_86 = arith.constant 1 : i32
    %292 = tpu.dynamic_rotate %291 by %c1_i32_86 dim 0 : vector<16x64xf32>, i32 -> vector<16x64xf32>
    %cst_87 = arith.constant 0.000000e+00 : f32
    %293 = vector.shape_cast %2 : vector<16x1xi1> to vector<16x1xi1>
    %294 = vector.broadcast %293 : vector<16x1xi1> to vector<16x64xi1>
    %295 = vector.broadcast %cst_87 : f32 to vector<16x64xf32>
    %296 = arith.select %294, %292, %295 : vector<16x64xi1>, vector<16x64xf32>
    %297 = vector.extract_strided_slice %290 {offsets = [0, 64], sizes = [16, 64], strides = [1, 1]} : vector<16x192xf32> to vector<16x64xf32>
    %298 = arith.addf %296, %297 : vector<16x64xf32>
    %299 = vector.extract_strided_slice %290 {offsets = [0, 128], sizes = [16, 64], strides = [1, 1]} : vector<16x192xf32> to vector<16x64xf32>
    %c15_i32_88 = arith.constant 15 : i32
    %300 = tpu.dynamic_rotate %299 by %c15_i32_88 dim 0 : vector<16x64xf32>, i32 -> vector<16x64xf32>
    %cst_89 = arith.constant 0.000000e+00 : f32
    %301 = vector.shape_cast %4 : vector<16x1xi1> to vector<16x1xi1>
    %302 = vector.broadcast %301 : vector<16x1xi1> to vector<16x64xi1>
    %303 = vector.broadcast %cst_89 : f32 to vector<16x64xf32>
    %304 = arith.select %302, %300, %303 : vector<16x64xi1>, vector<16x64xf32>
    %305 = arith.addf %298, %304 : vector<16x64xf32>
    %306 = vector.broadcast %205 : vector<1x64xf32> to vector<16x64xf32>
    %307 = arith.addf %305, %306 : vector<16x64xf32>
    %cst_90 = arith.constant 0.000000e+00 : f32
    %308 = vector.broadcast %cst_90 : f32 to vector<16x64xf32>
    %309 = arith.maximumf %307, %308 : vector<16x64xf32>
    %310 = vector.broadcast %18 : vector<16x1xf32> to vector<16x64xf32>
    %311 = arith.mulf %309, %310 : vector<16x64xf32>
    %312 = arith.truncf %311 : vector<16x64xf32> to vector<16x64xbf16>
    %cst_91 = arith.constant dense<0.000000e+00> : vector<16x96xf32>
    %313 = tpu.matmul %312, %286, %cst_91 {dimension_numbers = #tpu.dot_dimension_numbers<[1], [0], [0], [1], [0, 0, 1, 1], [], []>} : vector<16x64xbf16>, vector<64x96xbf16>, vector<16x96xf32> -> vector<16x96xf32>
    %314 = vector.extract_strided_slice %313 {offsets = [0, 0], sizes = [16, 32], strides = [1, 1]} : vector<16x96xf32> to vector<16x32xf32>
    %c1_i32_92 = arith.constant 1 : i32
    %315 = tpu.dynamic_rotate %314 by %c1_i32_92 dim 0 : vector<16x32xf32>, i32 -> vector<16x32xf32>
    %cst_93 = arith.constant 0.000000e+00 : f32
    %316 = vector.shape_cast %2 : vector<16x1xi1> to vector<16x1xi1>
    %317 = vector.broadcast %316 : vector<16x1xi1> to vector<16x32xi1>
    %318 = vector.broadcast %cst_93 : f32 to vector<16x32xf32>
    %319 = arith.select %317, %315, %318 : vector<16x32xi1>, vector<16x32xf32>
    %320 = vector.extract_strided_slice %313 {offsets = [0, 32], sizes = [16, 32], strides = [1, 1]} : vector<16x96xf32> to vector<16x32xf32>
    %321 = arith.addf %319, %320 : vector<16x32xf32>
    %322 = vector.extract_strided_slice %313 {offsets = [0, 64], sizes = [16, 32], strides = [1, 1]} : vector<16x96xf32> to vector<16x32xf32>
    %c15_i32_94 = arith.constant 15 : i32
    %323 = tpu.dynamic_rotate %322 by %c15_i32_94 dim 0 : vector<16x32xf32>, i32 -> vector<16x32xf32>
    %cst_95 = arith.constant 0.000000e+00 : f32
    %324 = vector.shape_cast %4 : vector<16x1xi1> to vector<16x1xi1>
    %325 = vector.broadcast %324 : vector<16x1xi1> to vector<16x32xi1>
    %326 = vector.broadcast %cst_95 : f32 to vector<16x32xf32>
    %327 = arith.select %325, %323, %326 : vector<16x32xi1>, vector<16x32xf32>
    %328 = arith.addf %321, %327 : vector<16x32xf32>
    %329 = vector.broadcast %206 : vector<1x32xf32> to vector<16x32xf32>
    %330 = arith.addf %328, %329 : vector<16x32xf32>
    %331 = vector.broadcast %18 : vector<16x1xf32> to vector<16x32xf32>
    %332 = arith.mulf %330, %331 : vector<16x32xf32>
    %333 = arith.addf %284, %332 : vector<16x32xf32>
    %cst_96 = arith.constant dense<0.000000e+00> : vector<16xf32>
    %334 = vector.multi_reduction <add>, %333, %cst_96 [1] : vector<16x32xf32> to vector<16xf32>
    %335 = vector.shape_cast %334 : vector<16xf32> to vector<16x1xf32>
    %cst_97 = arith.constant 3.200000e+01 : f32
    %336 = vector.broadcast %cst_97 : f32 to vector<16x1xf32>
    %337 = arith.divf %335, %336 : vector<16x1xf32>
    %338 = vector.broadcast %337 : vector<16x1xf32> to vector<16x32xf32>
    %339 = arith.subf %333, %338 : vector<16x32xf32>
    %340 = arith.mulf %339, %339 : vector<16x32xf32>
    %cst_98 = arith.constant dense<0.000000e+00> : vector<16xf32>
    %341 = vector.multi_reduction <add>, %340, %cst_98 [1] : vector<16x32xf32> to vector<16xf32>
    %342 = vector.shape_cast %341 : vector<16xf32> to vector<16x1xf32>
    %cst_99 = arith.constant 3.200000e+01 : f32
    %343 = vector.broadcast %cst_99 : f32 to vector<16x1xf32>
    %344 = arith.divf %342, %343 : vector<16x1xf32>
    %345 = vector.broadcast %337 : vector<16x1xf32> to vector<16x32xf32>
    %346 = arith.subf %333, %345 : vector<16x32xf32>
    %cst_100 = arith.constant 9.99999974E-5 : f32
    %347 = vector.broadcast %cst_100 : f32 to vector<16x1xf32>
    %348 = arith.addf %344, %347 : vector<16x1xf32>
    %349 = math.rsqrt %348 : vector<16x1xf32>
    %350 = vector.broadcast %349 : vector<16x1xf32> to vector<16x32xf32>
    %351 = arith.mulf %346, %350 : vector<16x32xf32>
    %352 = vector.broadcast %207 : vector<1x32xf32> to vector<16x32xf32>
    %353 = arith.mulf %351, %352 : vector<16x32xf32>
    %354 = vector.broadcast %208 : vector<1x32xf32> to vector<16x32xf32>
    %355 = arith.addf %353, %354 : vector<16x32xf32>
    %c1_101 = arith.constant 1 : index
    %c0_102 = arith.constant 0 : index
    %c0_103 = arith.constant 0 : index
    %356 = vector.load %arg8[%c1_101, %c0_102, %c0_103] : memref<2x32x320xbf16, #tpu.memory_space<vmem>>, vector<1x32x320xbf16>
    %357 = vector.shape_cast %356 : vector<1x32x320xbf16> to vector<32x320xbf16>
    %358 = vector.extract_strided_slice %357 {offsets = [0, 0], sizes = [32, 96], strides = [1, 1]} : vector<32x320xbf16> to vector<32x96xbf16>
    %359 = vector.extract_strided_slice %357 {offsets = [0, 96], sizes = [32, 32], strides = [1, 1]} : vector<32x320xbf16> to vector<32x32xbf16>
    %360 = vector.extract_strided_slice %357 {offsets = [0, 128], sizes = [32, 192], strides = [1, 1]} : vector<32x320xbf16> to vector<32x192xbf16>
    %c1_104 = arith.constant 1 : index
    %c0_105 = arith.constant 0 : index
    %c0_106 = arith.constant 0 : index
    %361 = vector.load %arg10[%c1_104, %c0_105, %c0_106] : memref<2x8x96xf32, #tpu.memory_space<vmem>>, vector<1x8x96xf32>
    %362 = vector.shape_cast %361 : vector<1x8x96xf32> to vector<8x96xf32>
    %363 = vector.extract_strided_slice %362 {offsets = [0, 0], sizes = [1, 96], strides = [1, 1]} : vector<8x96xf32> to vector<1x96xf32>
    %364 = vector.extract_strided_slice %362 {offsets = [1, 0], sizes = [1, 32], strides = [1, 1]} : vector<8x96xf32> to vector<1x32xf32>
    %365 = vector.extract_strided_slice %362 {offsets = [2, 0], sizes = [1, 32], strides = [1, 1]} : vector<8x96xf32> to vector<1x32xf32>
    %366 = vector.extract_strided_slice %362 {offsets = [3, 0], sizes = [1, 32], strides = [1, 1]} : vector<8x96xf32> to vector<1x32xf32>
    %367 = vector.extract_strided_slice %362 {offsets = [4, 0], sizes = [1, 64], strides = [1, 1]} : vector<8x96xf32> to vector<1x64xf32>
    %368 = vector.extract_strided_slice %362 {offsets = [5, 0], sizes = [1, 32], strides = [1, 1]} : vector<8x96xf32> to vector<1x32xf32>
    %369 = vector.extract_strided_slice %362 {offsets = [6, 0], sizes = [1, 32], strides = [1, 1]} : vector<8x96xf32> to vector<1x32xf32>
    %370 = vector.extract_strided_slice %362 {offsets = [7, 0], sizes = [1, 32], strides = [1, 1]} : vector<8x96xf32> to vector<1x32xf32>
    %371 = vector.broadcast %18 : vector<16x1xf32> to vector<16x32xf32>
    %372 = arith.mulf %355, %371 : vector<16x32xf32>
    %373 = arith.truncf %372 : vector<16x32xf32> to vector<16x32xbf16>
    %cst_107 = arith.constant dense<0.000000e+00> : vector<16x96xf32>
    %374 = tpu.matmul %373, %358, %cst_107 {dimension_numbers = #tpu.dot_dimension_numbers<[1], [0], [0], [1], [0, 0, 1, 1], [], []>} : vector<16x32xbf16>, vector<32x96xbf16>, vector<16x96xf32> -> vector<16x96xf32>
    %375 = vector.broadcast %363 : vector<1x96xf32> to vector<16x96xf32>
    %376 = arith.addf %374, %375 : vector<16x96xf32>
    %377 = vector.extract_strided_slice %376 {offsets = [0, 0], sizes = [16, 16], strides = [1, 1]} : vector<16x96xf32> to vector<16x16xf32>
    %378 = vector.extract_strided_slice %376 {offsets = [0, 32], sizes = [16, 16], strides = [1, 1]} : vector<16x96xf32> to vector<16x16xf32>
    %379 = vector.extract_strided_slice %376 {offsets = [0, 64], sizes = [16, 16], strides = [1, 1]} : vector<16x96xf32> to vector<16x16xf32>
    %380 = arith.truncf %377 : vector<16x16xf32> to vector<16x16xbf16>
    %381 = arith.truncf %378 : vector<16x16xf32> to vector<16x16xbf16>
    "tpu.trace_start"() <{level = 10 : i32, message = "td,sd->ts"}> : () -> ()
    %cst_108 = arith.constant dense<0.000000e+00> : vector<16x16xf32>
    %382 = tpu.matmul %380, %381, %cst_108 {dimension_numbers = #tpu.dot_dimension_numbers<[1], [1], [0], [0], [0, 0, 1, 0], [], []>} : vector<16x16xbf16>, vector<16x16xbf16>, vector<16x16xf32> -> vector<16x16xf32>
    %cst_109 = arith.constant -1.000000e+04 : f32
    "tpu.trace_stop"() : () -> ()
    %383 = vector.broadcast %cst_109 : f32 to vector<16x16xf32>
    %384 = arith.select %21, %382, %383 : vector<16x16xi1>, vector<16x16xf32>
    %cst_110 = arith.constant dense<0xFF800000> : vector<16xf32>
    %385 = vector.multi_reduction <maximumf>, %384, %cst_110 [1] : vector<16x16xf32> to vector<16xf32>
    %386 = vector.shape_cast %385 : vector<16xf32> to vector<16x1xf32>
    %387 = vector.broadcast %386 : vector<16x1xf32> to vector<16x16xf32>
    %388 = arith.subf %384, %387 : vector<16x16xf32>
    %389 = math.exp %388 : vector<16x16xf32>
    %cst_111 = arith.constant dense<0.000000e+00> : vector<16xf32>
    %390 = vector.multi_reduction <add>, %389, %cst_111 [1] : vector<16x16xf32> to vector<16xf32>
    %391 = vector.shape_cast %390 : vector<16xf32> to vector<16x1xf32>
    %392 = tpu.reciprocal %391 {approx = true} : vector<16x1xf32> -> vector<16x1xf32>
    %393 = vector.broadcast %392 : vector<16x1xf32> to vector<16x16xf32>
    %394 = arith.mulf %389, %393 : vector<16x16xf32>
    %395 = arith.truncf %394 : vector<16x16xf32> to vector<16x16xbf16>
    %396 = arith.truncf %379 : vector<16x16xf32> to vector<16x16xbf16>
    %cst_112 = arith.constant dense<0.000000e+00> : vector<16x16xf32>
    %397 = tpu.matmul %395, %396, %cst_112 {dimension_numbers = #tpu.dot_dimension_numbers<[1], [0], [0], [1], [0, 0, 1, 1], [], []>} : vector<16x16xbf16>, vector<16x16xbf16>, vector<16x16xf32> -> vector<16x16xf32>
    %398 = vector.extract_strided_slice %376 {offsets = [0, 16], sizes = [16, 16], strides = [1, 1]} : vector<16x96xf32> to vector<16x16xf32>
    %399 = vector.extract_strided_slice %376 {offsets = [0, 48], sizes = [16, 16], strides = [1, 1]} : vector<16x96xf32> to vector<16x16xf32>
    %400 = vector.extract_strided_slice %376 {offsets = [0, 80], sizes = [16, 16], strides = [1, 1]} : vector<16x96xf32> to vector<16x16xf32>
    %401 = arith.truncf %398 : vector<16x16xf32> to vector<16x16xbf16>
    %402 = arith.truncf %399 : vector<16x16xf32> to vector<16x16xbf16>
    "tpu.trace_start"() <{level = 10 : i32, message = "td,sd->ts"}> : () -> ()
    %cst_113 = arith.constant dense<0.000000e+00> : vector<16x16xf32>
    %403 = tpu.matmul %401, %402, %cst_113 {dimension_numbers = #tpu.dot_dimension_numbers<[1], [1], [0], [0], [0, 0, 1, 0], [], []>} : vector<16x16xbf16>, vector<16x16xbf16>, vector<16x16xf32> -> vector<16x16xf32>
    %cst_114 = arith.constant -1.000000e+04 : f32
    "tpu.trace_stop"() : () -> ()
    %404 = vector.broadcast %cst_114 : f32 to vector<16x16xf32>
    %405 = arith.select %21, %403, %404 : vector<16x16xi1>, vector<16x16xf32>
    %cst_115 = arith.constant dense<0xFF800000> : vector<16xf32>
    %406 = vector.multi_reduction <maximumf>, %405, %cst_115 [1] : vector<16x16xf32> to vector<16xf32>
    %407 = vector.shape_cast %406 : vector<16xf32> to vector<16x1xf32>
    %408 = vector.broadcast %407 : vector<16x1xf32> to vector<16x16xf32>
    %409 = arith.subf %405, %408 : vector<16x16xf32>
    %410 = math.exp %409 : vector<16x16xf32>
    %cst_116 = arith.constant dense<0.000000e+00> : vector<16xf32>
    %411 = vector.multi_reduction <add>, %410, %cst_116 [1] : vector<16x16xf32> to vector<16xf32>
    %412 = vector.shape_cast %411 : vector<16xf32> to vector<16x1xf32>
    %413 = tpu.reciprocal %412 {approx = true} : vector<16x1xf32> -> vector<16x1xf32>
    %414 = vector.broadcast %413 : vector<16x1xf32> to vector<16x16xf32>
    %415 = arith.mulf %410, %414 : vector<16x16xf32>
    %416 = arith.truncf %415 : vector<16x16xf32> to vector<16x16xbf16>
    %417 = arith.truncf %400 : vector<16x16xf32> to vector<16x16xbf16>
    %cst_117 = arith.constant dense<0.000000e+00> : vector<16x16xf32>
    %418 = tpu.matmul %416, %417, %cst_117 {dimension_numbers = #tpu.dot_dimension_numbers<[1], [0], [0], [1], [0, 0, 1, 1], [], []>} : vector<16x16xbf16>, vector<16x16xbf16>, vector<16x16xf32> -> vector<16x16xf32>
    %419 = tpu.concatenate %397, %418 in 1 : vector<16x16xf32>, vector<16x16xf32> -> vector<16x32xf32>
    %420 = arith.truncf %419 : vector<16x32xf32> to vector<16x32xbf16>
    %cst_118 = arith.constant dense<0.000000e+00> : vector<16x32xf32>
    %421 = tpu.matmul %420, %359, %cst_118 {dimension_numbers = #tpu.dot_dimension_numbers<[1], [0], [0], [1], [0, 0, 1, 1], [], []>} : vector<16x32xbf16>, vector<32x32xbf16>, vector<16x32xf32> -> vector<16x32xf32>
    %422 = vector.broadcast %364 : vector<1x32xf32> to vector<16x32xf32>
    %423 = arith.addf %421, %422 : vector<16x32xf32>
    %424 = arith.addf %372, %423 : vector<16x32xf32>
    %cst_119 = arith.constant dense<0.000000e+00> : vector<16xf32>
    %425 = vector.multi_reduction <add>, %424, %cst_119 [1] : vector<16x32xf32> to vector<16xf32>
    %426 = vector.shape_cast %425 : vector<16xf32> to vector<16x1xf32>
    %cst_120 = arith.constant 3.200000e+01 : f32
    %427 = vector.broadcast %cst_120 : f32 to vector<16x1xf32>
    %428 = arith.divf %426, %427 : vector<16x1xf32>
    %429 = vector.broadcast %428 : vector<16x1xf32> to vector<16x32xf32>
    %430 = arith.subf %424, %429 : vector<16x32xf32>
    %431 = arith.mulf %430, %430 : vector<16x32xf32>
    %cst_121 = arith.constant dense<0.000000e+00> : vector<16xf32>
    %432 = vector.multi_reduction <add>, %431, %cst_121 [1] : vector<16x32xf32> to vector<16xf32>
    %433 = vector.shape_cast %432 : vector<16xf32> to vector<16x1xf32>
    %cst_122 = arith.constant 3.200000e+01 : f32
    %434 = vector.broadcast %cst_122 : f32 to vector<16x1xf32>
    %435 = arith.divf %433, %434 : vector<16x1xf32>
    %436 = vector.broadcast %428 : vector<16x1xf32> to vector<16x32xf32>
    %437 = arith.subf %424, %436 : vector<16x32xf32>
    %cst_123 = arith.constant 9.99999974E-5 : f32
    %438 = vector.broadcast %cst_123 : f32 to vector<16x1xf32>
    %439 = arith.addf %435, %438 : vector<16x1xf32>
    %440 = math.rsqrt %439 : vector<16x1xf32>
    %441 = vector.broadcast %440 : vector<16x1xf32> to vector<16x32xf32>
    %442 = arith.mulf %437, %441 : vector<16x32xf32>
    %443 = vector.broadcast %365 : vector<1x32xf32> to vector<16x32xf32>
    %444 = arith.mulf %442, %443 : vector<16x32xf32>
    %445 = vector.broadcast %366 : vector<1x32xf32> to vector<16x32xf32>
    %446 = arith.addf %444, %445 : vector<16x32xf32>
    %c1_124 = arith.constant 1 : index
    %c0_125 = arith.constant 0 : index
    %c0_126 = arith.constant 0 : index
    %447 = vector.load %arg9[%c1_124, %c0_125, %c0_126] : memref<2x64x96xbf16, #tpu.memory_space<vmem>>, vector<1x64x96xbf16>
    %448 = vector.shape_cast %447 : vector<1x64x96xbf16> to vector<64x96xbf16>
    %449 = vector.broadcast %18 : vector<16x1xf32> to vector<16x32xf32>
    %450 = arith.mulf %446, %449 : vector<16x32xf32>
    %451 = arith.truncf %450 : vector<16x32xf32> to vector<16x32xbf16>
    %cst_127 = arith.constant dense<0.000000e+00> : vector<16x192xf32>
    %452 = tpu.matmul %451, %360, %cst_127 {dimension_numbers = #tpu.dot_dimension_numbers<[1], [0], [0], [1], [0, 0, 1, 1], [], []>} : vector<16x32xbf16>, vector<32x192xbf16>, vector<16x192xf32> -> vector<16x192xf32>
    %453 = vector.extract_strided_slice %452 {offsets = [0, 0], sizes = [16, 64], strides = [1, 1]} : vector<16x192xf32> to vector<16x64xf32>
    %c1_i32_128 = arith.constant 1 : i32
    %454 = tpu.dynamic_rotate %453 by %c1_i32_128 dim 0 : vector<16x64xf32>, i32 -> vector<16x64xf32>
    %cst_129 = arith.constant 0.000000e+00 : f32
    %455 = vector.shape_cast %2 : vector<16x1xi1> to vector<16x1xi1>
    %456 = vector.broadcast %455 : vector<16x1xi1> to vector<16x64xi1>
    %457 = vector.broadcast %cst_129 : f32 to vector<16x64xf32>
    %458 = arith.select %456, %454, %457 : vector<16x64xi1>, vector<16x64xf32>
    %459 = vector.extract_strided_slice %452 {offsets = [0, 64], sizes = [16, 64], strides = [1, 1]} : vector<16x192xf32> to vector<16x64xf32>
    %460 = arith.addf %458, %459 : vector<16x64xf32>
    %461 = vector.extract_strided_slice %452 {offsets = [0, 128], sizes = [16, 64], strides = [1, 1]} : vector<16x192xf32> to vector<16x64xf32>
    %c15_i32_130 = arith.constant 15 : i32
    %462 = tpu.dynamic_rotate %461 by %c15_i32_130 dim 0 : vector<16x64xf32>, i32 -> vector<16x64xf32>
    %cst_131 = arith.constant 0.000000e+00 : f32
    %463 = vector.shape_cast %4 : vector<16x1xi1> to vector<16x1xi1>
    %464 = vector.broadcast %463 : vector<16x1xi1> to vector<16x64xi1>
    %465 = vector.broadcast %cst_131 : f32 to vector<16x64xf32>
    %466 = arith.select %464, %462, %465 : vector<16x64xi1>, vector<16x64xf32>
    %467 = arith.addf %460, %466 : vector<16x64xf32>
    %468 = vector.broadcast %367 : vector<1x64xf32> to vector<16x64xf32>
    %469 = arith.addf %467, %468 : vector<16x64xf32>
    %cst_132 = arith.constant 0.000000e+00 : f32
    %470 = vector.broadcast %cst_132 : f32 to vector<16x64xf32>
    %471 = arith.maximumf %469, %470 : vector<16x64xf32>
    %472 = vector.broadcast %18 : vector<16x1xf32> to vector<16x64xf32>
    %473 = arith.mulf %471, %472 : vector<16x64xf32>
    %474 = arith.truncf %473 : vector<16x64xf32> to vector<16x64xbf16>
    %cst_133 = arith.constant dense<0.000000e+00> : vector<16x96xf32>
    %475 = tpu.matmul %474, %448, %cst_133 {dimension_numbers = #tpu.dot_dimension_numbers<[1], [0], [0], [1], [0, 0, 1, 1], [], []>} : vector<16x64xbf16>, vector<64x96xbf16>, vector<16x96xf32> -> vector<16x96xf32>
    %476 = vector.extract_strided_slice %475 {offsets = [0, 0], sizes = [16, 32], strides = [1, 1]} : vector<16x96xf32> to vector<16x32xf32>
    %c1_i32_134 = arith.constant 1 : i32
    %477 = tpu.dynamic_rotate %476 by %c1_i32_134 dim 0 : vector<16x32xf32>, i32 -> vector<16x32xf32>
    %cst_135 = arith.constant 0.000000e+00 : f32
    %478 = vector.shape_cast %2 : vector<16x1xi1> to vector<16x1xi1>
    %479 = vector.broadcast %478 : vector<16x1xi1> to vector<16x32xi1>
    %480 = vector.broadcast %cst_135 : f32 to vector<16x32xf32>
    %481 = arith.select %479, %477, %480 : vector<16x32xi1>, vector<16x32xf32>
    %482 = vector.extract_strided_slice %475 {offsets = [0, 32], sizes = [16, 32], strides = [1, 1]} : vector<16x96xf32> to vector<16x32xf32>
    %483 = arith.addf %481, %482 : vector<16x32xf32>
    %484 = vector.extract_strided_slice %475 {offsets = [0, 64], sizes = [16, 32], strides = [1, 1]} : vector<16x96xf32> to vector<16x32xf32>
    %c15_i32_136 = arith.constant 15 : i32
    %485 = tpu.dynamic_rotate %484 by %c15_i32_136 dim 0 : vector<16x32xf32>, i32 -> vector<16x32xf32>
    %cst_137 = arith.constant 0.000000e+00 : f32
    %486 = vector.shape_cast %4 : vector<16x1xi1> to vector<16x1xi1>
    %487 = vector.broadcast %486 : vector<16x1xi1> to vector<16x32xi1>
    %488 = vector.broadcast %cst_137 : f32 to vector<16x32xf32>
    %489 = arith.select %487, %485, %488 : vector<16x32xi1>, vector<16x32xf32>
    %490 = arith.addf %483, %489 : vector<16x32xf32>
    %491 = vector.broadcast %368 : vector<1x32xf32> to vector<16x32xf32>
    %492 = arith.addf %490, %491 : vector<16x32xf32>
    %493 = vector.broadcast %18 : vector<16x1xf32> to vector<16x32xf32>
    %494 = arith.mulf %492, %493 : vector<16x32xf32>
    %495 = arith.addf %446, %494 : vector<16x32xf32>
    %cst_138 = arith.constant dense<0.000000e+00> : vector<16xf32>
    %496 = vector.multi_reduction <add>, %495, %cst_138 [1] : vector<16x32xf32> to vector<16xf32>
    %497 = vector.shape_cast %496 : vector<16xf32> to vector<16x1xf32>
    %cst_139 = arith.constant 3.200000e+01 : f32
    %498 = vector.broadcast %cst_139 : f32 to vector<16x1xf32>
    %499 = arith.divf %497, %498 : vector<16x1xf32>
    %500 = vector.broadcast %499 : vector<16x1xf32> to vector<16x32xf32>
    %501 = arith.subf %495, %500 : vector<16x32xf32>
    %502 = arith.mulf %501, %501 : vector<16x32xf32>
    %cst_140 = arith.constant dense<0.000000e+00> : vector<16xf32>
    %503 = vector.multi_reduction <add>, %502, %cst_140 [1] : vector<16x32xf32> to vector<16xf32>
    %504 = vector.shape_cast %503 : vector<16xf32> to vector<16x1xf32>
    %cst_141 = arith.constant 3.200000e+01 : f32
    %505 = vector.broadcast %cst_141 : f32 to vector<16x1xf32>
    %506 = arith.divf %504, %505 : vector<16x1xf32>
    %507 = vector.broadcast %499 : vector<16x1xf32> to vector<16x32xf32>
    %508 = arith.subf %495, %507 : vector<16x32xf32>
    %cst_142 = arith.constant 9.99999974E-5 : f32
    %509 = vector.broadcast %cst_142 : f32 to vector<16x1xf32>
    %510 = arith.addf %506, %509 : vector<16x1xf32>
    %511 = math.rsqrt %510 : vector<16x1xf32>
    %512 = vector.broadcast %511 : vector<16x1xf32> to vector<16x32xf32>
    %513 = arith.mulf %508, %512 : vector<16x32xf32>
    %514 = vector.broadcast %369 : vector<1x32xf32> to vector<16x32xf32>
    %515 = arith.mulf %513, %514 : vector<16x32xf32>
    %516 = vector.broadcast %370 : vector<1x32xf32> to vector<16x32xf32>
    %517 = arith.addf %515, %516 : vector<16x32xf32>
    %518 = vector.broadcast %18 : vector<16x1xf32> to vector<16x32xf32>
    %519 = arith.mulf %517, %518 : vector<16x32xf32>
    %520 = tpu.transpose %519, [1, 0] : vector<16x32xf32> -> vector<32x16xf32>
    %c0_143 = arith.constant 0 : index
    %c0_144 = arith.constant 0 : index
    %c0_145 = arith.constant 0 : index
    %521 = vector.load %arg11[%c0_143, %c0_144, %c0_145] : memref<1x32x16xf32, #tpu.memory_space<vmem>>, vector<1x32x16xf32>
    %522 = vector.shape_cast %521 : vector<1x32x16xf32> to vector<32x16xf32>
    %523 = vector.shape_cast %520 : vector<32x16xf32> to vector<1x32x16xf32>
    tpu.vector_store %arg11[%c0_143, %c0_144, %c0_145], %523 {strides = array<i32>} : memref<1x32x16xf32, #tpu.memory_space<vmem>>, vector<1x32x16xf32>,
    %524 = arith.extui %16 : vector<1x16xi1> to vector<1x16xi32>
    %525 = arith.sitofp %524 : vector<1x16xi32> to vector<1x16xf32>
    %c0_146 = arith.constant 0 : index
    %c0_147 = arith.constant 0 : index
    %c0_148 = arith.constant 0 : index
    %526 = vector.load %arg12[%c0_146, %c0_147, %c0_148] : memref<1x1x16xf32, #tpu.memory_space<vmem>>, vector<1x1x16xf32>
    %527 = vector.shape_cast %526 : vector<1x1x16xf32> to vector<1x16xf32>
    %528 = vector.shape_cast %525 : vector<1x16xf32> to vector<1x1x16xf32>
    tpu.vector_store %arg12[%c0_146, %c0_147, %c0_148], %528 {strides = array<i32>} : memref<1x1x16xf32, #tpu.memory_space<vmem>>, vector<1x1x16xf32>,
    return
  }
  func.func @transform_0(%arg0: i32, %arg1: memref<2xi32, #tpu.memory_space<smem>>) -> (i32, i32, i32) {
    %c0_i32 = arith.constant 0 : i32
    %c0_i32_0 = arith.constant 0 : i32
    %c0_i32_1 = arith.constant 0 : i32
    return %arg0, %c0_i32, %c0_i32_0 : i32, i32, i32
  }
  func.func @transform_1(%arg0: i32, %arg1: memref<2xi32, #tpu.memory_space<smem>>) -> (i32, i32) {
    %c0_i32 = arith.constant 0 : i32
    %c0_i32_0 = arith.constant 0 : i32
    %c0_i32_1 = arith.constant 0 : i32
    return %c0_i32, %c0_i32_0 : i32, i32
  }
  func.func @transform_2(%arg0: i32, %arg1: memref<2xi32, #tpu.memory_space<smem>>) -> (i32, i32, i32) {
    %c0_i32 = arith.constant 0 : i32
    %c0_i32_0 = arith.constant 0 : i32
    %c0_i32_1 = arith.constant 0 : i32
    %c0_i32_2 = arith.constant 0 : i32
    return %c0_i32, %c0_i32_0, %c0_i32_1 : i32, i32, i32
  }
  func.func @transform_3(%arg0: i32, %arg1: memref<2xi32, #tpu.memory_space<smem>>) -> (i32, i32, i32) {
    %c0_i32 = arith.constant 0 : i32
    %c0_i32_0 = arith.constant 0 : i32
    %c0_i32_1 = arith.constant 0 : i32
    %c0_i32_2 = arith.constant 0 : i32
    return %c0_i32, %c0_i32_0, %c0_i32_1 : i32, i32, i32
  }
  func.func @transform_4(%arg0: i32, %arg1: memref<2xi32, #tpu.memory_space<smem>>) -> (i32, i32) {
    %c0_i32 = arith.constant 0 : i32
    %c0_i32_0 = arith.constant 0 : i32
    %c0_i32_1 = arith.constant 0 : i32
    return %c0_i32, %c0_i32_0 : i32, i32
  }
  func.func @transform_5(%arg0: i32, %arg1: memref<2xi32, #tpu.memory_space<smem>>) -> (i32, i32) {
    %c0_i32 = arith.constant 0 : i32
    %c0_i32_0 = arith.constant 0 : i32
    %c0_i32_1 = arith.constant 0 : i32
    return %c0_i32, %c0_i32_0 : i32, i32
  }
  func.func @transform_6(%arg0: i32, %arg1: memref<2xi32, #tpu.memory_space<smem>>) -> (i32, i32, i32) {
    %c0_i32 = arith.constant 0 : i32
    %c0_i32_0 = arith.constant 0 : i32
    %c0_i32_1 = arith.constant 0 : i32
    %c0_i32_2 = arith.constant 0 : i32
    return %c0_i32, %c0_i32_0, %c0_i32_1 : i32, i32, i32
  }
  func.func @transform_7(%arg0: i32, %arg1: memref<2xi32, #tpu.memory_space<smem>>) -> (i32, i32, i32) {
    %c0_i32 = arith.constant 0 : i32
    %c0_i32_0 = arith.constant 0 : i32
    %c0_i32_1 = arith.constant 0 : i32
    %c0_i32_2 = arith.constant 0 : i32
    return %c0_i32, %c0_i32_0, %c0_i32_1 : i32, i32, i32
  }
  func.func @transform_8(%arg0: i32, %arg1: memref<2xi32, #tpu.memory_space<smem>>) -> (i32, i32, i32) {
    %c0_i32 = arith.constant 0 : i32
    %c0_i32_0 = arith.constant 0 : i32
    %c0_i32_1 = arith.constant 0 : i32
    %c0_i32_2 = arith.constant 0 : i32
    return %c0_i32, %c0_i32_0, %c0_i32_1 : i32, i32, i32
  }
  func.func @transform_9(%arg0: i32, %arg1: memref<2xi32, #tpu.memory_space<smem>>) -> (i32, i32, i32) {
    %c0_i32 = arith.constant 0 : i32
    %c0_i32_0 = arith.constant 0 : i32
    %c0_i32_1 = arith.constant 0 : i32
    return %arg0, %c0_i32, %c0_i32_0 : i32, i32, i32
  }
  func.func @transform_10(%arg0: i32, %arg1: memref<2xi32, #tpu.memory_space<smem>>) -> (i32, i32, i32) {
    %c0_i32 = arith.constant 0 : i32
    %c0_i32_0 = arith.constant 0 : i32
    %c0_i32_1 = arith.constant 0 : i32
    return %arg0, %c0_i32, %c0_i32_0 : i32, i32, i32
  }
}

</mosaic_0001>

<llo_original>
// kernel: tts_transformer_text_encoder_forward.1
$region0: #{tts_transformer_text_encoder_forward.1}
  #allocation0 [shape = 'u32[]', space=smem, size = 0x4, offset = 0x4, fixed_abs, tag = 'smem constant byte address 0x4 - core index']
  #allocation1 [shape = 'u32[72,128]{1,0:T(1,128)}', space=vmem, size = 0x9000, scoped, tag = 'internal scratch']
  #allocation2 [shape = 's32[1]{0}', space=sflag, size = 0x4, scoped, tag = 'scoped memory for tts_transformer_text_encoder_forward.1']
  #allocation3 [shape = 'u8[512]{0}', space=smem, size = 0x200, scoped, tag = 'prefetched SMEM operand 0']
  %s0 = inlined_call_operand.vmem [shape: s32[2], index: 0, kind: input, shape index: {}]
  %s1 = inlined_call_operand.vmem [shape: s32[2,16,1], index: 1, kind: input, shape index: {}]
  %s2 = inlined_call_operand.vmem [shape: f32[50,32], index: 2, kind: input, shape index: {}]
  %s3 = inlined_call_operand.hbm [shape: bf16[3,32,96], index: 3, kind: input, shape index: {}]
  %s4 = inlined_call_operand.hbm [shape: f32[3,3,32], index: 4, kind: input, shape index: {}]
  %s5 = inlined_call_operand.vmem [shape: bf16[32,32], index: 5, kind: input, shape index: {}]
  %s6 = inlined_call_operand.vmem [shape: f32[1,32], index: 6, kind: input, shape index: {}]
  %s7 = inlined_call_operand.hbm [shape: bf16[2,32,320], index: 7, kind: input, shape index: {}]
  %s8 = inlined_call_operand.hbm [shape: bf16[2,64,96], index: 8, kind: input, shape index: {}]
  %s9 = inlined_call_operand.hbm [shape: f32[2,8,96], index: 9, kind: input, shape index: {}]
  %s10 = inlined_call_operand.vmem [shape: f32[2,32,16], index: 10, kind: output, shape index: {0}]
  %s11 = inlined_call_operand.hbm [shape: f32[2,1,16], index: 11, kind: output, shape index: {1}]
  %12 = xla_tuple %s10, %s11
  %s13 = sld [smem:[#allocation0]]
  $region97: #{tts_transformer_text_encoder_forward.1} parent=0
    _
  %s15 = ssub.s32 1, %s13
  %s16 = scalar_select 0, %s15, %s13
  %s18 = sshll.u32 %s0, 4
  %s19 = int_to_ptr.vmem [resolvable:$true] %s18
  %21 = dma.vmem_to_smem %s19, 16, [#allocation3], [#allocation2]
  %23 = dma.done [#allocation2], 16
  %24 = sfence
  $region1: #{tts_transformer_text_encoder_forward.1} parent=0
    #allocation4 [shape = 'u8[24576]{0}', space=vmem, size = 0x6000, scoped, tag = 'input window, operand 3, single buffered']
    #allocation5 [shape = 's32[2]{0}', space=sflag, size = 0x8, scoped, tag = 'scoped memory for tts_transformer_text_encoder_forward.1']
    #allocation6 [shape = 's32[2]{0}', space=sflag, size = 0x8, scoped, tag = 'scoped memory for tts_transformer_text_encoder_forward.1']
    #allocation7 [shape = 'u8[6144]{0}', space=vmem, size = 0x1800, scoped, tag = 'input window, operand 4, single buffered']
    #allocation8 [shape = 's32[1]{0}', space=sflag, size = 0x4, scoped, tag = 'scoped memory for tts_transformer_text_encoder_forward.1']
    #allocation9 [shape = 'u8[49152]{0}', space=vmem, size = 0xc000, scoped, tag = 'input window, operand 7, single buffered']
    #allocation10 [shape = 'u8[32768]{0}', space=vmem, size = 0x8000, scoped, tag = 'input window, operand 8, single buffered']
    #allocation11 [shape = 's32[1]{0}', space=sflag, size = 0x4, scoped, tag = 'scoped memory for tts_transformer_text_encoder_forward.1']
    #allocation12 [shape = 'u8[8192]{0}', space=vmem, size = 0x2000, scoped, tag = 'input window, operand 9, single buffered']
    #allocation13 [shape = 'u8[1024]{0}', space=vmem, size = 0x400, scoped, tag = 'output window, operand 1']
    %25 = vsyncpa [#allocation5], 0
    %26 = vsyncpa [#allocation8], 0
    %27 = vsyncpa [#allocation11], 0
    %28 = vsyncpa [#allocation6], 0
    %s29 = scalar_lea.sflag [#allocation6], 1
    %30 = vsyncpa %s29, 0
    loop: start=0, step=1, limit=4
    $region2: #{tts_transformer_text_encoder_forward.1} parent=1 // loop_pre_header
      _
    $region3: #{tts_transformer_text_encoder_forward.1} parent=1 // loop_header
      %s32 = sphi 0, %s36
      %p33 = scmp.ge.s32.totalorder %s32, 4
      %s42 = sphi 0, %s44
      %s45 = sphi 0, %s42
      %s46 = sphi 0, %s45
      %s62 = sphi 0, %s46
      %s66 = sphi 0, %s66
      %s68 = sphi 0, %s66
      %s69 = sphi 0, %s68
      %s83 = sphi 0, %s69
      %s87 = sphi 0, %s87
      %s89 = sphi 0, %s87
      %s90 = sphi 0, %s89
      %s104 = sphi 0, %s90
      %s108 = sphi 0, %s108
      %s110 = sphi 0, %s108
      %s111 = sphi 0, %s110
      %s125 = sphi 0, %s111
      %s129 = sphi 0, %s129
      %s131 = sphi 0, %s129
      %s132 = sphi 0, %s131
      %s146 = sphi 0, %s132
      %s150 = sphi 0, %s150
      %s152 = sphi 0, %s150
      %s153 = sphi 0, %s152
      %s167 = sphi 0, %s153
      %s171 = sphi 0, %s171
      %s173 = sphi 0, %s171
      %s174 = sphi 0, %s173
      %s188 = sphi 0, %s174
      %s192 = sphi 0, %s192
      %s194 = sphi 0, %s192
      %s195 = sphi 0, %s194
      %s209 = sphi 0, %s195
      %s213 = sphi 0, %s213
      %s215 = sphi 0, %s213
      %s216 = sphi 0, %s215
      %s230 = sphi 0, %s216
      %s236 = sphi 0, %s238
      %s239 = sphi 0, %s236
      %s240 = sphi 0, %s239
      %s256 = sphi 0, %s240
      %s262 = sphi 0, %s264
      %s265 = sphi 0, %s262
      %s266 = sphi 0, %s265
      %s282 = sphi 0, %s266
    $region4: #{tts_transformer_text_encoder_forward.1} parent=1 // loop_header_branch
      %35 = sbr.rel (%p33) target = $region8
    $region5: #{tts_transformer_text_encoder_forward.1} parent=1 // loop_body
      %s37 = ssub.s32 %s32, 1
      %s38 = ssub.s32 %s32, 2
      %s39 = sadd.s32 %s32, 1
      %s40 = ssub.s32 %s32, %s39
      %p41 = scmp.eq.s32.totalorder %s40, 0
      %s43 = sadd.s32 %s42, 1
      %s44 = scalar_select %p41, %s42, %s43
      %p47 = pneg %p41
      %p48 = scmp.eq.s32.totalorder %s32, 1
      %p49 = por %p47, %p48
      %p50 = scmp.ne.s32.totalorder %s42, %s45
      %p51 = scmp.eq.s32.totalorder %s32, 0
      %p52 = por %p50, %p51
      %p53 = scmp.ne.s32.totalorder %s42, %s45
      %p54 = scmp.eq.s32.totalorder %s37, 1
      %p55 = por %p53, %p54
      %p56 = scmp.ne.s32.totalorder %s45, %s46
      %p57 = scmp.eq.s32.totalorder %s37, 0
      %p58 = por %p56, %p57
      %p59 = scmp.ne.s32.totalorder %s45, %s46
      %p60 = scmp.eq.s32.totalorder %s38, 1
      %p61 = por %p59, %p60
      %p63 = scmp.ne.s32.totalorder %s46, %s62
      %p64 = scmp.eq.s32.totalorder %s38, 0
      %p65 = por %p63, %p64
      %s67 = sadd.s32 %s66, 1
      %p70 = scmp.eq.s32.totalorder %s32, 1
      %p71 = scmp.ne.s32.totalorder %s66, %s68
      %p72 = scmp.eq.s32.totalorder %s32, 0
      %p73 = por %p71, %p72
      %p74 = scmp.ne.s32.totalorder %s66, %s68
      %p75 = scmp.eq.s32.totalorder %s37, 1
      %p76 = por %p74, %p75
      %p77 = scmp.ne.s32.totalorder %s68, %s69
      %p78 = scmp.eq.s32.totalorder %s37, 0
      %p79 = por %p77, %p78
      %p80 = scmp.ne.s32.totalorder %s68, %s69
      %p81 = scmp.eq.s32.totalorder %s38, 1
      %p82 = por %p80, %p81
      %p84 = scmp.ne.s32.totalorder %s69, %s83
      %p85 = scmp.eq.s32.totalorder %s38, 0
      %p86 = por %p84, %p85
      %s88 = sadd.s32 %s87, 1
      %p91 = scmp.eq.s32.totalorder %s32, 1
      %p92 = scmp.ne.s32.totalorder %s87, %s89
      %p93 = scmp.eq.s32.totalorder %s32, 0
      %p94 = por %p92, %p93
      %p95 = scmp.ne.s32.totalorder %s87, %s89
      %p96 = scmp.eq.s32.totalorder %s37, 1
      %p97 = por %p95, %p96
      %p98 = scmp.ne.s32.totalorder %s89, %s90
      %p99 = scmp.eq.s32.totalorder %s37, 0
      %p100 = por %p98, %p99
      %p101 = scmp.ne.s32.totalorder %s89, %s90
      %p102 = scmp.eq.s32.totalorder %s38, 1
      %p103 = por %p101, %p102
      %p105 = scmp.ne.s32.totalorder %s90, %s104
      %p106 = scmp.eq.s32.totalorder %s38, 0
      %p107 = por %p105, %p106
      %s109 = sadd.s32 %s108, 1
      %p112 = scmp.eq.s32.totalorder %s32, 1
      %p113 = scmp.ne.s32.totalorder %s108, %s110
      %p114 = scmp.eq.s32.totalorder %s32, 0
      %p115 = por %p113, %p114
      %p116 = scmp.ne.s32.totalorder %s108, %s110
      %p117 = scmp.eq.s32.totalorder %s37, 1
      %p118 = por %p116, %p117
      %p119 = scmp.ne.s32.totalorder %s110, %s111
      %p120 = scmp.eq.s32.totalorder %s37, 0
      %p121 = por %p119, %p120
      %p122 = scmp.ne.s32.totalorder %s110, %s111
      %p123 = scmp.eq.s32.totalorder %s38, 1
      %p124 = por %p122, %p123
      %p126 = scmp.ne.s32.totalorder %s111, %s125
      %p127 = scmp.eq.s32.totalorder %s38, 0
      %p128 = por %p126, %p127
      %s130 = sadd.s32 %s129, 1
      %p133 = scmp.eq.s32.totalorder %s32, 1
      %p134 = scmp.ne.s32.totalorder %s129, %s131
      %p135 = scmp.eq.s32.totalorder %s32, 0
      %p136 = por %p134, %p135
      %p137 = scmp.ne.s32.totalorder %s129, %s131
      %p138 = scmp.eq.s32.totalorder %s37, 1
      %p139 = por %p137, %p138
      %p140 = scmp.ne.s32.totalorder %s131, %s132
      %p141 = scmp.eq.s32.totalorder %s37, 0
      %p142 = por %p140, %p141
      %p143 = scmp.ne.s32.totalorder %s131, %s132
      %p144 = scmp.eq.s32.totalorder %s38, 1
      %p145 = por %p143, %p144
      %p147 = scmp.ne.s32.totalorder %s132, %s146
      %p148 = scmp.eq.s32.totalorder %s38, 0
      %p149 = por %p147, %p148
      %s151 = sadd.s32 %s150, 1
      %p154 = scmp.eq.s32.totalorder %s32, 1
      %p155 = scmp.ne.s32.totalorder %s150, %s152
      %p156 = scmp.eq.s32.totalorder %s32, 0
      %p157 = por %p155, %p156
      %p158 = scmp.ne.s32.totalorder %s150, %s152
      %p159 = scmp.eq.s32.totalorder %s37, 1
      %p160 = por %p158, %p159
      %p161 = scmp.ne.s32.totalorder %s152, %s153
      %p162 = scmp.eq.s32.totalorder %s37, 0
      %p163 = por %p161, %p162
      %p164 = scmp.ne.s32.totalorder %s152, %s153
      %p165 = scmp.eq.s32.totalorder %s38, 1
      %p166 = por %p164, %p165
      %p168 = scmp.ne.s32.totalorder %s153, %s167
      %p169 = scmp.eq.s32.totalorder %s38, 0
      %p170 = por %p168, %p169
      %s172 = sadd.s32 %s171, 1
      %p175 = scmp.eq.s32.totalorder %s32, 1
      %p176 = scmp.ne.s32.totalorder %s171, %s173
      %p177 = scmp.eq.s32.totalorder %s32, 0
      %p178 = por %p176, %p177
      %p179 = scmp.ne.s32.totalorder %s171, %s173
      %p180 = scmp.eq.s32.totalorder %s37, 1
      %p181 = por %p179, %p180
      %p182 = scmp.ne.s32.totalorder %s173, %s174
      %p183 = scmp.eq.s32.totalorder %s37, 0
      %p184 = por %p182, %p183
      %p185 = scmp.ne.s32.totalorder %s173, %s174
      %p186 = scmp.eq.s32.totalorder %s38, 1
      %p187 = por %p185, %p186
      %p189 = scmp.ne.s32.totalorder %s174, %s188
      %p190 = scmp.eq.s32.totalorder %s38, 0
      %p191 = por %p189, %p190
      %s193 = sadd.s32 %s192, 1
      %p196 = scmp.eq.s32.totalorder %s32, 1
      %p197 = scmp.ne.s32.totalorder %s192, %s194
      %p198 = scmp.eq.s32.totalorder %s32, 0
      %p199 = por %p197, %p198
      %p200 = scmp.ne.s32.totalorder %s192, %s194
      %p201 = scmp.eq.s32.totalorder %s37, 1
      %p202 = por %p200, %p201
      %p203 = scmp.ne.s32.totalorder %s194, %s195
      %p204 = scmp.eq.s32.totalorder %s37, 0
      %p205 = por %p203, %p204
      %p206 = scmp.ne.s32.totalorder %s194, %s195
      %p207 = scmp.eq.s32.totalorder %s38, 1
      %p208 = por %p206, %p207
      %p210 = scmp.ne.s32.totalorder %s195, %s209
      %p211 = scmp.eq.s32.totalorder %s38, 0
      %p212 = por %p210, %p211
      %s214 = sadd.s32 %s213, 1
      %p217 = scmp.eq.s32.totalorder %s32, 1
      %p218 = scmp.ne.s32.totalorder %s213, %s215
      %p219 = scmp.eq.s32.totalorder %s32, 0
      %p220 = por %p218, %p219
      %p221 = scmp.ne.s32.totalorder %s213, %s215
      %p222 = scmp.eq.s32.totalorder %s37, 1
      %p223 = por %p221, %p222
      %p224 = scmp.ne.s32.totalorder %s215, %s216
      %p225 = scmp.eq.s32.totalorder %s37, 0
      %p226 = por %p224, %p225
      %p227 = scmp.ne.s32.totalorder %s215, %s216
      %p228 = scmp.eq.s32.totalorder %s38, 1
      %p229 = por %p227, %p228
      %p231 = scmp.ne.s32.totalorder %s216, %s230
      %p232 = scmp.eq.s32.totalorder %s38, 0
      %p233 = por %p231, %p232
      %s234 = ssub.s32 %s32, %s39
      %p235 = scmp.eq.s32.totalorder %s234, 0
      %s237 = sadd.s32 %s236, 1
      %s238 = scalar_select %p235, %s236, %s237
      %p241 = pneg %p235
      %p242 = scmp.eq.s32.totalorder %s32, 1
      %p243 = por %p241, %p242
      %p244 = scmp.ne.s32.totalorder %s236, %s239
      %p245 = scmp.eq.s32.totalorder %s32, 0
      %p246 = por %p244, %p245
      %p247 = scmp.ne.s32.totalorder %s236, %s239
      %p248 = scmp.eq.s32.totalorder %s37, 1
      %p249 = por %p247, %p248
      %p250 = scmp.ne.s32.totalorder %s239, %s240
      %p251 = scmp.eq.s32.totalorder %s37, 0
      %p252 = por %p250, %p251
      %p253 = scmp.ne.s32.totalorder %s239, %s240
      %p254 = scmp.eq.s32.totalorder %s38, 1
      %p255 = por %p253, %p254
      %p257 = scmp.ne.s32.totalorder %s240, %s256
      %p258 = scmp.eq.s32.totalorder %s38, 0
      %p259 = por %p257, %p258
      %s260 = ssub.s32 %s32, %s39
      %p261 = scmp.eq.s32.totalorder %s260, 0
      %s263 = sadd.s32 %s262, 1
      %s264 = scalar_select %p261, %s262, %s263
      %p267 = pneg %p261
      %p268 = scmp.eq.s32.totalorder %s32, 1
      %p269 = por %p267, %p268
      %p270 = scmp.ne.s32.totalorder %s262, %s265
      %p271 = scmp.eq.s32.totalorder %s32, 0
      %p272 = por %p270, %p271
      %p273 = scmp.ne.s32.totalorder %s262, %s265
      %p274 = scmp.eq.s32.totalorder %s37, 1
      %p275 = por %p273, %p274
      %p276 = scmp.ne.s32.totalorder %s265, %s266
      %p277 = scmp.eq.s32.totalorder %s37, 0
      %p278 = por %p276, %p277
      %p279 = scmp.ne.s32.totalorder %s265, %s266
      %p280 = scmp.eq.s32.totalorder %s38, 1
      %p281 = por %p279, %p280
      %p283 = scmp.ne.s32.totalorder %s266, %s282
      %p284 = scmp.eq.s32.totalorder %s38, 0
      %p285 = por %p283, %p284
      %p286 = scmp.le.s32.totalorder 1, %s32
      %p287 = scmp.lt.s32.totalorder %s32, 3
      %p288 = pnand %p286, %p287
      %p289 = pneg %p288
      // Predicated region
      $region9: #{tts_transformer_text_encoder_forward.1} parent=5 // pred_check
        _
      $region10: #{tts_transformer_text_encoder_forward.1} parent=5 // pred_check_branch
        %291 = sbr.rel (%p288) target = $region12
      $region11: #{tts_transformer_text_encoder_forward.1} parent=5 // pred_region
        %s292 = ssub.s32 %s32, 1
        // Predicated region
        $region13: #{tts_transformer_text_encoder_forward.1} parent=11 // pred_check
          %p293 = pneg %p79
        $region14: #{tts_transformer_text_encoder_forward.1} parent=11 // pred_check_branch
          %295 = sbr.rel (%p293) target = $region16
        $region15: #{tts_transformer_text_encoder_forward.1} parent=11 // pred_region
          _
        $region16: #{tts_transformer_text_encoder_forward.1} parent=11 // pred_fallthru
          _
        // Predicated region
        $region17: #{tts_transformer_text_encoder_forward.1} parent=11 // pred_check
          %p296 = pneg %p100
        $region18: #{tts_transformer_text_encoder_forward.1} parent=11 // pred_check_branch
          %298 = sbr.rel (%p296) target = $region20
        $region19: #{tts_transformer_text_encoder_forward.1} parent=11 // pred_region
          %300 = vsyncadd [#allocation5], 0
          %s301 = sshll.u32 %s3, 4
          %s302 = int_to_ptr.hbm [resolvable:$true] %s301
          %s303 = sshll.u32 [#allocation4], 4
          %s304 = int_to_ptr.vmem [resolvable:$true] %s303
          %309 = dma.hbm_to_vmem [thread:$0]  %s302, 768, %s304, [#allocation5], 64, 64, 4
        $region20: #{tts_transformer_text_encoder_forward.1} parent=11 // pred_fallthru
          _
        // Predicated region
        $region21: #{tts_transformer_text_encoder_forward.1} parent=11 // pred_check
          %p310 = pneg %p121
        $region22: #{tts_transformer_text_encoder_forward.1} parent=11 // pred_check_branch
          %312 = sbr.rel (%p310) target = $region24
        $region23: #{tts_transformer_text_encoder_forward.1} parent=11 // pred_region
          %314 = vsyncadd [#allocation8], 0
          %s315 = sshll.u32 %s4, 4
          %s316 = int_to_ptr.hbm [resolvable:$true] %s315
          %s317 = sshll.u32 [#allocation7], 4
          %s318 = int_to_ptr.vmem [resolvable:$true] %s317
          %323 = dma.hbm_to_vmem [thread:$0]  %s316, 192, %s318, [#allocation8], 64, 64, 4
        $region24: #{tts_transformer_text_encoder_forward.1} parent=11 // pred_fallthru
          _
        // Predicated region
        $region25: #{tts_transformer_text_encoder_forward.1} parent=11 // pred_check
          %p324 = pneg %p142
        $region26: #{tts_transformer_text_encoder_forward.1} parent=11 // pred_check_branch
          %326 = sbr.rel (%p324) target = $region28
        $region27: #{tts_transformer_text_encoder_forward.1} parent=11 // pred_region
          _
        $region28: #{tts_transformer_text_encoder_forward.1} parent=11 // pred_fallthru
          _
        // Predicated region
        $region29: #{tts_transformer_text_encoder_forward.1} parent=11 // pred_check
          %p327 = pneg %p163
        $region30: #{tts_transformer_text_encoder_forward.1} parent=11 // pred_check_branch
          %329 = sbr.rel (%p327) target = $region32
        $region31: #{tts_transformer_text_encoder_forward.1} parent=11 // pred_region
          _
        $region32: #{tts_transformer_text_encoder_forward.1} parent=11 // pred_fallthru
          _
        // Predicated region
        $region33: #{tts_transformer_text_encoder_forward.1} parent=11 // pred_check
          %p330 = pneg %p184
        $region34: #{tts_transformer_text_encoder_forward.1} parent=11 // pred_check_branch
          %332 = sbr.rel (%p330) target = $region36
        $region35: #{tts_transformer_text_encoder_forward.1} parent=11 // pred_region
          %334 = vsyncadd [#allocation8], 0
          %s335 = sshll.u32 %s7, 4
          %s336 = int_to_ptr.hbm [resolvable:$true] %s335
          %s337 = sshll.u32 [#allocation9], 4
          %s338 = int_to_ptr.vmem [resolvable:$true] %s337
          %343 = dma.hbm_to_vmem [thread:$0]  %s336, 1536, %s338, [#allocation8], 192, 192, 12
        $region36: #{tts_transformer_text_encoder_forward.1} parent=11 // pred_fallthru
          _
        // Predicated region
        $region37: #{tts_transformer_text_encoder_forward.1} parent=11 // pred_check
          %p344 = pneg %p205
        $region38: #{tts_transformer_text_encoder_forward.1} parent=11 // pred_check_branch
          %346 = sbr.rel (%p344) target = $region40
        $region39: #{tts_transformer_text_encoder_forward.1} parent=11 // pred_region
          %348 = vsyncadd [#allocation11], 0
          %s349 = sshll.u32 %s8, 4
          %s350 = int_to_ptr.hbm [resolvable:$true] %s349
          %s351 = sshll.u32 [#allocation10], 4
          %s352 = int_to_ptr.vmem [resolvable:$true] %s351
          %357 = dma.hbm_to_vmem [thread:$0]  %s350, 1024, %s352, [#allocation11], 64, 64, 4
        $region40: #{tts_transformer_text_encoder_forward.1} parent=11 // pred_fallthru
          _
        // Predicated region
        $region41: #{tts_transformer_text_encoder_forward.1} parent=11 // pred_check
          %p358 = pneg %p226
        $region42: #{tts_transformer_text_encoder_forward.1} parent=11 // pred_check_branch
          %360 = sbr.rel (%p358) target = $region44
        $region43: #{tts_transformer_text_encoder_forward.1} parent=11 // pred_region
          %362 = vsyncadd [#allocation11], 0
          %s363 = sshll.u32 %s9, 4
          %s364 = int_to_ptr.hbm [resolvable:$true] %s363
          %s365 = sshll.u32 [#allocation12], 4
          %s366 = int_to_ptr.vmem [resolvable:$true] %s365
          %371 = dma.hbm_to_vmem [thread:$0]  %s364, 256, %s366, [#allocation11], 128, 128, 8
        $region44: #{tts_transformer_text_encoder_forward.1} parent=11 // pred_fallthru
          _
      $region12: #{tts_transformer_text_encoder_forward.1} parent=5 // pred_fallthru
        _
      %p372 = scmp.lt.s32.totalorder %s32, 2
      // Predicated region
      $region45: #{tts_transformer_text_encoder_forward.1} parent=5 // pred_check
        %p373 = pneg %p372
      $region46: #{tts_transformer_text_encoder_forward.1} parent=5 // pred_check_branch
        %375 = sbr.rel (%p373) target = $region48
      $region47: #{tts_transformer_text_encoder_forward.1} parent=5 // pred_region
        // Predicated region
        $region49: #{tts_transformer_text_encoder_forward.1} parent=47 // pred_check
          %p376 = pneg %p52
        $region50: #{tts_transformer_text_encoder_forward.1} parent=47 // pred_check_branch
          %378 = sbr.rel (%p376) target = $region52
        $region51: #{tts_transformer_text_encoder_forward.1} parent=47 // pred_region
          %p379 = scmp.lt.s32.totalorder %s32, 1
          %s380 = scalar_select %p379, %s32, 1
          %s381 = smul.addr %s380, 2
          %s382 = smul.addr %s381, 8
          %s383 = scalar_lea.vmem %s1, %s382
        $region52: #{tts_transformer_text_encoder_forward.1} parent=47 // pred_fallthru
          _
      $region48: #{tts_transformer_text_encoder_forward.1} parent=5 // pred_fallthru
        _
      %p384 = scmp.le.s32.totalorder 1, %s32
      %p385 = scmp.lt.s32.totalorder %s32, 3
      %p386 = pnand %p384, %p385
      %p387 = pneg %p386
      // Predicated region
      $region53: #{tts_transformer_text_encoder_forward.1} parent=5 // pred_check
        _
      $region54: #{tts_transformer_text_encoder_forward.1} parent=5 // pred_check_branch
        %389 = sbr.rel (%p386) target = $region56
      $region55: #{tts_transformer_text_encoder_forward.1} parent=5 // pred_region
        %s390 = ssub.s32 %s32, 1
        // Predicated region
        $region57: #{tts_transformer_text_encoder_forward.1} parent=55 // pred_check
          %p391 = pneg %p100
        $region58: #{tts_transformer_text_encoder_forward.1} parent=55 // pred_check_branch
          %393 = sbr.rel (%p391) target = $region60
        $region59: #{tts_transformer_text_encoder_forward.1} parent=55 // pred_region
          %395 = dma.done [#allocation5], 768
        $region60: #{tts_transformer_text_encoder_forward.1} parent=55 // pred_fallthru
          _
        // Predicated region
        $region61: #{tts_transformer_text_encoder_forward.1} parent=55 // pred_check
          %p396 = pneg %p121
        $region62: #{tts_transformer_text_encoder_forward.1} parent=55 // pred_check_branch
          %398 = sbr.rel (%p396) target = $region64
        $region63: #{tts_transformer_text_encoder_forward.1} parent=55 // pred_region
          %400 = dma.done [#allocation8], 192
        $region64: #{tts_transformer_text_encoder_forward.1} parent=55 // pred_fallthru
          _
        // Predicated region
        $region65: #{tts_transformer_text_encoder_forward.1} parent=55 // pred_check
          %p401 = pneg %p184
        $region66: #{tts_transformer_text_encoder_forward.1} parent=55 // pred_check_branch
          %403 = sbr.rel (%p401) target = $region68
        $region67: #{tts_transformer_text_encoder_forward.1} parent=55 // pred_region
          %405 = dma.done [#allocation8], 1536
        $region68: #{tts_transformer_text_encoder_forward.1} parent=55 // pred_fallthru
          _
        // Predicated region
        $region69: #{tts_transformer_text_encoder_forward.1} parent=55 // pred_check
          %p406 = pneg %p205
        $region70: #{tts_transformer_text_encoder_forward.1} parent=55 // pred_check_branch
          %408 = sbr.rel (%p406) target = $region72
        $region71: #{tts_transformer_text_encoder_forward.1} parent=55 // pred_region
          %410 = dma.done [#allocation11], 1024
        $region72: #{tts_transformer_text_encoder_forward.1} parent=55 // pred_fallthru
          _
        // Predicated region
        $region73: #{tts_transformer_text_encoder_forward.1} parent=55 // pred_check
          %p411 = pneg %p226
        $region74: #{tts_transformer_text_encoder_forward.1} parent=55 // pred_check_branch
          %413 = sbr.rel (%p411) target = $region76
        $region75: #{tts_transformer_text_encoder_forward.1} parent=55 // pred_region
          %415 = dma.done [#allocation11], 256
        $region76: #{tts_transformer_text_encoder_forward.1} parent=55 // pred_fallthru
          _
        %p416 = scmp.lt.s32.totalorder %s37, 1
        %s417 = scalar_select %p416, %s37, 1
        %s418 = smul.addr %s417, 2
        %s419 = smul.addr %s418, 8
        %s420 = scalar_lea.vmem %s1, %s419
        %p421 = pneg %p58
        %p422 = pneg %p55
        %p423 = pneg %p79
        %p424 = pneg %p76
        %p425 = pneg %p100
        %p426 = pneg %p97
        %p427 = pneg %p121
        %p428 = pneg %p118
        %p429 = pneg %p142
        %p430 = pneg %p139
        %p431 = pneg %p163
        %p432 = pneg %p160
        %p433 = pneg %p184
        %p434 = pneg %p181
        %p435 = pneg %p205
        %p436 = pneg %p202
        %p437 = pneg %p226
        %p438 = pneg %p223
        %p439 = pneg %p252
        %p440 = pneg %p249
        %p441 = scmp.lt.s32.totalorder %s37, 1
        %s442 = scalar_select %p441, %s37, 1
        %s443 = smul.addr %s442, 4
        %s444 = smul.addr %s443, 8
        %s445 = scalar_lea.vmem %s10, %s444
        %p446 = pneg %p278
        %p447 = pneg %p275
        %s448 = sand.u32 %s265, 1
        %s449 = scalar_lea.sflag [#allocation6], %s448
        %s450 = sand.u32 %s265, 1
        %s451 = scalar_lea.vmem [#allocation13], %s450
        %p452 = scmp.lt.s32.totalorder %s37, 1
        %s453 = scalar_select %p452, %s37, 1
        %s454 = smul.addr %s453, 2
        %s455 = smul.addr %s454, 8
        %s456 = scalar_lea.vmem %s1, %s455
        %p457 = scmp.lt.s32.totalorder %s37, 1
        %s458 = scalar_select %p457, %s37, 1
        %s459 = smul.addr %s458, 4
        %s460 = smul.addr %s459, 8
        %s461 = scalar_lea.vmem %s10, %s460
        %v463 = vlaneseq
        %v464 = vshrl.u32 %v463, 7
        %v465 = vadd.s32 %v464, 8
        %vm466 = vcmp.ge.s32.totalorder %v464, 1
        %vm467 = vcmp.ge.s32.totalorder %v465, 1
        %vm468 = vcmp.lt.s32.totalorder %v464, 15
        %vm469 = vcmp.lt.s32.totalorder %v465, 15
        %v470 = vlaneseq
        %v471 = vand.u32 %v470, 127
        %v472 = vld [vmem:[%s2] sm:$0xff]
        %v473 = vld [vmem:[%s2 + $0x8] sm:$0xff]
        %v474 = vld [vmem:[%s2 + $0x10] sm:$0xff]
        %v475 = vld [vmem:[%s2 + $0x18] sm:$0xff]
        %v476 = vld [vmem:[%s2 + $0x20] sm:$0xff]
        %v477 = vld [vmem:[%s2 + $0x28] sm:$0xff]
        %v478 = vld [vmem:[%s2 + $0x30] sm:$0x3]
        %s479 = sld [smem:[#allocation3 + %s37]]
        %v480 = vstv %s479
        %vm481 = vcmp.lt.s32.totalorder %v464, %v480
        %vm482 = vcmp.lt.s32.totalorder %v465, %v480
        %vm483 = vcmp.lt.s32.totalorder %v471, %v480
        %v484 = vsel %vm481, 1, 0
        %v485 = vsel %vm482, 1, 0
        %v486 = vcvt.s32.f32 %v484
        %v487 = vcvt.s32.f32 %v485
        %vm488 = vcmp.eq.s32.totalorder %v484, 1
        %vm489 = vcmp.eq.s32.totalorder %v485, 1
        %v490 = vsel %vm483, 1, 0
        %vm491 = vcmp.eq.s32.totalorder %v490, 1
        %vm492 = vmand %vm488, %vm491
        %vm493 = vmand %vm489, %vm491
        %v494 = vld [vmem:[%s456] sm:$0xff]
        %v495 = vld [vmem:[%s456 + $0x8] sm:$0xff]
        %496 = vset.pattern.permute.xlu0 0
        %497 = vperm.xlu0 %496, %v494
        %v498 = vpop.permute.xlu0 %497
        %499 = vset.pattern.permute.xlu0 0
        %500 = vperm.xlu0 %499, %v495
        %v501 = vpop.permute.xlu0 %500
        %vm502 = vcmp.eq.s32.totalorder %v471, %v498
        %vm503 = vcmp.eq.s32.totalorder %v471, %v501
        %v504 = vsel %vm502, 1, 0
        %v505 = vsel %vm503, 1, 0
        %v506 = vcvt.s32.f32 %v504
        %v507 = vcvt.s32.f32 %v505
        %vm508 = vcmask 408576
        %v510 = vsel %vm508, %v506, 0
        %v513 = vsel %vm508, %v507, 0
        %vm515 = vcmask 1041408
        %v517 = vsel %vm515, %v478, 0
        %519 = vmatpush.msra.mxu0 0.0
        %520 = vmatpush.msra.mxu0 0.0
        %521 = vmatpush.msra.mxu0 0.0
        %522 = vmatpush.msra.mxu0 0.0
        %523 = vmatpush.msra.mxu0 0.0
        %524 = vmatpush.msra.mxu0 0.0
        %525 = vmatpush.msra.mxu0 0.0
        %526 = vmatpush.msra.mxu0 0.0
        %527 = vmatpush.msra.mxu0 0.0
        %528 = vmatpush.msra.mxu0 %v517
        %529 = vmatpush.msra.mxu0 %v477
        %530 = vmatpush.msra.mxu0 %v476
        %531 = vmatpush.msra.mxu0 %v475
        %532 = vmatpush.msra.mxu0 %v474
        %533 = vmatpush.msra.mxu0 %v473
        %534 = vmatpush.msra.mxu0 %v472
        %535 = vmatmul.f32.gmra.mxu0 %v510
        %v536 = vpop.f32.mrf.mxu0
        %v537 = vadd.f32 0.0, %v536
        %538 = vmatmul.f32.gmra.mxu0 %v513
        %v539 = vpop.f32.mrf.mxu0
        %v540 = vadd.f32 0.0, %v539
        %541 = vdwg.mxu0
        %v542 = vld [vmem:[#allocation7] sm:$0x7]
        %v543 = vmul.f32 %v537, %v486
        %v544 = vmul.f32 %v540, %v487
        %v545 = vld [vmem:[#allocation4] sm:$0xf]
        %v546 = vld [vmem:[#allocation4 + $0x4] sm:$0xf]
        %v547 = vld [vmem:[#allocation4 + $0x8] sm:$0xf]
        %v548 = vld [vmem:[#allocation4 + $0xc] sm:$0xf]
        %v549 = vpack.c.bf16 %v544, %v543
        %v554 = vunpack.c.l.b16 %v545
        %v555 = vunpack.c.l.b16 %v546
        %v556 = vunpack.c.l.b16 %v547
        %v557 = vunpack.c.l.b16 %v548
        %v558 = vpack.c.b16 %v555, %v554
        %v559 = vpack.c.b16 %v557, %v556
        %vm562 = vcmask 261120
        %v564 = vsel %vm562, %v549, 0
        %566 = vmatpush.bf16.msra.mxu0 0
        %567 = vmatpush.bf16.msra.mxu0 0
        %568 = vmatpush.bf16.msra.mxu0 0
        %569 = vmatpush.bf16.msra.mxu0 0
        %570 = vmatpush.bf16.msra.mxu0 0
        %571 = vmatpush.bf16.msra.mxu0 0
        %572 = vmatpush.bf16.msra.mxu0 %v559
        %573 = vmatpush.bf16.msra.mxu0 %v558
        %574 = vmatmul.bf16.gmra.mxu0 %v564
        %v575 = vpop.f32.mrf.mxu0
        %v576 = vadd.f32 0.0, %v575
        %v577 = vpop.f32.mrf.mxu0
        %v578 = vadd.f32 0.0, %v577
        %579 = vdwg.mxu0
        %v580 = vrot.slane %v576, 7
        %v581 = vrot.slane %v578, 7
        %vm582 = vcmp.lt.s32.totalorder %v464, 1
        %v583 = vsel %vm582, %v580, %v581
        %v584 = vsel %vm582, %v581, %v580
        %v585 = vsel %vm466, 1, 0
        %v586 = vsel %vm467, 1, 0
        %vm587 = vcmp.eq.s32.totalorder %v585, 1
        %vm588 = vcmp.eq.s32.totalorder %v586, 1
        %v589 = vsel %vm587, %v584, 0.0
        %v590 = vsel %vm588, %v583, 0.0
        %593 = vrot.lane.b32.xlu0 %v576, 96
        %v594 = vpop.permute.xlu0 %593
        %595 = vrot.lane.b32.xlu0 %v578, 96
        %v596 = vpop.permute.xlu0 %595
        %v599 = vadd.f32 %v589, %v594
        %v600 = vadd.f32 %v590, %v596
        %601 = vrot.lane.b32.xlu0 %v576, 64
        %v602 = vpop.permute.xlu0 %601
        %603 = vrot.lane.b32.xlu0 %v578, 64
        %v604 = vpop.permute.xlu0 %603
        %v607 = vrot.slane %v602, 1
        %v608 = vrot.slane %v604, 1
        %vm609 = vcmp.lt.s32.totalorder %v464, 7
        %v610 = vsel %vm609, %v607, %v608
        %v611 = vsel %vm609, %v608, %v607
        %v612 = vsel %vm468, 1, 0
        %v613 = vsel %vm469, 1, 0
        %vm614 = vcmp.eq.s32.totalorder %v612, 1
        %vm615 = vcmp.eq.s32.totalorder %v613, 1
        %v616 = vsel %vm614, %v610, 0.0
        %v617 = vsel %vm615, %v611, 0.0
        %v618 = vadd.f32 %v599, %v616
        %v619 = vadd.f32 %v600, %v617
        %v620 = vperm.slane %v542, 0
        %v621 = vadd.f32 %v618, %v620
        %v622 = vadd.f32 %v619, %v620
        %v623 = vsel %vm562, %v621, 0.0
        %624 = vadd.xlane.f32.xlu0 %v623
        %v625 = vpop.xlane.xlu0 %624
        %v626 = vsel %vm562, %v622, 0.0
        %627 = vadd.xlane.f32.xlu0 %v626
        %v628 = vpop.xlane.xlu0 %627
        %v629 = vrcp.pop 32.0
        %v630 = vmul.f32 32.0, %v629
        %v631 = vsub.f32 1.0, %v630
        %v632 = vmul.f32 %v629, %v631
        %v633 = vadd.f32 %v629, %v632
        %vm634 = vweird.f32 %v629
        %v635 = vsel %vm634, %v629, %v633
        %v636 = vmul.f32 %v625, %v635
        %v637 = vmul.f32 %v628, %v635
        %v638 = vsub.f32 %v621, %v636
        %v639 = vsub.f32 %v622, %v637
        %v640 = vmul.f32 %v638, %v638
        %v641 = vmul.f32 %v639, %v639
        %v642 = vsel %vm562, %v640, 0.0
        %643 = vadd.xlane.f32.xlu0 %v642
        %v644 = vpop.xlane.xlu0 %643
        %v645 = vsel %vm562, %v641, 0.0
        %646 = vadd.xlane.f32.xlu0 %v645
        %v647 = vpop.xlane.xlu0 %646
        %v648 = vmul.f32 %v644, %v635
        %v649 = vmul.f32 %v647, %v635
        %v650 = vadd.f32 %v648, 0.0001
        %v651 = vadd.f32 %v649, 0.0001
        %v652 = vrsqrt.pop %v650
        %v653 = vmul.f32 %v652, %v650
        %v654 = vmul.f32 %v653, %v652
        %v655 = vmul.f32 0.5, %v654
        %v656 = vsub.f32 1.5, %v655
        %v657 = vmul.f32 %v652, %v656
        %vm658 = vweird.f32 %v650
        %vm659 = vweird.f32 %v652
        %vm660 = vmor %vm658, %vm659
        %v661 = vsel %vm660, %v652, %v657
        %v662 = vrsqrt.pop %v651
        %v663 = vmul.f32 %v662, %v651
        %v664 = vmul.f32 %v663, %v662
        %v665 = vmul.f32 0.5, %v664
        %v666 = vsub.f32 1.5, %v665
        %v667 = vmul.f32 %v662, %v666
        %vm668 = vweird.f32 %v651
        %vm669 = vweird.f32 %v662
        %vm670 = vmor %vm668, %vm669
        %v671 = vsel %vm670, %v662, %v667
        %v672 = vmul.f32 %v638, %v661
        %v673 = vmul.f32 %v639, %v671
        %v674 = vperm.slane %v542, 1
        %v675 = vmul.f32 %v672, %v674
        %v676 = vmul.f32 %v673, %v674
        %v677 = vperm.slane %v542, 2
        %v678 = vadd.f32 %v675, %v677
        %v679 = vadd.f32 %v676, %v677
        %v680 = vmax.f32 %v678, 0.0
        %v681 = vmax.f32 %v679, 0.0
        %s682 = scalar_lea.vmem [#allocation7], 4
        %v683 = vld [vmem:[%s682] sm:$0x7]
        %v684 = vmul.f32 %v680, %v486
        %v685 = vmul.f32 %v681, %v487
        %s686 = scalar_lea.vmem [#allocation4], 16
        %v687 = vld [vmem:[%s686] sm:$0xf]
        %v688 = vld [vmem:[%s686 + $0x4] sm:$0xf]
        %v689 = vld [vmem:[%s686 + $0x8] sm:$0xf]
        %v690 = vld [vmem:[%s686 + $0xc] sm:$0xf]
        %v691 = vpack.c.bf16 %v685, %v684
        %v696 = vunpack.c.l.b16 %v687
        %v697 = vunpack.c.l.b16 %v688
        %v698 = vunpack.c.l.b16 %v689
        %v699 = vunpack.c.l.b16 %v690
        %v700 = vpack.c.b16 %v697, %v696
        %v701 = vpack.c.b16 %v699, %v698
        %v705 = vsel %vm562, %v691, 0
        %707 = vmatpush.bf16.msra.mxu0 0
        %708 = vmatpush.bf16.msra.mxu0 0
        %709 = vmatpush.bf16.msra.mxu0 0
        %710 = vmatpush.bf16.msra.mxu0 0
        %711 = vmatpush.bf16.msra.mxu0 0
        %712 = vmatpush.bf16.msra.mxu0 0
        %713 = vmatpush.bf16.msra.mxu0 %v701
        %714 = vmatpush.bf16.msra.mxu0 %v700
        %715 = vmatmul.bf16.gmra.mxu0 %v705
        %v716 = vpop.f32.mrf.mxu0
        %v717 = vadd.f32 0.0, %v716
        %v718 = vpop.f32.mrf.mxu0
        %v719 = vadd.f32 0.0, %v718
        %720 = vdwg.mxu0
        %v721 = vrot.slane %v717, 7
        %v722 = vrot.slane %v719, 7
        %v723 = vsel %vm582, %v721, %v722
        %v724 = vsel %vm582, %v722, %v721
        %v725 = vsel %vm587, %v724, 0.0
        %v726 = vsel %vm588, %v723, 0.0
        %729 = vrot.lane.b32.xlu0 %v717, 96
        %v730 = vpop.permute.xlu0 %729
        %731 = vrot.lane.b32.xlu0 %v719, 96
        %v732 = vpop.permute.xlu0 %731
        %v735 = vadd.f32 %v725, %v730
        %v736 = vadd.f32 %v726, %v732
        %737 = vrot.lane.b32.xlu0 %v717, 64
        %v738 = vpop.permute.xlu0 %737
        %739 = vrot.lane.b32.xlu0 %v719, 64
        %v740 = vpop.permute.xlu0 %739
        %v743 = vrot.slane %v738, 1
        %v744 = vrot.slane %v740, 1
        %v745 = vsel %vm609, %v743, %v744
        %v746 = vsel %vm609, %v744, %v743
        %v747 = vsel %vm614, %v745, 0.0
        %v748 = vsel %vm615, %v746, 0.0
        %v749 = vadd.f32 %v735, %v747
        %v750 = vadd.f32 %v736, %v748
        %v751 = vperm.slane %v683, 0
        %v752 = vadd.f32 %v749, %v751
        %v753 = vadd.f32 %v750, %v751
        %v754 = vsel %vm562, %v752, 0.0
        %755 = vadd.xlane.f32.xlu0 %v754
        %v756 = vpop.xlane.xlu0 %755
        %v757 = vsel %vm562, %v753, 0.0
        %758 = vadd.xlane.f32.xlu0 %v757
        %v759 = vpop.xlane.xlu0 %758
        %v760 = vmul.f32 %v756, %v635
        %v761 = vmul.f32 %v759, %v635
        %v762 = vsub.f32 %v752, %v760
        %v763 = vsub.f32 %v753, %v761
        %v764 = vmul.f32 %v762, %v762
        %v765 = vmul.f32 %v763, %v763
        %v766 = vsel %vm562, %v764, 0.0
        %767 = vadd.xlane.f32.xlu0 %v766
        %v768 = vpop.xlane.xlu0 %767
        %v769 = vsel %vm562, %v765, 0.0
        %770 = vadd.xlane.f32.xlu0 %v769
        %v771 = vpop.xlane.xlu0 %770
        %v772 = vmul.f32 %v768, %v635
        %v773 = vmul.f32 %v771, %v635
        %v774 = vadd.f32 %v772, 0.0001
        %v775 = vadd.f32 %v773, 0.0001
        %v776 = vrsqrt.pop %v774
        %v777 = vmul.f32 %v776, %v774
        %v778 = vmul.f32 %v777, %v776
        %v779 = vmul.f32 0.5, %v778
        %v780 = vsub.f32 1.5, %v779
        %v781 = vmul.f32 %v776, %v780
        %vm782 = vweird.f32 %v774
        %vm783 = vweird.f32 %v776
        %vm784 = vmor %vm782, %vm783
        %v785 = vsel %vm784, %v776, %v781
        %v786 = vrsqrt.pop %v775
        %v787 = vmul.f32 %v786, %v775
        %v788 = vmul.f32 %v787, %v786
        %v789 = vmul.f32 0.5, %v788
        %v790 = vsub.f32 1.5, %v789
        %v791 = vmul.f32 %v786, %v790
        %vm792 = vweird.f32 %v775
        %vm793 = vweird.f32 %v786
        %vm794 = vmor %vm792, %vm793
        %v795 = vsel %vm794, %v786, %v791
        %v796 = vmul.f32 %v762, %v785
        %v797 = vmul.f32 %v763, %v795
        %v798 = vperm.slane %v683, 1
        %v799 = vmul.f32 %v796, %v798
        %v800 = vmul.f32 %v797, %v798
        %v801 = vperm.slane %v683, 2
        %v802 = vadd.f32 %v799, %v801
        %v803 = vadd.f32 %v800, %v801
        %v804 = vmax.f32 %v802, 0.0
        %v805 = vmax.f32 %v803, 0.0
        %s806 = scalar_lea.vmem [#allocation7], 8
        %v807 = vld [vmem:[%s806] sm:$0x7]
        %v808 = vmul.f32 %v804, %v486
        %v809 = vmul.f32 %v805, %v487
        %s810 = scalar_lea.vmem [#allocation4], 32
        %v811 = vld [vmem:[%s810] sm:$0xf]
        %v812 = vld [vmem:[%s810 + $0x4] sm:$0xf]
        %v813 = vld [vmem:[%s810 + $0x8] sm:$0xf]
        %v814 = vld [vmem:[%s810 + $0xc] sm:$0xf]
        %v815 = vpack.c.bf16 %v809, %v808
        %v820 = vunpack.c.l.b16 %v811
        %v821 = vunpack.c.l.b16 %v812
        %v822 = vunpack.c.l.b16 %v813
        %v823 = vunpack.c.l.b16 %v814
        %v824 = vpack.c.b16 %v821, %v820
        %v825 = vpack.c.b16 %v823, %v822
        %v829 = vsel %vm562, %v815, 0
        %831 = vmatpush.bf16.msra.mxu0 0
        %832 = vmatpush.bf16.msra.mxu0 0
        %833 = vmatpush.bf16.msra.mxu0 0
        %834 = vmatpush.bf16.msra.mxu0 0
        %835 = vmatpush.bf16.msra.mxu0 0
        %836 = vmatpush.bf16.msra.mxu0 0
        %837 = vmatpush.bf16.msra.mxu0 %v825
        %838 = vmatpush.bf16.msra.mxu0 %v824
        %839 = vmatmul.bf16.gmra.mxu0 %v829
        %v840 = vpop.f32.mrf.mxu0
        %v841 = vadd.f32 0.0, %v840
        %v842 = vpop.f32.mrf.mxu0
        %v843 = vadd.f32 0.0, %v842
        %844 = vdwg.mxu0
        %v845 = vrot.slane %v841, 7
        %v846 = vrot.slane %v843, 7
        %v847 = vsel %vm582, %v845, %v846
        %v848 = vsel %vm582, %v846, %v845
        %v849 = vsel %vm587, %v848, 0.0
        %v850 = vsel %vm588, %v847, 0.0
        %853 = vrot.lane.b32.xlu0 %v841, 96
        %v854 = vpop.permute.xlu0 %853
        %855 = vrot.lane.b32.xlu0 %v843, 96
        %v856 = vpop.permute.xlu0 %855
        %v859 = vadd.f32 %v849, %v854
        %v860 = vadd.f32 %v850, %v856
        %861 = vrot.lane.b32.xlu0 %v841, 64
        %v862 = vpop.permute.xlu0 %861
        %863 = vrot.lane.b32.xlu0 %v843, 64
        %v864 = vpop.permute.xlu0 %863
        %v867 = vrot.slane %v862, 1
        %v868 = vrot.slane %v864, 1
        %v869 = vsel %vm609, %v867, %v868
        %v870 = vsel %vm609, %v868, %v867
        %v871 = vsel %vm614, %v869, 0.0
        %v872 = vsel %vm615, %v870, 0.0
        %v873 = vadd.f32 %v859, %v871
        %v874 = vadd.f32 %v860, %v872
        %v875 = vperm.slane %v807, 0
        %v876 = vadd.f32 %v873, %v875
        %v877 = vadd.f32 %v874, %v875
        %v878 = vsel %vm562, %v876, 0.0
        %879 = vadd.xlane.f32.xlu0 %v878
        %v880 = vpop.xlane.xlu0 %879
        %v881 = vsel %vm562, %v877, 0.0
        %882 = vadd.xlane.f32.xlu0 %v881
        %v883 = vpop.xlane.xlu0 %882
        %v884 = vmul.f32 %v880, %v635
        %v885 = vmul.f32 %v883, %v635
        %v886 = vsub.f32 %v876, %v884
        %v887 = vsub.f32 %v877, %v885
        %v888 = vmul.f32 %v886, %v886
        %v889 = vmul.f32 %v887, %v887
        %v890 = vsel %vm562, %v888, 0.0
        %891 = vadd.xlane.f32.xlu0 %v890
        %v892 = vpop.xlane.xlu0 %891
        %v893 = vsel %vm562, %v889, 0.0
        %894 = vadd.xlane.f32.xlu0 %v893
        %v895 = vpop.xlane.xlu0 %894
        %v896 = vmul.f32 %v892, %v635
        %v897 = vmul.f32 %v895, %v635
        %v898 = vadd.f32 %v896, 0.0001
        %v899 = vadd.f32 %v897, 0.0001
        %v900 = vrsqrt.pop %v898
        %v901 = vmul.f32 %v900, %v898
        %v902 = vmul.f32 %v901, %v900
        %v903 = vmul.f32 0.5, %v902
        %v904 = vsub.f32 1.5, %v903
        %v905 = vmul.f32 %v900, %v904
        %vm906 = vweird.f32 %v898
        %vm907 = vweird.f32 %v900
        %vm908 = vmor %vm906, %vm907
        %v909 = vsel %vm908, %v900, %v905
        %v910 = vrsqrt.pop %v899
        %v911 = vmul.f32 %v910, %v899
        %v912 = vmul.f32 %v911, %v910
        %v913 = vmul.f32 0.5, %v912
        %v914 = vsub.f32 1.5, %v913
        %v915 = vmul.f32 %v910, %v914
        %vm916 = vweird.f32 %v899
        %vm917 = vweird.f32 %v910
        %vm918 = vmor %vm916, %vm917
        %v919 = vsel %vm918, %v910, %v915
        %v920 = vmul.f32 %v886, %v909
        %v921 = vmul.f32 %v887, %v919
        %v922 = vperm.slane %v807, 1
        %v923 = vmul.f32 %v920, %v922
        %v924 = vmul.f32 %v921, %v922
        %v925 = vperm.slane %v807, 2
        %v926 = vadd.f32 %v923, %v925
        %v927 = vadd.f32 %v924, %v925
        %v928 = vmax.f32 %v926, 0.0
        %v929 = vmax.f32 %v927, 0.0
        %v930 = vld [vmem:[%s5] sm:$0xf]
        %v931 = vld [vmem:[%s5 + $0x4] sm:$0xf]
        %v932 = vld [vmem:[%s5 + $0x8] sm:$0xf]
        %v933 = vld [vmem:[%s5 + $0xc] sm:$0xf]
        %v934 = vpack.c.bf16 %v929, %v928
        %v939 = vunpack.c.l.b16 %v930
        %v940 = vunpack.c.l.b16 %v931
        %v941 = vunpack.c.l.b16 %v932
        %v942 = vunpack.c.l.b16 %v933
        %v943 = vpack.c.b16 %v940, %v939
        %v944 = vpack.c.b16 %v942, %v941
        %v948 = vsel %vm562, %v934, 0
        %950 = vmatpush.bf16.msra.mxu0 0
        %951 = vmatpush.bf16.msra.mxu0 0
        %952 = vmatpush.bf16.msra.mxu0 0
        %953 = vmatpush.bf16.msra.mxu0 0
        %954 = vmatpush.bf16.msra.mxu0 0
        %955 = vmatpush.bf16.msra.mxu0 0
        %956 = vmatpush.bf16.msra.mxu0 %v944
        %957 = vmatpush.bf16.msra.mxu0 %v943
        %958 = vmatmul.bf16.gmra.mxu0 %v948
        %v959 = vpop.f32.mrf.mxu0
        %v960 = vadd.f32 0.0, %v959
        %v961 = vpop.f32.mrf.mxu0
        %v962 = vadd.f32 0.0, %v961
        %963 = vdwg.mxu0
        %v964 = vadd.f32 %v537, %v960
        %v965 = vadd.f32 %v540, %v962
        %v966 = vld [vmem:[%s6] sm:$0x1]
        %v968 = vperm.slane %v966, 0
        %v970 = vadd.f32 %v964, %v968
        %v971 = vadd.f32 %v965, %v968
        %v972 = vmul.f32 %v970, %v486
        %v973 = vmul.f32 %v971, %v487
        %v974 = vld [vmem:[#allocation9] sm:$0xff]
        %v975 = vld [vmem:[#allocation9 + $0x8] sm:$0xf]
        %v976 = vld [vmem:[#allocation9 + $0xc] sm:$0xff]
        %v977 = vld [vmem:[#allocation9 + $0x14] sm:$0xf]
        %v978 = vld [vmem:[#allocation9 + $0x18] sm:$0xff]
        %v979 = vld [vmem:[#allocation9 + $0x20] sm:$0xf]
        %v980 = vld [vmem:[#allocation9 + $0x24] sm:$0xff]
        %v981 = vld [vmem:[#allocation9 + $0x2c] sm:$0xf]
        %v982 = vld [vmem:[#allocation12] sm:$0xff]
        %v983 = vmul.f32 %v972, %v486
        %v984 = vmul.f32 %v973, %v487
        %v985 = vpack.c.bf16 %v984, %v983
        %v986 = vperm.slane %v982, 0
        %v991 = vunpack.c.l.b16 %v974
        %v992 = vunpack.c.l.b16 %v976
        %v993 = vunpack.c.l.b16 %v978
        %v994 = vunpack.c.l.b16 %v980
        %v995 = vpack.c.b16 %v992, %v991
        %v996 = vpack.c.b16 %v994, %v993
        %v1000 = vsel %vm562, %v985, 0
        %1002 = vmatpush.bf16.msra.mxu0 0
        %1003 = vmatpush.bf16.msra.mxu0 0
        %1004 = vmatpush.bf16.msra.mxu0 0
        %1005 = vmatpush.bf16.msra.mxu0 0
        %1006 = vmatpush.bf16.msra.mxu0 0
        %1007 = vmatpush.bf16.msra.mxu0 0
        %1008 = vmatpush.bf16.msra.mxu0 %v996
        %1009 = vmatpush.bf16.msra.mxu0 %v995
        %1010 = vmatmul.bf16.gmra.mxu0 %v1000
        %v1011 = vpop.f32.mrf.mxu0
        %v1012 = vadd.f32 %v986, %v1011
        %v1013 = vpop.f32.mrf.mxu0
        %v1014 = vadd.f32 %v986, %v1013
        %1015 = vdwg.mxu0
        %v1016 = vpack.c.bf16 %v1014, %v1012
        %1018 = vrot.lane.b32.xlu0 %v1016, 96
        %v1019 = vpop.permute.xlu0 %1018
        %vm1020 = vcmask 130048
        %v1022 = vsel %vm1020, %v1016, 0
        %v1025 = vsel %vm1020, %v1019, 0
        %1027 = vmatpush.bf16.xpose.msra.mxu0 0
        %1028 = vmatpush.bf16.xpose.msra.mxu0 0
        %1029 = vmatpush.bf16.xpose.msra.mxu0 0
        %1030 = vmatpush.bf16.xpose.msra.mxu0 0
        %1031 = vmatpush.bf16.xpose.msra.mxu0 0
        %1032 = vmatpush.bf16.xpose.msra.mxu0 0
        %1033 = vmatpush.bf16.xpose.msra.mxu0 0
        %1034 = vmatpush.bf16.xpose.msra.mxu0 %v1025
        %1035 = vmatmul.bf16.gmra.mxu0 %v1022
        %v1036 = vpop.f32.mrf.mxu0
        %v1037 = vadd.f32 0.0, %v1036
        %v1038 = vpop.f32.mrf.mxu0
        %v1039 = vadd.f32 0.0, %v1038
        %1040 = vdwg.mxu0
        %v1041 = vsel %vm492, %v1037, -10000.0
        %v1042 = vsel %vm493, %v1039, -10000.0
        %v1043 = vsel %vm1020, %v1041, -inf
        %1044 = vmax.xlane.f32.xlu0 %v1043
        %v1045 = vpop.xlane.xlu0 %1044
        %v1046 = vsel %vm1020, %v1042, -inf
        %1047 = vmax.xlane.f32.xlu0 %v1046
        %v1048 = vpop.xlane.xlu0 %1047
        %v1049 = vsub.f32 %v1041, %v1045
        %v1050 = vsub.f32 %v1042, %v1048
        %v1051 = vmul.f32 %v1049, 1.442695
        %v1052 = vpow.pop %v1051
        %v1053 = vmul.f32 %v1050, 1.442695
        %v1054 = vpow.pop %v1053
        %v1055 = vsel %vm1020, %v1052, 0.0
        %1056 = vadd.xlane.f32.xlu0 %v1055
        %v1057 = vpop.xlane.xlu0 %1056
        %v1058 = vsel %vm1020, %v1054, 0.0
        %1059 = vadd.xlane.f32.xlu0 %v1058
        %v1060 = vpop.xlane.xlu0 %1059
        %v1061 = vrcp.pop %v1057
        %v1062 = vrcp.pop %v1060
        %v1063 = vmul.f32 %v1052, %v1061
        %v1064 = vmul.f32 %v1054, %v1062
        %v1065 = vpack.c.bf16 %v1064, %v1063
        %1066 = vrot.lane.b32.xlu0 %v1016, 64
        %v1067 = vpop.permute.xlu0 %1066
        %v1070 = vsel %vm1020, %v1065, 0
        %1072 = vmatpush.bf16.msra.mxu0 0
        %1073 = vmatpush.bf16.msra.mxu0 0
        %1074 = vmatpush.bf16.msra.mxu0 0
        %1075 = vmatpush.bf16.msra.mxu0 0
        %1076 = vmatpush.bf16.msra.mxu0 0
        %1077 = vmatpush.bf16.msra.mxu0 0
        %1078 = vmatpush.bf16.msra.mxu0 0
        %1079 = vmatpush.bf16.msra.mxu0 %v1067
        %1080 = vmatmul.bf16.gmra.mxu0 %v1070
        %v1081 = vpop.f32.mrf.mxu0
        %v1082 = vadd.f32 0.0, %v1081
        %v1083 = vpop.f32.mrf.mxu0
        %v1084 = vadd.f32 0.0, %v1083
        %1085 = vdwg.mxu0
        %1086 = vrot.lane.b32.xlu0 %v1016, 112
        %v1087 = vpop.permute.xlu0 %1086
        %1088 = vrot.lane.b32.xlu0 %v1016, 80
        %v1089 = vpop.permute.xlu0 %1088
        %v1091 = vsel %vm1020, %v1087, 0
        %v1094 = vsel %vm1020, %v1089, 0
        %1096 = vmatpush.bf16.xpose.msra.mxu0 0
        %1097 = vmatpush.bf16.xpose.msra.mxu0 0
        %1098 = vmatpush.bf16.xpose.msra.mxu0 0
        %1099 = vmatpush.bf16.xpose.msra.mxu0 0
        %1100 = vmatpush.bf16.xpose.msra.mxu0 0
        %1101 = vmatpush.bf16.xpose.msra.mxu0 0
        %1102 = vmatpush.bf16.xpose.msra.mxu0 0
        %1103 = vmatpush.bf16.xpose.msra.mxu0 %v1094
        %1104 = vmatmul.bf16.gmra.mxu0 %v1091
        %v1105 = vpop.f32.mrf.mxu0
        %v1106 = vadd.f32 0.0, %v1105
        %v1107 = vpop.f32.mrf.mxu0
        %v1108 = vadd.f32 0.0, %v1107
        %1109 = vdwg.mxu0
        %v1110 = vsel %vm492, %v1106, -10000.0
        %v1111 = vsel %vm493, %v1108, -10000.0
        %v1112 = vsel %vm1020, %v1110, -inf
        %1113 = vmax.xlane.f32.xlu0 %v1112
        %v1114 = vpop.xlane.xlu0 %1113
        %v1115 = vsel %vm1020, %v1111, -inf
        %1116 = vmax.xlane.f32.xlu0 %v1115
        %v1117 = vpop.xlane.xlu0 %1116
        %v1118 = vsub.f32 %v1110, %v1114
        %v1119 = vsub.f32 %v1111, %v1117
        %v1120 = vmul.f32 %v1118, 1.442695
        %v1121 = vpow.pop %v1120
        %v1122 = vmul.f32 %v1119, 1.442695
        %v1123 = vpow.pop %v1122
        %v1124 = vsel %vm1020, %v1121, 0.0
        %1125 = vadd.xlane.f32.xlu0 %v1124
        %v1126 = vpop.xlane.xlu0 %1125
        %v1127 = vsel %vm1020, %v1123, 0.0
        %1128 = vadd.xlane.f32.xlu0 %v1127
        %v1129 = vpop.xlane.xlu0 %1128
        %v1130 = vrcp.pop %v1126
        %v1131 = vrcp.pop %v1129
        %v1132 = vmul.f32 %v1121, %v1130
        %v1133 = vmul.f32 %v1123, %v1131
        %v1134 = vpack.c.bf16 %v1133, %v1132
        %1135 = vrot.lane.b32.xlu0 %v1016, 48
        %v1136 = vpop.permute.xlu0 %1135
        %v1139 = vsel %vm1020, %v1134, 0
        %1141 = vmatpush.bf16.msra.mxu0 0
        %1142 = vmatpush.bf16.msra.mxu0 0
        %1143 = vmatpush.bf16.msra.mxu0 0
        %1144 = vmatpush.bf16.msra.mxu0 0
        %1145 = vmatpush.bf16.msra.mxu0 0
        %1146 = vmatpush.bf16.msra.mxu0 0
        %1147 = vmatpush.bf16.msra.mxu0 0
        %1148 = vmatpush.bf16.msra.mxu0 %v1136
        %1149 = vmatmul.bf16.gmra.mxu0 %v1139
        %v1150 = vpop.f32.mrf.mxu0
        %v1151 = vadd.f32 0.0, %v1150
        %v1152 = vpop.f32.mrf.mxu0
        %v1153 = vadd.f32 0.0, %v1152
        %1154 = vdwg.mxu0
        %1157 = vrot.lane.b32.xlu0 %v1151, 16
        %v1158 = vpop.permute.xlu0 %1157
        %1159 = vrot.lane.b32.xlu0 %v1153, 16
        %v1160 = vpop.permute.xlu0 %1159
        %v1163 = vsel %vm1020, %v1082, %v1158
        %v1164 = vsel %vm1020, %v1084, %v1160
        %v1165 = vpack.c.bf16 %v1164, %v1163
        %v1166 = vperm.slane %v982, 1
        %1167 = vrot.lane.b32.xlu0 %v995, 32
        %v1168 = vpop.permute.xlu0 %1167
        %1169 = vrot.lane.b32.xlu0 %v996, 32
        %v1170 = vpop.permute.xlu0 %1169
        %v1174 = vsel %vm562, %v1165, 0
        %1176 = vmatpush.bf16.msra.mxu0 0
        %1177 = vmatpush.bf16.msra.mxu0 0
        %1178 = vmatpush.bf16.msra.mxu0 0
        %1179 = vmatpush.bf16.msra.mxu0 0
        %1180 = vmatpush.bf16.msra.mxu0 0
        %1181 = vmatpush.bf16.msra.mxu0 0
        %1182 = vmatpush.bf16.msra.mxu0 %v1170
        %1183 = vmatpush.bf16.msra.mxu0 %v1168
        %1184 = vmatmul.bf16.gmra.mxu0 %v1174
        %v1185 = vpop.f32.mrf.mxu0
        %v1186 = vadd.f32 %v1166, %v1185
        %v1187 = vpop.f32.mrf.mxu0
        %v1188 = vadd.f32 %v1166, %v1187
        %1189 = vdwg.mxu0
        %v1190 = vadd.f32 %v983, %v1186
        %v1191 = vadd.f32 %v984, %v1188
        %v1192 = vsel %vm562, %v1190, 0.0
        %1193 = vadd.xlane.f32.xlu0 %v1192
        %v1194 = vpop.xlane.xlu0 %1193
        %v1195 = vsel %vm562, %v1191, 0.0
        %1196 = vadd.xlane.f32.xlu0 %v1195
        %v1197 = vpop.xlane.xlu0 %1196
        %v1198 = vmul.f32 %v1194, %v635
        %v1199 = vmul.f32 %v1197, %v635
        %v1200 = vsub.f32 %v1190, %v1198
        %v1201 = vsub.f32 %v1191, %v1199
        %v1202 = vmul.f32 %v1200, %v1200
        %v1203 = vmul.f32 %v1201, %v1201
        %v1204 = vsel %vm562, %v1202, 0.0
        %1205 = vadd.xlane.f32.xlu0 %v1204
        %v1206 = vpop.xlane.xlu0 %1205
        %v1207 = vsel %vm562, %v1203, 0.0
        %1208 = vadd.xlane.f32.xlu0 %v1207
        %v1209 = vpop.xlane.xlu0 %1208
        %v1210 = vmul.f32 %v1206, %v635
        %v1211 = vmul.f32 %v1209, %v635
        %v1212 = vadd.f32 %v1210, 0.0001
        %v1213 = vadd.f32 %v1211, 0.0001
        %v1214 = vrsqrt.pop %v1212
        %v1215 = vmul.f32 %v1214, %v1212
        %v1216 = vmul.f32 %v1215, %v1214
        %v1217 = vmul.f32 0.5, %v1216
        %v1218 = vsub.f32 1.5, %v1217
        %v1219 = vmul.f32 %v1214, %v1218
        %vm1220 = vweird.f32 %v1212
        %vm1221 = vweird.f32 %v1214
        %vm1222 = vmor %vm1220, %vm1221
        %v1223 = vsel %vm1222, %v1214, %v1219
        %v1224 = vrsqrt.pop %v1213
        %v1225 = vmul.f32 %v1224, %v1213
        %v1226 = vmul.f32 %v1225, %v1224
        %v1227 = vmul.f32 0.5, %v1226
        %v1228 = vsub.f32 1.5, %v1227
        %v1229 = vmul.f32 %v1224, %v1228
        %vm1230 = vweird.f32 %v1213
        %vm1231 = vweird.f32 %v1224
        %vm1232 = vmor %vm1230, %vm1231
        %v1233 = vsel %vm1232, %v1224, %v1229
        %v1234 = vmul.f32 %v1200, %v1223
        %v1235 = vmul.f32 %v1201, %v1233
        %v1236 = vperm.slane %v982, 2
        %v1237 = vmul.f32 %v1234, %v1236
        %v1238 = vmul.f32 %v1235, %v1236
        %v1239 = vperm.slane %v982, 3
        %v1240 = vadd.f32 %v1237, %v1239
        %v1241 = vadd.f32 %v1238, %v1239
        %v1242 = vld [vmem:[#allocation10] sm:$0xf]
        %v1243 = vld [vmem:[#allocation10 + $0x4] sm:$0xf]
        %v1244 = vld [vmem:[#allocation10 + $0x8] sm:$0xf]
        %v1245 = vld [vmem:[#allocation10 + $0xc] sm:$0xf]
        %v1246 = vld [vmem:[#allocation10 + $0x10] sm:$0xf]
        %v1247 = vld [vmem:[#allocation10 + $0x14] sm:$0xf]
        %v1248 = vld [vmem:[#allocation10 + $0x18] sm:$0xf]
        %v1249 = vld [vmem:[#allocation10 + $0x1c] sm:$0xf]
        %v1250 = vmul.f32 %v1240, %v486
        %v1251 = vmul.f32 %v1241, %v487
        %v1252 = vpack.c.bf16 %v1251, %v1250
        %v1257 = vunpack.c.h.b16 %v974
        %v1258 = vunpack.c.l.b16 %v975
        %v1259 = vunpack.c.h.b16 %v976
        %v1260 = vunpack.c.l.b16 %v977
        %v1261 = vunpack.c.h.b16 %v978
        %v1262 = vunpack.c.l.b16 %v979
        %v1263 = vunpack.c.h.b16 %v980
        %v1264 = vunpack.c.l.b16 %v981
        %v1265 = vpack.c.b16 %v1259, %v1257
        %v1266 = vpack.c.b16 %v1260, %v1258
        %v1267 = vpack.c.b16 %v1263, %v1261
        %v1268 = vpack.c.b16 %v1264, %v1262
        %v1274 = vsel %vm562, %v1252, 0
        %1276 = vmatpush.bf16.msra.mxu0 0
        %1277 = vmatpush.bf16.msra.mxu0 0
        %1278 = vmatpush.bf16.msra.mxu0 0
        %1279 = vmatpush.bf16.msra.mxu0 0
        %1280 = vmatpush.bf16.msra.mxu0 0
        %1281 = vmatpush.bf16.msra.mxu0 0
        %1282 = vmatpush.bf16.msra.mxu0 %v1267
        %1283 = vmatpush.bf16.msra.mxu0 %v1265
        %1284 = vmatmul.bf16.gmra.mxu0 %v1274
        %v1285 = vpop.f32.mrf.mxu0
        %v1286 = vadd.f32 0.0, %v1285
        %v1287 = vpop.f32.mrf.mxu0
        %v1288 = vadd.f32 0.0, %v1287
        %1289 = vdwg.mxu0
        %1290 = vmatpush.bf16.msra.mxu0 0
        %1291 = vmatpush.bf16.msra.mxu0 0
        %1292 = vmatpush.bf16.msra.mxu0 0
        %1293 = vmatpush.bf16.msra.mxu0 0
        %1294 = vmatpush.bf16.msra.mxu0 0
        %1295 = vmatpush.bf16.msra.mxu0 0
        %1296 = vmatpush.bf16.msra.mxu0 %v1268
        %1297 = vmatpush.bf16.msra.mxu0 %v1266
        %1298 = vmatmul.bf16.gmra.mxu0 %v1274
        %v1299 = vpop.f32.mrf.mxu0
        %v1300 = vadd.f32 0.0, %v1299
        %v1301 = vpop.f32.mrf.mxu0
        %v1302 = vadd.f32 0.0, %v1301
        %1303 = vdwg.mxu0
        %v1304 = vrot.slane %v1286, 7
        %v1305 = vrot.slane %v1288, 7
        %v1306 = vsel %vm582, %v1304, %v1305
        %v1307 = vsel %vm582, %v1305, %v1304
        %v1308 = vsel %vm587, %v1307, 0.0
        %v1309 = vsel %vm588, %v1306, 0.0
        %1312 = vrot.lane.b32.xlu0 %v1286, 64
        %v1313 = vpop.permute.xlu0 %1312
        %1314 = vrot.lane.b32.xlu0 %v1288, 64
        %v1315 = vpop.permute.xlu0 %1314
        %v1318 = vadd.f32 %v1308, %v1313
        %v1319 = vadd.f32 %v1309, %v1315
        %v1320 = vrot.slane %v1300, 1
        %v1321 = vrot.slane %v1302, 1
        %v1322 = vsel %vm609, %v1320, %v1321
        %v1323 = vsel %vm609, %v1321, %v1320
        %v1324 = vsel %vm614, %v1322, 0.0
        %v1325 = vsel %vm615, %v1323, 0.0
        %v1326 = vadd.f32 %v1318, %v1324
        %v1327 = vadd.f32 %v1319, %v1325
        %v1328 = vperm.slane %v982, 4
        %v1329 = vadd.f32 %v1326, %v1328
        %v1330 = vadd.f32 %v1327, %v1328
        %v1331 = vmax.f32 %v1329, 0.0
        %v1332 = vmax.f32 %v1330, 0.0
        %v1333 = vmul.f32 %v1331, %v486
        %v1334 = vmul.f32 %v1332, %v487
        %v1335 = vpack.c.bf16 %v1334, %v1333
        %v1344 = vunpack.c.l.b16 %v1242
        %v1345 = vunpack.c.l.b16 %v1243
        %v1346 = vunpack.c.l.b16 %v1244
        %v1347 = vunpack.c.l.b16 %v1245
        %v1348 = vunpack.c.l.b16 %v1246
        %v1349 = vunpack.c.l.b16 %v1247
        %v1350 = vunpack.c.l.b16 %v1248
        %v1351 = vunpack.c.l.b16 %v1249
        %v1352 = vpack.c.b16 %v1345, %v1344
        %v1353 = vpack.c.b16 %v1347, %v1346
        %v1354 = vpack.c.b16 %v1349, %v1348
        %v1355 = vpack.c.b16 %v1351, %v1350
        %vm1360 = vcmask 523264
        %v1362 = vsel %vm1360, %v1335, 0
        %1364 = vmatpush.bf16.msra.mxu0 0
        %1365 = vmatpush.bf16.msra.mxu0 0
        %1366 = vmatpush.bf16.msra.mxu0 0
        %1367 = vmatpush.bf16.msra.mxu0 0
        %1368 = vmatpush.bf16.msra.mxu0 %v1355
        %1369 = vmatpush.bf16.msra.mxu0 %v1354
        %1370 = vmatpush.bf16.msra.mxu0 %v1353
        %1371 = vmatpush.bf16.msra.mxu0 %v1352
        %1372 = vmatmul.bf16.gmra.mxu0 %v1362
        %v1373 = vpop.f32.mrf.mxu0
        %v1374 = vadd.f32 0.0, %v1373
        %v1375 = vpop.f32.mrf.mxu0
        %v1376 = vadd.f32 0.0, %v1375
        %1377 = vdwg.mxu0
        %v1378 = vrot.slane %v1374, 7
        %v1379 = vrot.slane %v1376, 7
        %v1380 = vsel %vm582, %v1378, %v1379
        %v1381 = vsel %vm582, %v1379, %v1378
        %v1382 = vsel %vm587, %v1381, 0.0
        %v1383 = vsel %vm588, %v1380, 0.0
        %1386 = vrot.lane.b32.xlu0 %v1374, 96
        %v1387 = vpop.permute.xlu0 %1386
        %1388 = vrot.lane.b32.xlu0 %v1376, 96
        %v1389 = vpop.permute.xlu0 %1388
        %v1392 = vadd.f32 %v1382, %v1387
        %v1393 = vadd.f32 %v1383, %v1389
        %1394 = vrot.lane.b32.xlu0 %v1374, 64
        %v1395 = vpop.permute.xlu0 %1394
        %1396 = vrot.lane.b32.xlu0 %v1376, 64
        %v1397 = vpop.permute.xlu0 %1396
        %v1400 = vrot.slane %v1395, 1
        %v1401 = vrot.slane %v1397, 1
        %v1402 = vsel %vm609, %v1400, %v1401
        %v1403 = vsel %vm609, %v1401, %v1400
        %v1404 = vsel %vm614, %v1402, 0.0
        %v1405 = vsel %vm615, %v1403, 0.0
        %v1406 = vadd.f32 %v1392, %v1404
        %v1407 = vadd.f32 %v1393, %v1405
        %v1408 = vperm.slane %v982, 5
        %v1409 = vadd.f32 %v1406, %v1408
        %v1410 = vadd.f32 %v1407, %v1408
        %v1411 = vmul.f32 %v1409, %v486
        %v1412 = vmul.f32 %v1410, %v487
        %v1413 = vadd.f32 %v1240, %v1411
        %v1414 = vadd.f32 %v1241, %v1412
        %v1415 = vsel %vm562, %v1413, 0.0
        %1416 = vadd.xlane.f32.xlu0 %v1415
        %v1417 = vpop.xlane.xlu0 %1416
        %v1418 = vsel %vm562, %v1414, 0.0
        %1419 = vadd.xlane.f32.xlu0 %v1418
        %v1420 = vpop.xlane.xlu0 %1419
        %v1421 = vmul.f32 %v1417, %v635
        %v1422 = vmul.f32 %v1420, %v635
        %v1423 = vsub.f32 %v1413, %v1421
        %v1424 = vsub.f32 %v1414, %v1422
        %v1425 = vmul.f32 %v1423, %v1423
        %v1426 = vmul.f32 %v1424, %v1424
        %v1427 = vsel %vm562, %v1425, 0.0
        %1428 = vadd.xlane.f32.xlu0 %v1427
        %v1429 = vpop.xlane.xlu0 %1428
        %v1430 = vsel %vm562, %v1426, 0.0
        %1431 = vadd.xlane.f32.xlu0 %v1430
        %v1432 = vpop.xlane.xlu0 %1431
        %v1433 = vmul.f32 %v1429, %v635
        %v1434 = vmul.f32 %v1432, %v635
        %v1435 = vadd.f32 %v1433, 0.0001
        %v1436 = vadd.f32 %v1434, 0.0001
        %v1437 = vrsqrt.pop %v1435
        %v1438 = vmul.f32 %v1437, %v1435
        %v1439 = vmul.f32 %v1438, %v1437
        %v1440 = vmul.f32 0.5, %v1439
        %v1441 = vsub.f32 1.5, %v1440
        %v1442 = vmul.f32 %v1437, %v1441
        %vm1443 = vweird.f32 %v1435
        %vm1444 = vweird.f32 %v1437
        %vm1445 = vmor %vm1443, %vm1444
        %v1446 = vsel %vm1445, %v1437, %v1442
        %v1447 = vrsqrt.pop %v1436
        %v1448 = vmul.f32 %v1447, %v1436
        %v1449 = vmul.f32 %v1448, %v1447
        %v1450 = vmul.f32 0.5, %v1449
        %v1451 = vsub.f32 1.5, %v1450
        %v1452 = vmul.f32 %v1447, %v1451
        %vm1453 = vweird.f32 %v1436
        %vm1454 = vweird.f32 %v1447
        %vm1455 = vmor %vm1453, %vm1454
        %v1456 = vsel %vm1455, %v1447, %v1452
        %v1457 = vmul.f32 %v1423, %v1446
        %v1458 = vmul.f32 %v1424, %v1456
        %v1459 = vperm.slane %v982, 6
        %v1460 = vmul.f32 %v1457, %v1459
        %v1461 = vmul.f32 %v1458, %v1459
        %v1462 = vperm.slane %v982, 7
        %v1463 = vadd.f32 %v1460, %v1462
        %v1464 = vadd.f32 %v1461, %v1462
        %s1465 = scalar_lea.vmem [#allocation9], 48
        %v1466 = vld [vmem:[%s1465] sm:$0xff]
        %v1467 = vld [vmem:[%s1465 + $0x8] sm:$0xf]
        %v1468 = vld [vmem:[%s1465 + $0xc] sm:$0xff]
        %v1469 = vld [vmem:[%s1465 + $0x14] sm:$0xf]
        %v1470 = vld [vmem:[%s1465 + $0x18] sm:$0xff]
        %v1471 = vld [vmem:[%s1465 + $0x20] sm:$0xf]
        %v1472 = vld [vmem:[%s1465 + $0x24] sm:$0xff]
        %v1473 = vld [vmem:[%s1465 + $0x2c] sm:$0xf]
        %s1474 = scalar_lea.vmem [#allocation12], 8
        %v1475 = vld [vmem:[%s1474] sm:$0xff]
        %v1476 = vmul.f32 %v1463, %v486
        %v1477 = vmul.f32 %v1464, %v487
        %v1478 = vpack.c.bf16 %v1477, %v1476
        %v1479 = vperm.slane %v1475, 0
        %v1484 = vunpack.c.l.b16 %v1466
        %v1485 = vunpack.c.l.b16 %v1468
        %v1486 = vunpack.c.l.b16 %v1470
        %v1487 = vunpack.c.l.b16 %v1472
        %v1488 = vpack.c.b16 %v1485, %v1484
        %v1489 = vpack.c.b16 %v1487, %v1486
        %v1493 = vsel %vm562, %v1478, 0
        %1495 = vmatpush.bf16.msra.mxu0 0
        %1496 = vmatpush.bf16.msra.mxu0 0
        %1497 = vmatpush.bf16.msra.mxu0 0
        %1498 = vmatpush.bf16.msra.mxu0 0
        %1499 = vmatpush.bf16.msra.mxu0 0
        %1500 = vmatpush.bf16.msra.mxu0 0
        %1501 = vmatpush.bf16.msra.mxu0 %v1489
        %1502 = vmatpush.bf16.msra.mxu0 %v1488
        %1503 = vmatmul.bf16.gmra.mxu0 %v1493
        %v1504 = vpop.f32.mrf.mxu0
        %v1505 = vadd.f32 %v1479, %v1504
        %v1506 = vpop.f32.mrf.mxu0
        %v1507 = vadd.f32 %v1479, %v1506
        %1508 = vdwg.mxu0
        %v1509 = vpack.c.bf16 %v1507, %v1505
        %1511 = vrot.lane.b32.xlu0 %v1509, 96
        %v1512 = vpop.permute.xlu0 %1511
        %v1514 = vsel %vm1020, %v1509, 0
        %v1517 = vsel %vm1020, %v1512, 0
        %1519 = vmatpush.bf16.xpose.msra.mxu0 0
        %1520 = vmatpush.bf16.xpose.msra.mxu0 0
        %1521 = vmatpush.bf16.xpose.msra.mxu0 0
        %1522 = vmatpush.bf16.xpose.msra.mxu0 0
        %1523 = vmatpush.bf16.xpose.msra.mxu0 0
        %1524 = vmatpush.bf16.xpose.msra.mxu0 0
        %1525 = vmatpush.bf16.xpose.msra.mxu0 0
        %1526 = vmatpush.bf16.xpose.msra.mxu0 %v1517
        %1527 = vmatmul.bf16.gmra.mxu0 %v1514
        %v1528 = vpop.f32.mrf.mxu0
        %v1529 = vadd.f32 0.0, %v1528
        %v1530 = vpop.f32.mrf.mxu0
        %v1531 = vadd.f32 0.0, %v1530
        %1532 = vdwg.mxu0
        %v1533 = vsel %vm492, %v1529, -10000.0
        %v1534 = vsel %vm493, %v1531, -10000.0
        %v1535 = vsel %vm1020, %v1533, -inf
        %1536 = vmax.xlane.f32.xlu0 %v1535
        %v1537 = vpop.xlane.xlu0 %1536
        %v1538 = vsel %vm1020, %v1534, -inf
        %1539 = vmax.xlane.f32.xlu0 %v1538
        %v1540 = vpop.xlane.xlu0 %1539
        %v1541 = vsub.f32 %v1533, %v1537
        %v1542 = vsub.f32 %v1534, %v1540
        %v1543 = vmul.f32 %v1541, 1.442695
        %v1544 = vpow.pop %v1543
        %v1545 = vmul.f32 %v1542, 1.442695
        %v1546 = vpow.pop %v1545
        %v1547 = vsel %vm1020, %v1544, 0.0
        %1548 = vadd.xlane.f32.xlu0 %v1547
        %v1549 = vpop.xlane.xlu0 %1548
        %v1550 = vsel %vm1020, %v1546, 0.0
        %1551 = vadd.xlane.f32.xlu0 %v1550
        %v1552 = vpop.xlane.xlu0 %1551
        %v1553 = vrcp.pop %v1549
        %v1554 = vrcp.pop %v1552
        %v1555 = vmul.f32 %v1544, %v1553
        %v1556 = vmul.f32 %v1546, %v1554
        %v1557 = vpack.c.bf16 %v1556, %v1555
        %1558 = vrot.lane.b32.xlu0 %v1509, 64
        %v1559 = vpop.permute.xlu0 %1558
        %v1562 = vsel %vm1020, %v1557, 0
        %1564 = vmatpush.bf16.msra.mxu0 0
        %1565 = vmatpush.bf16.msra.mxu0 0
        %1566 = vmatpush.bf16.msra.mxu0 0
        %1567 = vmatpush.bf16.msra.mxu0 0
        %1568 = vmatpush.bf16.msra.mxu0 0
        %1569 = vmatpush.bf16.msra.mxu0 0
        %1570 = vmatpush.bf16.msra.mxu0 0
        %1571 = vmatpush.bf16.msra.mxu0 %v1559
        %1572 = vmatmul.bf16.gmra.mxu0 %v1562
        %v1573 = vpop.f32.mrf.mxu0
        %v1574 = vadd.f32 0.0, %v1573
        %v1575 = vpop.f32.mrf.mxu0
        %v1576 = vadd.f32 0.0, %v1575
        %1577 = vdwg.mxu0
        %1578 = vrot.lane.b32.xlu0 %v1509, 112
        %v1579 = vpop.permute.xlu0 %1578
        %1580 = vrot.lane.b32.xlu0 %v1509, 80
        %v1581 = vpop.permute.xlu0 %1580
        %v1583 = vsel %vm1020, %v1579, 0
        %v1586 = vsel %vm1020, %v1581, 0
        %1588 = vmatpush.bf16.xpose.msra.mxu0 0
        %1589 = vmatpush.bf16.xpose.msra.mxu0 0
        %1590 = vmatpush.bf16.xpose.msra.mxu0 0
        %1591 = vmatpush.bf16.xpose.msra.mxu0 0
        %1592 = vmatpush.bf16.xpose.msra.mxu0 0
        %1593 = vmatpush.bf16.xpose.msra.mxu0 0
        %1594 = vmatpush.bf16.xpose.msra.mxu0 0
        %1595 = vmatpush.bf16.xpose.msra.mxu0 %v1586
        %1596 = vmatmul.bf16.gmra.mxu0 %v1583
        %v1597 = vpop.f32.mrf.mxu0
        %v1598 = vadd.f32 0.0, %v1597
        %v1599 = vpop.f32.mrf.mxu0
        %v1600 = vadd.f32 0.0, %v1599
        %1601 = vdwg.mxu0
        %v1602 = vsel %vm492, %v1598, -10000.0
        %v1603 = vsel %vm493, %v1600, -10000.0
        %v1604 = vsel %vm1020, %v1602, -inf
        %1605 = vmax.xlane.f32.xlu0 %v1604
        %v1606 = vpop.xlane.xlu0 %1605
        %v1607 = vsel %vm1020, %v1603, -inf
        %1608 = vmax.xlane.f32.xlu0 %v1607
        %v1609 = vpop.xlane.xlu0 %1608
        %v1610 = vsub.f32 %v1602, %v1606
        %v1611 = vsub.f32 %v1603, %v1609
        %v1612 = vmul.f32 %v1610, 1.442695
        %v1613 = vpow.pop %v1612
        %v1614 = vmul.f32 %v1611, 1.442695
        %v1615 = vpow.pop %v1614
        %v1616 = vsel %vm1020, %v1613, 0.0
        %1617 = vadd.xlane.f32.xlu0 %v1616
        %v1618 = vpop.xlane.xlu0 %1617
        %v1619 = vsel %vm1020, %v1615, 0.0
        %1620 = vadd.xlane.f32.xlu0 %v1619
        %v1621 = vpop.xlane.xlu0 %1620
        %v1622 = vrcp.pop %v1618
        %v1623 = vrcp.pop %v1621
        %v1624 = vmul.f32 %v1613, %v1622
        %v1625 = vmul.f32 %v1615, %v1623
        %v1626 = vpack.c.bf16 %v1625, %v1624
        %1627 = vrot.lane.b32.xlu0 %v1509, 48
        %v1628 = vpop.permute.xlu0 %1627
        %v1631 = vsel %vm1020, %v1626, 0
        %1633 = vmatpush.bf16.msra.mxu0 0
        %1634 = vmatpush.bf16.msra.mxu0 0
        %1635 = vmatpush.bf16.msra.mxu0 0
        %1636 = vmatpush.bf16.msra.mxu0 0
        %1637 = vmatpush.bf16.msra.mxu0 0
        %1638 = vmatpush.bf16.msra.mxu0 0
        %1639 = vmatpush.bf16.msra.mxu0 0
        %1640 = vmatpush.bf16.msra.mxu0 %v1628
        %1641 = vmatmul.bf16.gmra.mxu0 %v1631
        %v1642 = vpop.f32.mrf.mxu0
        %v1643 = vadd.f32 0.0, %v1642
        %v1644 = vpop.f32.mrf.mxu0
        %v1645 = vadd.f32 0.0, %v1644
        %1646 = vdwg.mxu0
        %1649 = vrot.lane.b32.xlu0 %v1643, 16
        %v1650 = vpop.permute.xlu0 %1649
        %1651 = vrot.lane.b32.xlu0 %v1645, 16
        %v1652 = vpop.permute.xlu0 %1651
        %v1655 = vsel %vm1020, %v1574, %v1650
        %v1656 = vsel %vm1020, %v1576, %v1652
        %v1657 = vpack.c.bf16 %v1656, %v1655
        %v1658 = vperm.slane %v1475, 1
        %1659 = vrot.lane.b32.xlu0 %v1488, 32
        %v1660 = vpop.permute.xlu0 %1659
        %1661 = vrot.lane.b32.xlu0 %v1489, 32
        %v1662 = vpop.permute.xlu0 %1661
        %v1666 = vsel %vm562, %v1657, 0
        %1668 = vmatpush.bf16.msra.mxu0 0
        %1669 = vmatpush.bf16.msra.mxu0 0
        %1670 = vmatpush.bf16.msra.mxu0 0
        %1671 = vmatpush.bf16.msra.mxu0 0
        %1672 = vmatpush.bf16.msra.mxu0 0
        %1673 = vmatpush.bf16.msra.mxu0 0
        %1674 = vmatpush.bf16.msra.mxu0 %v1662
        %1675 = vmatpush.bf16.msra.mxu0 %v1660
        %1676 = vmatmul.bf16.gmra.mxu0 %v1666
        %v1677 = vpop.f32.mrf.mxu0
        %v1678 = vadd.f32 %v1658, %v1677
        %v1679 = vpop.f32.mrf.mxu0
        %v1680 = vadd.f32 %v1658, %v1679
        %1681 = vdwg.mxu0
        %v1682 = vadd.f32 %v1476, %v1678
        %v1683 = vadd.f32 %v1477, %v1680
        %v1684 = vsel %vm562, %v1682, 0.0
        %1685 = vadd.xlane.f32.xlu0 %v1684
        %v1686 = vpop.xlane.xlu0 %1685
        %v1687 = vsel %vm562, %v1683, 0.0
        %1688 = vadd.xlane.f32.xlu0 %v1687
        %v1689 = vpop.xlane.xlu0 %1688
        %v1690 = vmul.f32 %v1686, %v635
        %v1691 = vmul.f32 %v1689, %v635
        %v1692 = vsub.f32 %v1682, %v1690
        %v1693 = vsub.f32 %v1683, %v1691
        %v1694 = vmul.f32 %v1692, %v1692
        %v1695 = vmul.f32 %v1693, %v1693
        %v1696 = vsel %vm562, %v1694, 0.0
        %1697 = vadd.xlane.f32.xlu0 %v1696
        %v1698 = vpop.xlane.xlu0 %1697
        %v1699 = vsel %vm562, %v1695, 0.0
        %1700 = vadd.xlane.f32.xlu0 %v1699
        %v1701 = vpop.xlane.xlu0 %1700
        %v1702 = vmul.f32 %v1698, %v635
        %v1703 = vmul.f32 %v1701, %v635
        %v1704 = vadd.f32 %v1702, 0.0001
        %v1705 = vadd.f32 %v1703, 0.0001
        %v1706 = vrsqrt.pop %v1704
        %v1707 = vmul.f32 %v1706, %v1704
        %v1708 = vmul.f32 %v1707, %v1706
        %v1709 = vmul.f32 0.5, %v1708
        %v1710 = vsub.f32 1.5, %v1709
        %v1711 = vmul.f32 %v1706, %v1710
        %vm1712 = vweird.f32 %v1704
        %vm1713 = vweird.f32 %v1706
        %vm1714 = vmor %vm1712, %vm1713
        %v1715 = vsel %vm1714, %v1706, %v1711
        %v1716 = vrsqrt.pop %v1705
        %v1717 = vmul.f32 %v1716, %v1705
        %v1718 = vmul.f32 %v1717, %v1716
        %v1719 = vmul.f32 0.5, %v1718
        %v1720 = vsub.f32 1.5, %v1719
        %v1721 = vmul.f32 %v1716, %v1720
        %vm1722 = vweird.f32 %v1705
        %vm1723 = vweird.f32 %v1716
        %vm1724 = vmor %vm1722, %vm1723
        %v1725 = vsel %vm1724, %v1716, %v1721
        %v1726 = vmul.f32 %v1692, %v1715
        %v1727 = vmul.f32 %v1693, %v1725
        %v1728 = vperm.slane %v1475, 2
        %v1729 = vmul.f32 %v1726, %v1728
        %v1730 = vmul.f32 %v1727, %v1728
        %v1731 = vperm.slane %v1475, 3
        %v1732 = vadd.f32 %v1729, %v1731
        %v1733 = vadd.f32 %v1730, %v1731
        %s1734 = scalar_lea.vmem [#allocation10], 32
        %v1735 = vld [vmem:[%s1734] sm:$0xf]
        %v1736 = vld [vmem:[%s1734 + $0x4] sm:$0xf]
        %v1737 = vld [vmem:[%s1734 + $0x8] sm:$0xf]
        %v1738 = vld [vmem:[%s1734 + $0xc] sm:$0xf]
        %v1739 = vld [vmem:[%s1734 + $0x10] sm:$0xf]
        %v1740 = vld [vmem:[%s1734 + $0x14] sm:$0xf]
        %v1741 = vld [vmem:[%s1734 + $0x18] sm:$0xf]
        %v1742 = vld [vmem:[%s1734 + $0x1c] sm:$0xf]
        %v1743 = vmul.f32 %v1732, %v486
        %v1744 = vmul.f32 %v1733, %v487
        %v1745 = vpack.c.bf16 %v1744, %v1743
        %v1750 = vunpack.c.h.b16 %v1466
        %v1751 = vunpack.c.l.b16 %v1467
        %v1752 = vunpack.c.h.b16 %v1468
        %v1753 = vunpack.c.l.b16 %v1469
        %v1754 = vunpack.c.h.b16 %v1470
        %v1755 = vunpack.c.l.b16 %v1471
        %v1756 = vunpack.c.h.b16 %v1472
        %v1757 = vunpack.c.l.b16 %v1473
        %v1758 = vpack.c.b16 %v1752, %v1750
        %v1759 = vpack.c.b16 %v1753, %v1751
        %v1760 = vpack.c.b16 %v1756, %v1754
        %v1761 = vpack.c.b16 %v1757, %v1755
        %v1767 = vsel %vm562, %v1745, 0
        %1769 = vmatpush.bf16.msra.mxu0 0
        %1770 = vmatpush.bf16.msra.mxu0 0
        %1771 = vmatpush.bf16.msra.mxu0 0
        %1772 = vmatpush.bf16.msra.mxu0 0
        %1773 = vmatpush.bf16.msra.mxu0 0
        %1774 = vmatpush.bf16.msra.mxu0 0
        %1775 = vmatpush.bf16.msra.mxu0 %v1760
        %1776 = vmatpush.bf16.msra.mxu0 %v1758
        %1777 = vmatmul.bf16.gmra.mxu0 %v1767
        %v1778 = vpop.f32.mrf.mxu0
        %v1779 = vadd.f32 0.0, %v1778
        %v1780 = vpop.f32.mrf.mxu0
        %v1781 = vadd.f32 0.0, %v1780
        %1782 = vdwg.mxu0
        %1783 = vmatpush.bf16.msra.mxu0 0
        %1784 = vmatpush.bf16.msra.mxu0 0
        %1785 = vmatpush.bf16.msra.mxu0 0
        %1786 = vmatpush.bf16.msra.mxu0 0
        %1787 = vmatpush.bf16.msra.mxu0 0
        %1788 = vmatpush.bf16.msra.mxu0 0
        %1789 = vmatpush.bf16.msra.mxu0 %v1761
        %1790 = vmatpush.bf16.msra.mxu0 %v1759
        %1791 = vmatmul.bf16.gmra.mxu0 %v1767
        %v1792 = vpop.f32.mrf.mxu0
        %v1793 = vadd.f32 0.0, %v1792
        %v1794 = vpop.f32.mrf.mxu0
        %v1795 = vadd.f32 0.0, %v1794
        %1796 = vdwg.mxu0
        %v1797 = vrot.slane %v1779, 7
        %v1798 = vrot.slane %v1781, 7
        %v1799 = vsel %vm582, %v1797, %v1798
        %v1800 = vsel %vm582, %v1798, %v1797
        %v1801 = vsel %vm587, %v1800, 0.0
        %v1802 = vsel %vm588, %v1799, 0.0
        %1805 = vrot.lane.b32.xlu0 %v1779, 64
        %v1806 = vpop.permute.xlu0 %1805
        %1807 = vrot.lane.b32.xlu0 %v1781, 64
        %v1808 = vpop.permute.xlu0 %1807
        %v1811 = vadd.f32 %v1801, %v1806
        %v1812 = vadd.f32 %v1802, %v1808
        %v1813 = vrot.slane %v1793, 1
        %v1814 = vrot.slane %v1795, 1
        %v1815 = vsel %vm609, %v1813, %v1814
        %v1816 = vsel %vm609, %v1814, %v1813
        %v1817 = vsel %vm614, %v1815, 0.0
        %v1818 = vsel %vm615, %v1816, 0.0
        %v1819 = vadd.f32 %v1811, %v1817
        %v1820 = vadd.f32 %v1812, %v1818
        %v1821 = vperm.slane %v1475, 4
        %v1822 = vadd.f32 %v1819, %v1821
        %v1823 = vadd.f32 %v1820, %v1821
        %v1824 = vmax.f32 %v1822, 0.0
        %v1825 = vmax.f32 %v1823, 0.0
        %v1826 = vmul.f32 %v1824, %v486
        %v1827 = vmul.f32 %v1825, %v487
        %v1828 = vpack.c.bf16 %v1827, %v1826
        %v1837 = vunpack.c.l.b16 %v1735
        %v1838 = vunpack.c.l.b16 %v1736
        %v1839 = vunpack.c.l.b16 %v1737
        %v1840 = vunpack.c.l.b16 %v1738
        %v1841 = vunpack.c.l.b16 %v1739
        %v1842 = vunpack.c.l.b16 %v1740
        %v1843 = vunpack.c.l.b16 %v1741
        %v1844 = vunpack.c.l.b16 %v1742
        %v1845 = vpack.c.b16 %v1838, %v1837
        %v1846 = vpack.c.b16 %v1840, %v1839
        %v1847 = vpack.c.b16 %v1842, %v1841
        %v1848 = vpack.c.b16 %v1844, %v1843
        %v1854 = vsel %vm1360, %v1828, 0
        %1856 = vmatpush.bf16.msra.mxu0 0
        %1857 = vmatpush.bf16.msra.mxu0 0
        %1858 = vmatpush.bf16.msra.mxu0 0
        %1859 = vmatpush.bf16.msra.mxu0 0
        %1860 = vmatpush.bf16.msra.mxu0 %v1848
        %1861 = vmatpush.bf16.msra.mxu0 %v1847
        %1862 = vmatpush.bf16.msra.mxu0 %v1846
        %1863 = vmatpush.bf16.msra.mxu0 %v1845
        %1864 = vmatmul.bf16.gmra.mxu0 %v1854
        %v1865 = vpop.f32.mrf.mxu0
        %v1866 = vadd.f32 0.0, %v1865
        %v1867 = vpop.f32.mrf.mxu0
        %v1868 = vadd.f32 0.0, %v1867
        %1869 = vdwg.mxu0
        %v1870 = vrot.slane %v1866, 7
        %v1871 = vrot.slane %v1868, 7
        %v1872 = vsel %vm582, %v1870, %v1871
        %v1873 = vsel %vm582, %v1871, %v1870
        %v1874 = vsel %vm587, %v1873, 0.0
        %v1875 = vsel %vm588, %v1872, 0.0
        %1878 = vrot.lane.b32.xlu0 %v1866, 96
        %v1879 = vpop.permute.xlu0 %1878
        %1880 = vrot.lane.b32.xlu0 %v1868, 96
        %v1881 = vpop.permute.xlu0 %1880
        %v1884 = vadd.f32 %v1874, %v1879
        %v1885 = vadd.f32 %v1875, %v1881
        %1886 = vrot.lane.b32.xlu0 %v1866, 64
        %v1887 = vpop.permute.xlu0 %1886
        %1888 = vrot.lane.b32.xlu0 %v1868, 64
        %v1889 = vpop.permute.xlu0 %1888
        %v1892 = vrot.slane %v1887, 1
        %v1893 = vrot.slane %v1889, 1
        %v1894 = vsel %vm609, %v1892, %v1893
        %v1895 = vsel %vm609, %v1893, %v1892
        %v1896 = vsel %vm614, %v1894, 0.0
        %v1897 = vsel %vm615, %v1895, 0.0
        %v1898 = vadd.f32 %v1884, %v1896
        %v1899 = vadd.f32 %v1885, %v1897
        %v1900 = vperm.slane %v1475, 5
        %v1901 = vadd.f32 %v1898, %v1900
        %v1902 = vadd.f32 %v1899, %v1900
        %v1903 = vmul.f32 %v1901, %v486
        %v1904 = vmul.f32 %v1902, %v487
        %v1905 = vadd.f32 %v1732, %v1903
        %v1906 = vadd.f32 %v1733, %v1904
        %v1907 = vsel %vm562, %v1905, 0.0
        %1908 = vadd.xlane.f32.xlu0 %v1907
        %v1909 = vpop.xlane.xlu0 %1908
        %v1910 = vsel %vm562, %v1906, 0.0
        %1911 = vadd.xlane.f32.xlu0 %v1910
        %v1912 = vpop.xlane.xlu0 %1911
        %v1913 = vmul.f32 %v1909, %v635
        %v1914 = vmul.f32 %v1912, %v635
        %v1915 = vsub.f32 %v1905, %v1913
        %v1916 = vsub.f32 %v1906, %v1914
        %v1917 = vmul.f32 %v1915, %v1915
        %v1918 = vmul.f32 %v1916, %v1916
        %v1919 = vsel %vm562, %v1917, 0.0
        %1920 = vadd.xlane.f32.xlu0 %v1919
        %v1921 = vpop.xlane.xlu0 %1920
        %v1922 = vsel %vm562, %v1918, 0.0
        %1923 = vadd.xlane.f32.xlu0 %v1922
        %v1924 = vpop.xlane.xlu0 %1923
        %v1925 = vmul.f32 %v1921, %v635
        %v1926 = vmul.f32 %v1924, %v635
        %v1927 = vadd.f32 %v1925, 0.0001
        %v1928 = vadd.f32 %v1926, 0.0001
        %v1929 = vrsqrt.pop %v1927
        %v1930 = vmul.f32 %v1929, %v1927
        %v1931 = vmul.f32 %v1930, %v1929
        %v1932 = vmul.f32 0.5, %v1931
        %v1933 = vsub.f32 1.5, %v1932
        %v1934 = vmul.f32 %v1929, %v1933
        %vm1935 = vweird.f32 %v1927
        %vm1936 = vweird.f32 %v1929
        %vm1937 = vmor %vm1935, %vm1936
        %v1938 = vsel %vm1937, %v1929, %v1934
        %v1939 = vrsqrt.pop %v1928
        %v1940 = vmul.f32 %v1939, %v1928
        %v1941 = vmul.f32 %v1940, %v1939
        %v1942 = vmul.f32 0.5, %v1941
        %v1943 = vsub.f32 1.5, %v1942
        %v1944 = vmul.f32 %v1939, %v1943
        %vm1945 = vweird.f32 %v1928
        %vm1946 = vweird.f32 %v1939
        %vm1947 = vmor %vm1945, %vm1946
        %v1948 = vsel %vm1947, %v1939, %v1944
        %v1949 = vmul.f32 %v1915, %v1938
        %v1950 = vmul.f32 %v1916, %v1948
        %v1951 = vperm.slane %v1475, 6
        %v1952 = vmul.f32 %v1949, %v1951
        %v1953 = vmul.f32 %v1950, %v1951
        %v1954 = vperm.slane %v1475, 7
        %v1955 = vadd.f32 %v1952, %v1954
        %v1956 = vadd.f32 %v1953, %v1954
        %v1957 = vmul.f32 %v1955, %v486
        %v1958 = vmul.f32 %v1956, %v487
        %1959 = vxpose.xlu0.b32.start [1/16] %v1957, 128
        %1960 = vxpose.xlu0.b32.cont [2/16] %v1958, 128
        %1961 = vxpose.xlu0.b32.cont [3/16] 0.0, 128
        %1962 = vxpose.xlu0.b32.cont [4/16] 0.0, 128
        %1963 = vxpose.xlu0.b32.cont [5/16] 0.0, 128
        %1964 = vxpose.xlu0.b32.cont [6/16] 0.0, 128
        %1965 = vxpose.xlu0.b32.cont [7/16] 0.0, 128
        %1966 = vxpose.xlu0.b32.cont [8/16] 0.0, 128
        %1967 = vxpose.xlu0.b32.cont [9/16] 0.0, 128
        %1968 = vxpose.xlu0.b32.cont [10/16] 0.0, 128
        %1969 = vxpose.xlu0.b32.cont [11/16] 0.0, 128
        %1970 = vxpose.xlu0.b32.cont [12/16] 0.0, 128
        %1971 = vxpose.xlu0.b32.cont [13/16] 0.0, 128
        %1972 = vxpose.xlu0.b32.cont [14/16] 0.0, 128
        %1973 = vxpose.xlu0.b32.cont [15/16] 0.0, 128
        %1974 = vxpose.xlu0.b32.end [16/16] 0.0, 128
        %v1975 = vpop.trf.xlu0
        %v1976 = vpop.trf.xlu0
        %v1977 = vpop.trf.xlu0
        %v1978 = vpop.trf.xlu0
        %v1979 = vpop.trf.xlu0
        %v1980 = vpop.trf.xlu0
        %v1981 = vpop.trf.xlu0
        %v1982 = vpop.trf.xlu0
        %v1983 = vpop.trf.xlu0
        %v1984 = vpop.trf.xlu0
        %v1985 = vpop.trf.xlu0
        %v1986 = vpop.trf.xlu0
        %v1987 = vpop.trf.xlu0
        %v1988 = vpop.trf.xlu0
        %v1989 = vpop.trf.xlu0
        %v1990 = vpop.trf.xlu0
        %1991 = vst.msk [vmem:[%s461] sm:$0xff] %vm1020, %v1975
        %1992 = vst.msk [vmem:[%s461 + $0x8] sm:$0xff] %vm1020, %v1976
        %1993 = vst.msk [vmem:[%s461 + $0x10] sm:$0xff] %vm1020, %v1977
        %1994 = vst.msk [vmem:[%s461 + $0x18] sm:$0xff] %vm1020, %v1978
        %v1995 = vcvt.s32.f32 %v490
        %vm1996 = vcmask 122880
        %1997 = vst.msk [vmem:[%s451] sm:$0x1] %vm1996, %v1995
        %p1998 = scmp.lt.s32.totalorder %s37, 1
        %s1999 = scalar_select %p1998, %s37, 1
        %s2000 = smul.addr %s1999, 4
        %s2001 = smul.addr %s2000, 8
        %s2002 = scalar_lea.vmem %s10, %s2001
        %s2003 = sand.u32 %s265, 1
        %s2004 = scalar_lea.sflag [#allocation6], %s2003
        %s2005 = sand.u32 %s265, 1
        %s2006 = scalar_lea.vmem [#allocation13], %s2005
        // Predicated region
        $region77: #{tts_transformer_text_encoder_forward.1} parent=55 // pred_check
          %p2007 = pneg %p249
        $region78: #{tts_transformer_text_encoder_forward.1} parent=55 // pred_check_branch
          %2009 = sbr.rel (%p2007) target = $region80
        $region79: #{tts_transformer_text_encoder_forward.1} parent=55 // pred_region
          _
        $region80: #{tts_transformer_text_encoder_forward.1} parent=55 // pred_fallthru
          _
        // Predicated region
        $region81: #{tts_transformer_text_encoder_forward.1} parent=55 // pred_check
          %p2010 = pneg %p275
        $region82: #{tts_transformer_text_encoder_forward.1} parent=55 // pred_check_branch
          %2012 = sbr.rel (%p2010) target = $region84
        $region83: #{tts_transformer_text_encoder_forward.1} parent=55 // pred_region
          %2014 = vsyncadd %s2004, 0
          %s2015 = scalar_lea.hbm %s11, %s37
          %s2017 = sshll.u32 %s2006, 4
          %s2018 = int_to_ptr.vmem [resolvable:$true] %s2017
          %s2019 = sshll.u32 %s2015, 4
          %s2020 = int_to_ptr.hbm [resolvable:$true] %s2019
          %2022 = dma.vmem_to_hbm [thread:$0]  %s2018, 16, %s2020, %s2004
        $region84: #{tts_transformer_text_encoder_forward.1} parent=55 // pred_fallthru
          _
      $region56: #{tts_transformer_text_encoder_forward.1} parent=5 // pred_fallthru
        _
      %p2023 = scmp.le.s32.totalorder 2, %s32
      // Predicated region
      $region85: #{tts_transformer_text_encoder_forward.1} parent=5 // pred_check
        %p2024 = pneg %p2023
      $region86: #{tts_transformer_text_encoder_forward.1} parent=5 // pred_check_branch
        %2026 = sbr.rel (%p2024) target = $region88
      $region87: #{tts_transformer_text_encoder_forward.1} parent=5 // pred_region
        %s2027 = ssub.s32 %s32, 2
        // Predicated region
        $region89: #{tts_transformer_text_encoder_forward.1} parent=87 // pred_check
          %p2028 = pneg %p255
        $region90: #{tts_transformer_text_encoder_forward.1} parent=87 // pred_check_branch
          %2030 = sbr.rel (%p2028) target = $region92
        $region91: #{tts_transformer_text_encoder_forward.1} parent=87 // pred_region
          %p2031 = scmp.lt.s32.totalorder %s38, 1
          %s2032 = scalar_select %p2031, %s38, 1
          %s2033 = smul.addr %s2032, 4
          %s2034 = smul.addr %s2033, 8
          %s2035 = scalar_lea.vmem %s10, %s2034
        $region92: #{tts_transformer_text_encoder_forward.1} parent=87 // pred_fallthru
          _
        // Predicated region
        $region93: #{tts_transformer_text_encoder_forward.1} parent=87 // pred_check
          %p2036 = pneg %p281
        $region94: #{tts_transformer_text_encoder_forward.1} parent=87 // pred_check_branch
          %2038 = sbr.rel (%p2036) target = $region96
        $region95: #{tts_transformer_text_encoder_forward.1} parent=87 // pred_region
          %s2039 = sand.u32 %s266, 1
          %s2040 = scalar_lea.sflag [#allocation6], %s2039
          %s2041 = sand.u32 %s266, 1
          %s2042 = scalar_lea.vmem [#allocation13], %s2041
          %2044 = dma.done %s2040, 16
        $region96: #{tts_transformer_text_encoder_forward.1} parent=87 // pred_fallthru
          _
      $region88: #{tts_transformer_text_encoder_forward.1} parent=5 // pred_fallthru
        _
    $region6: #{tts_transformer_text_encoder_forward.1} parent=1 // loop_footer
      %s36 = sadd.s32 1, %s32
    $region7: #{tts_transformer_text_encoder_forward.1} parent=1 // loop_footer_branch
      %31 = sbr.rel target = $region3
    $region8: #{tts_transformer_text_encoder_forward.1} parent=1 // loop_exit
      _
    %2045 = vsyncpa [#allocation5], 1
    %s2046 = scalar_lea.sflag [#allocation5], 1
    %2047 = vsyncpa %s2046, 1
    %2048 = vsyncpa [#allocation8], 1
    %2049 = vsyncpa [#allocation11], 1
    %2050 = vsyncpa [#allocation6], 1
    %s2051 = scalar_lea.sflag [#allocation6], 1
    %2052 = vsyncpa %s2051, 1

</llo_original>
